<compile_context>
chip_gen: v6e
topology: v6e:2x2x1
jax: 0.10.0
libtpu: 0.0.40
codegen_flags: <defaults>
</compile_context>

<pallas_src>
import math
import jax
import jax.numpy as jnp
from jax import lax
from jax.experimental import pallas as pl
from jax.experimental.pallas import tpu as pltpu

LANE = 128      # output-channel (lane) padding target
SUBLANE = 16    # bf16 sublane pack -> row tiles are multiples of 16

# Row tile for the conv1 matmul.  Per-step working set (double-buffered bf16
# patch tile + resident weights/gamma + f32 out tile) is
#   2*TM*K*2 + K*Cp*2 + Cp*Cp*4 + 2*TM*Cp*4 bytes  ~= 2.5 MiB at TM=512,
# K=243, Cp<=256 -- comfortably inside v5e's 16 MiB scoped-VMEM default and
# far under v7x's 64 MiB physical VMEM, while being large enough (~512 rows)
# to sit near the measured HBM-roofline knee on v6e.
TM_MAX = 512


def _round_up(x, m):
    return (x + m - 1) // m * m


# --------------------------------------------------------------------------
# conv1: im2col + M-tiled matmul with fused GDN
# --------------------------------------------------------------------------
def _mm_gdn_kernel(p_ref, w_ref, b_ref, gt_ref, beta_ref, o_ref):
    # conv as matmul: bf16 operands, f32 accumulation on the MXU, + bias.
    y = jnp.dot(p_ref[...], w_ref[...],
                preferred_element_type=jnp.float32) + b_ref[...]
    # fused GDN: out_i = y_i * rsqrt(beta_i + sum_j gamma[i, j] * y_j^2)
    norm = jnp.dot(y * y, gt_ref[...],
                   preferred_element_type=jnp.float32) + beta_ref[...]
    o_ref[...] = (y * lax.rsqrt(norm)).astype(o_ref.dtype)


def _im2col(x_nhwc, kh, kw, stride, pad):
    x = jnp.pad(x_nhwc, ((0, 0), (pad, pad), (pad, pad), (0, 0)))
    B, H, W, C = x.shape
    Ho = (H - kh) // stride + 1
    Wo = (W - kw) // stride + 1
    taps = []
    for i in range(kh):
        for j in range(kw):
            taps.append(x[:, i:i + stride * Ho:stride,
                          j:j + stride * Wo:stride, :])
    p = jnp.stack(taps, axis=3)                       # (B, Ho, Wo, Kh*Kw, C)
    return p.reshape(B * Ho * Wo, kh * kw * C), B, Ho, Wo


def _pad_gdn_params(bias, gamma, beta, cout, cp):
    b_p = jnp.pad(bias.astype(jnp.float32), (0, cp - cout)).reshape(1, cp)
    gt_p = jnp.pad(gamma.T.astype(jnp.float32),
                   ((0, cp - cout), (0, cp - cout)))
    # pad beta with ones so padded channels give rsqrt(1) -> stay 0, not NaN.
    beta_p = jnp.pad(beta.astype(jnp.float32), (0, cp - cout),
                     constant_values=1.0).reshape(1, cp)
    return b_p, gt_p, beta_p


def conv_gdn_im2col(x_nhwc, w_oihw, bias, gamma, beta, stride, pad):
    Cout, Cin, Kh, Kw = w_oihw.shape
    patches, B, Ho, Wo = _im2col(x_nhwc, Kh, Kw, stride, pad)
    M, K = patches.shape
    Cp = _round_up(Cout, LANE)
    TM = min(TM_MAX, _round_up(M, SUBLANE))
    Mp = _round_up(M, TM)

    patches = jnp.pad(patches, ((0, Mp - M), (0, 0))).astype(jnp.bfloat16)
    # weight matrix matches patch ordering (tap row-major, channel-minor)
    w_mat = jnp.transpose(w_oihw, (2, 3, 1, 0)).reshape(K, Cout)
    w_mat = jnp.pad(w_mat, ((0, 0), (0, Cp - Cout))).astype(jnp.bfloat16)
    b_p, gt_p, beta_p = _pad_gdn_params(bias, gamma, beta, Cout, Cp)

    flops = 2 * Mp * K * Cp + 2 * Mp * Cp * Cp
    bytes_accessed = Mp * K * 2 + K * Cp * 2 + Cp * Cp * 4 + Mp * Cp * 4

    out = pl.pallas_call(
        _mm_gdn_kernel,
        out_shape=jax.ShapeDtypeStruct((Mp, Cp), jnp.float32),
        grid=(Mp // TM,),
        in_specs=[
            pl.BlockSpec((TM, K), lambda i: (i, 0)),    # patch tile (pipelined)
            pl.BlockSpec((K, Cp), lambda i: (0, 0)),    # weights (resident)
            pl.BlockSpec((1, Cp), lambda i: (0, 0)),    # bias
            pl.BlockSpec((Cp, Cp), lambda i: (0, 0)),   # gamma^T
            pl.BlockSpec((1, Cp), lambda i: (0, 0)),    # beta
        ],
        out_specs=pl.BlockSpec((TM, Cp), lambda i: (i, 0)),
        compiler_params=pltpu.CompilerParams(
            dimension_semantics=("parallel",),
            vmem_limit_bytes=48 * 1024 * 1024),
        cost_estimate=pl.CostEstimate(flops=int(flops),
                                      transcendentals=int(Mp * Cp),
                                      bytes_accessed=int(bytes_accessed)),
    )(patches, w_mat, b_p, gt_p, beta_p)
    return out[:M, :Cout].reshape(B, Ho, Wo, Cout)


# --------------------------------------------------------------------------
# conv2 / conv3: direct 5x5 stride-2 convolution from stride-parity phases
# (no im2col materialization), optional fused GDN.
# --------------------------------------------------------------------------
def _make_direct_kernel(kh, kw, with_gdn):
    taps = tuple((i, j) for i in range(kh) for j in range(kw))

    def conv_body(phase_refs, w_ref, o_ref):
        oh = pl.program_id(1)
        wo, cp = o_ref.shape[2], o_ref.shape[3]
        acc = jnp.zeros((wo, cp), jnp.float32)
        for t, (i, j) in enumerate(taps):
            ph = phase_refs[i % 2][j % 2]
            # tap (i, j): unit-stride window of the (i%2, j%2) parity phase
            lhs = ph[0, oh + (i // 2), pl.ds(j // 2, wo), :]     # (wo, Cin)
            acc = acc + jnp.dot(lhs, w_ref[t],
                                preferred_element_type=jnp.float32)
        return acc

    if with_gdn:
        def kernel(p00, p01, p10, p11, w_ref, b_ref, gt_ref, beta_ref, o_ref):
            y = conv_body(((p00, p01), (p10, p11)), w_ref, o_ref) + b_ref[...]
            norm = jnp.dot(y * y, gt_ref[...],
                           preferred_element_type=jnp.float32) + beta_ref[...]
            o_ref[0, 0] = (y * lax.rsqrt(norm)).astype(o_ref.dtype)
    else:
        def kernel(p00, p01, p10, p11, w_ref, o_ref):
            y = conv_body(((p00, p01), (p10, p11)), w_ref, o_ref)
            o_ref[0, 0] = y.astype(o_ref.dtype)
    return kernel


def _stride2_phases(x_nhwc, ho, wo, pad):
    """Zero-pad and split the activation into its 4 stride-2 parity phases,
    each (B, ho+2, wo+2, C).  Total HBM bytes == the activation (no 25x
    im2col blow-up); cast to bf16 to halve DMA traffic."""
    B, H, W, C = x_nhwc.shape
    Hp, Wp = 2 * (ho + 2), 2 * (wo + 2)
    xp = jnp.pad(x_nhwc,
                 ((0, 0), (pad, Hp - H - pad), (pad, Wp - W - pad), (0, 0)))
    return [xp[:, di::2, dj::2, :].astype(jnp.bfloat16)
            for di in (0, 1) for dj in (0, 1)]


def conv5s2_direct(x_nhwc, w_oihw, bias=None, gamma=None, beta=None):
    """5x5 / stride-2 / pad-2 convolution, optionally fused with GDN."""
    Cout, Cin, Kh, Kw = w_oihw.shape
    B, H, W, C = x_nhwc.shape
    assert (Kh, Kw) == (5, 5) and C == Cin
    Ho = (H + 4 - Kh) // 2 + 1
    Wo = (W + 4 - Kw) // 2 + 1
    Cp = _round_up(Cout, LANE)
    with_gdn = gamma is not None

    phases = _stride2_phases(x_nhwc, Ho, Wo, pad=2)
    Hph, Wph = Ho + 2, Wo + 2

    # per-tap weights (Kh*Kw, Cin, Cout_pad), tap-major, bf16
    w_taps = jnp.transpose(w_oihw, (2, 3, 1, 0)).reshape(Kh * Kw, Cin, Cout)
    w_taps = jnp.pad(w_taps, ((0, 0), (0, 0), (0, Cp - Cout))).astype(jnp.bfloat16)

    phase_spec = pl.BlockSpec((1, Hph, Wph, Cin), lambda b, oh: (b, 0, 0, 0))
    operands = list(phases) + [w_taps]
    in_specs = [phase_spec] * 4 + [
        pl.BlockSpec((Kh * Kw, Cin, Cp), lambda b, oh: (0, 0, 0))]
    if with_gdn:
        b_p, gt_p, beta_p = _pad_gdn_params(bias, gamma, beta, Cout, Cp)
        operands += [b_p, gt_p, beta_p]
        in_specs += [pl.BlockSpec((1, Cp), lambda b, oh: (0, 0)),
                     pl.BlockSpec((Cp, Cp), lambda b, oh: (0, 0)),
                     pl.BlockSpec((1, Cp), lambda b, oh: (0, 0))]

    flops = 2 * B * Ho * Wo * Cp * (Kh * Kw * Cin + (Cp if with_gdn else 0))
    bytes_accessed = (4 * B * Hph * Wph * Cin * 2 + Kh * Kw * Cin * Cp * 2
                      + B * Ho * Wo * Cp * 4)

    out = pl.pallas_call(
        _make_direct_kernel(Kh, Kw, with_gdn),
        out_shape=jax.ShapeDtypeStruct((B, Ho, Wo, Cp), jnp.float32),
        grid=(B, Ho),
        in_specs=in_specs,
        out_specs=pl.BlockSpec((1, 1, Wo, Cp), lambda b, oh: (b, oh, 0, 0)),
        compiler_params=pltpu.CompilerParams(
            dimension_semantics=("parallel", "parallel"),
            vmem_limit_bytes=48 * 1024 * 1024),
        cost_estimate=pl.CostEstimate(
            flops=int(flops),
            transcendentals=int(B * Ho * Wo * Cp) if with_gdn else 0,
            bytes_accessed=int(bytes_accessed)),
    )(*operands)
    return out[..., :Cout]


# --------------------------------------------------------------------------
# Parameters and forward pass
# --------------------------------------------------------------------------
def xavier_normal(key, shape, gain):
    # shape = (Cout, Cin, Kh, Kw): fan_in = Cin*Kh*Kw, fan_out = Cout*Kh*Kw
    fan_in = shape[1] * shape[2] * shape[3]
    fan_out = shape[0] * shape[2] * shape[3]
    std = gain * math.sqrt(2.0 / (fan_in + fan_out))
    return std * jax.random.normal(key, shape, dtype=jnp.float32)


def init_params(key, N):
    k1, k2, k3, kb2 = jax.random.split(key, 4)
    p = {}
    # conv1: 3 -> N, 9x9, stride 4, pad 4
    p["w1"] = xavier_normal(k1, (N, 3, 9, 9), math.sqrt(2 * (3 + N) / 6))
    p["b1"] = jnp.full((N,), 0.01, jnp.float32)
    # conv2 weights (Bconv2.weight is a copy of conv2.weight in __init__;
    # binarization() is not applied at init, so forward uses the raw copy)
    p["bw2"] = xavier_normal(k2, (N, N, 5, 5), math.sqrt(2.0))
    # Bconv2 bias keeps the default PyTorch Conv2d init (+/- 1/sqrt(fan_in))
    bound = 1.0 / math.sqrt(N * 5 * 5)
    p["bb2"] = jax.random.uniform(kb2, (N,), jnp.float32, -bound, bound)
    # conv3: N -> N, 5x5, stride 2, pad 2, no bias
    p["w3"] = xavier_normal(k3, (N, N, 5, 5), math.sqrt(2.0))
    # GDN parameters (standard GDN init: beta = 1, gamma = 0.1 * I)
    p["beta1"] = jnp.ones((N,), jnp.float32)
    p["gamma1"] = 0.1 * jnp.eye(N, dtype=jnp.float32)
    p["beta2"] = jnp.ones((N,), jnp.float32)
    p["gamma2"] = 0.1 * jnp.eye(N, dtype=jnp.float32)
    return p


def binary_encoder_forward(x_nchw, params):
    x = jnp.transpose(x_nchw, (0, 2, 3, 1)).astype(jnp.float32)  # NCHW -> NHWC
    x = conv_gdn_im2col(x, params["w1"], params["b1"],
                        params["gamma1"], params["beta1"], stride=4, pad=4)
    x = conv5s2_direct(x, params["bw2"], params["bb2"],
                       params["gamma2"], params["beta2"])
    x = conv5s2_direct(x, params["w3"])
    return jnp.transpose(x, (0, 3, 1, 2))                        # NHWC -> NCHW


if __name__ == "__main__":
    N = 32          # small out_channel_N (module default is 192)
    key = jax.random.PRNGKey(0)
    kx, kp = jax.random.split(key)
    x = jax.random.normal(kx, (2, 3, 32, 32), jnp.float32)       # NCHW input
    params = init_params(kp, N)

    out = jax.jit(binary_encoder_forward)(x, params)
    out = jax.block_until_ready(out)
    assert out.shape == (2, N, 2, 2), out.shape
    assert bool(jnp.all(jnp.isfinite(out)))
    print("KERNEL_OK")
</pallas_src>

<mosaic_0001>
module attributes {stable_mosaic.version = 11 : i64} {
  func.func @_mm_gdn_kernel(%arg0: i32, %arg1: memref<128x243xbf16, #tpu.memory_space<vmem>>, %arg2: memref<243x128xbf16, #tpu.memory_space<vmem>>, %arg3: memref<1x128xf32, #tpu.memory_space<vmem>>, %arg4: memref<128x128xf32, #tpu.memory_space<vmem>>, %arg5: memref<1x128xf32, #tpu.memory_space<vmem>>, %arg6: memref<128x128xf32, #tpu.memory_space<vmem>>) attributes {dimension_semantics = [#tpu.dimension_semantics<parallel>], iteration_bounds = array<i64: 1>, scalar_prefetch = 0 : i64, scratch_operands = 0 : i64, tpu.core_type = #tpu.core_type<tc>, window_params = [{transform_indices = @transform_0, window_bounds = array<i64: 128, 243>}, {pipeline_mode = #tpu.pipeline_mode<synchronous>, transform_indices = @transform_1, window_bounds = array<i64: 243, 128>}, {pipeline_mode = #tpu.pipeline_mode<synchronous>, transform_indices = @transform_2, window_bounds = array<i64: 1, 128>}, {pipeline_mode = #tpu.pipeline_mode<synchronous>, transform_indices = @transform_3, window_bounds = array<i64: 128, 128>}, {pipeline_mode = #tpu.pipeline_mode<synchronous>, transform_indices = @transform_4, window_bounds = array<i64: 1, 128>}, {transform_indices = @transform_5, window_bounds = array<i64: 128, 128>}]} {
    %c0 = arith.constant 0 : index
    %c0_0 = arith.constant 0 : index
    %0 = vector.load %arg1[%c0, %c0_0] : memref<128x243xbf16, #tpu.memory_space<vmem>>, vector<128x243xbf16>
    %c0_1 = arith.constant 0 : index
    %c0_2 = arith.constant 0 : index
    %1 = vector.load %arg2[%c0_1, %c0_2] : memref<243x128xbf16, #tpu.memory_space<vmem>>, vector<243x128xbf16>
    %cst = arith.constant dense<0.000000e+00> : vector<128x128xf32>
    %2 = tpu.matmul %0, %1, %cst {dimension_numbers = #tpu.dot_dimension_numbers<[1], [0], [0], [1], [0, 0, 1, 1], [], []>} : vector<128x243xbf16>, vector<243x128xbf16>, vector<128x128xf32> -> vector<128x128xf32>
    %c0_3 = arith.constant 0 : index
    %c0_4 = arith.constant 0 : index
    %3 = vector.load %arg3[%c0_3, %c0_4] : memref<1x128xf32, #tpu.memory_space<vmem>>, vector<1x128xf32>
    %4 = vector.broadcast %3 : vector<1x128xf32> to vector<128x128xf32>
    %5 = arith.addf %2, %4 : vector<128x128xf32>
    %6 = arith.mulf %5, %5 : vector<128x128xf32>
    %c0_5 = arith.constant 0 : index
    %c0_6 = arith.constant 0 : index
    %7 = vector.load %arg4[%c0_5, %c0_6] : memref<128x128xf32, #tpu.memory_space<vmem>>, vector<128x128xf32>
    %cst_7 = arith.constant dense<0.000000e+00> : vector<128x128xf32>
    %8 = tpu.matmul %6, %7, %cst_7 {dimension_numbers = #tpu.dot_dimension_numbers<[1], [0], [0], [1], [0, 0, 1, 1], [], []>} : vector<128x128xf32>, vector<128x128xf32>, vector<128x128xf32> -> vector<128x128xf32>
    %c0_8 = arith.constant 0 : index
    %c0_9 = arith.constant 0 : index
    %9 = vector.load %arg5[%c0_8, %c0_9] : memref<1x128xf32, #tpu.memory_space<vmem>>, vector<1x128xf32>
    %10 = vector.broadcast %9 : vector<1x128xf32> to vector<128x128xf32>
    %11 = arith.addf %8, %10 : vector<128x128xf32>
    %12 = math.rsqrt %11 : vector<128x128xf32>
    %13 = arith.mulf %5, %12 : vector<128x128xf32>
    %c0_10 = arith.constant 0 : index
    %c0_11 = arith.constant 0 : index
    %14 = vector.load %arg6[%c0_10, %c0_11] : memref<128x128xf32, #tpu.memory_space<vmem>>, vector<128x128xf32>
    tpu.vector_store %arg6[%c0_10, %c0_11], %13 {strides = array<i32>} : memref<128x128xf32, #tpu.memory_space<vmem>>, vector<128x128xf32>,
    return
  }
  func.func @transform_0(%arg0: i32) -> (i32, i32) {
    %c0_i32 = arith.constant 0 : i32
    %c0_i32_0 = arith.constant 0 : i32
    return %arg0, %c0_i32 : i32, i32
  }
  func.func @transform_1(%arg0: i32) -> (i32, i32) {
    %c0_i32 = arith.constant 0 : i32
    %c0_i32_0 = arith.constant 0 : i32
    %c0_i32_1 = arith.constant 0 : i32
    return %c0_i32, %c0_i32_0 : i32, i32
  }
  func.func @transform_2(%arg0: i32) -> (i32, i32) {
    %c0_i32 = arith.constant 0 : i32
    %c0_i32_0 = arith.constant 0 : i32
    %c0_i32_1 = arith.constant 0 : i32
    return %c0_i32, %c0_i32_0 : i32, i32
  }
  func.func @transform_3(%arg0: i32) -> (i32, i32) {
    %c0_i32 = arith.constant 0 : i32
    %c0_i32_0 = arith.constant 0 : i32
    %c0_i32_1 = arith.constant 0 : i32
    return %c0_i32, %c0_i32_0 : i32, i32
  }
  func.func @transform_4(%arg0: i32) -> (i32, i32) {
    %c0_i32 = arith.constant 0 : i32
    %c0_i32_0 = arith.constant 0 : i32
    %c0_i32_1 = arith.constant 0 : i32
    return %c0_i32, %c0_i32_0 : i32, i32
  }
  func.func @transform_5(%arg0: i32) -> (i32, i32) {
    %c0_i32 = arith.constant 0 : i32
    %c0_i32_0 = arith.constant 0 : i32
    return %arg0, %c0_i32 : i32, i32
  }
}

module attributes {stable_mosaic.version = 11 : i64} {
  func.func @kernel(%arg0: i32, %arg1: i32, %arg2: memref<1x6x6x32xbf16, #tpu.memory_space<vmem>>, %arg3: memref<1x6x6x32xbf16, #tpu.memory_space<vmem>>, %arg4: memref<1x6x6x32xbf16, #tpu.memory_space<vmem>>, %arg5: memref<1x6x6x32xbf16, #tpu.memory_space<vmem>>, %arg6: memref<25x32x128xbf16, #tpu.memory_space<vmem>>, %arg7: memref<1x128xf32, #tpu.memory_space<vmem>>, %arg8: memref<128x128xf32, #tpu.memory_space<vmem>>, %arg9: memref<1x128xf32, #tpu.memory_space<vmem>>, %arg10: memref<1x1x4x128xf32, #tpu.memory_space<vmem>>) attributes {dimension_semantics = [#tpu.dimension_semantics<parallel>, #tpu.dimension_semantics<parallel>], iteration_bounds = array<i64: 2, 4>, scalar_prefetch = 0 : i64, scratch_operands = 0 : i64, tpu.core_type = #tpu.core_type<tc>, window_params = [{transform_indices = @transform_0, window_bounds = array<i64: 1, 6, 6, 32>}, {transform_indices = @transform_1, window_bounds = array<i64: 1, 6, 6, 32>}, {transform_indices = @transform_2, window_bounds = array<i64: 1, 6, 6, 32>}, {transform_indices = @transform_3, window_bounds = array<i64: 1, 6, 6, 32>}, {pipeline_mode = #tpu.pipeline_mode<synchronous>, transform_indices = @transform_4, window_bounds = array<i64: 25, 32, 128>}, {pipeline_mode = #tpu.pipeline_mode<synchronous>, transform_indices = @transform_5, window_bounds = array<i64: 1, 128>}, {pipeline_mode = #tpu.pipeline_mode<synchronous>, transform_indices = @transform_6, window_bounds = array<i64: 128, 128>}, {pipeline_mode = #tpu.pipeline_mode<synchronous>, transform_indices = @transform_7, window_bounds = array<i64: 1, 128>}, {transform_indices = @transform_8, window_bounds = array<i64: 1, 1, 4, 128>}]} {
    %cst = arith.constant 0.000000e+00 : f32
    %0 = vector.broadcast %cst : f32 to vector<4x128xf32>
    %c0_i32 = arith.constant 0 : i32
    %1 = arith.addi %arg1, %c0_i32 : i32
    %c0 = arith.constant 0 : index
    %2 = arith.index_cast %1 : i32 to index
    %c0_0 = arith.constant 0 : index
    %c0_1 = arith.constant 0 : index
    %3 = vector.load %arg2[%c0, %2, %c0_0, %c0_1] : memref<1x6x6x32xbf16, #tpu.memory_space<vmem>>, vector<1x1x4x32xbf16>
    %4 = vector.shape_cast %3 : vector<1x1x4x32xbf16> to vector<4x32xbf16>
    %c0_2 = arith.constant 0 : index
    %c0_3 = arith.constant 0 : index
    %c0_4 = arith.constant 0 : index
    %5 = vector.load %arg6[%c0_2, %c0_3, %c0_4] : memref<25x32x128xbf16, #tpu.memory_space<vmem>>, vector<1x32x128xbf16>
    %6 = vector.shape_cast %5 : vector<1x32x128xbf16> to vector<32x128xbf16>
    %cst_5 = arith.constant dense<0.000000e+00> : vector<4x128xf32>
    %7 = tpu.matmul %4, %6, %cst_5 {dimension_numbers = #tpu.dot_dimension_numbers<[1], [0], [0], [1], [0, 0, 1, 1], [], []>} : vector<4x32xbf16>, vector<32x128xbf16>, vector<4x128xf32> -> vector<4x128xf32>
    %8 = arith.addf %0, %7 : vector<4x128xf32>
    %c0_i32_6 = arith.constant 0 : i32
    %9 = arith.addi %arg1, %c0_i32_6 : i32
    %c0_7 = arith.constant 0 : index
    %10 = arith.index_cast %9 : i32 to index
    %c0_8 = arith.constant 0 : index
    %c0_9 = arith.constant 0 : index
    %11 = vector.load %arg3[%c0_7, %10, %c0_8, %c0_9] : memref<1x6x6x32xbf16, #tpu.memory_space<vmem>>, vector<1x1x4x32xbf16>
    %12 = vector.shape_cast %11 : vector<1x1x4x32xbf16> to vector<4x32xbf16>
    %c1 = arith.constant 1 : index
    %c0_10 = arith.constant 0 : index
    %c0_11 = arith.constant 0 : index
    %13 = vector.load %arg6[%c1, %c0_10, %c0_11] : memref<25x32x128xbf16, #tpu.memory_space<vmem>>, vector<1x32x128xbf16>
    %14 = vector.shape_cast %13 : vector<1x32x128xbf16> to vector<32x128xbf16>
    %cst_12 = arith.constant dense<0.000000e+00> : vector<4x128xf32>
    %15 = tpu.matmul %12, %14, %cst_12 {dimension_numbers = #tpu.dot_dimension_numbers<[1], [0], [0], [1], [0, 0, 1, 1], [], []>} : vector<4x32xbf16>, vector<32x128xbf16>, vector<4x128xf32> -> vector<4x128xf32>
    %16 = arith.addf %8, %15 : vector<4x128xf32>
    %c0_i32_13 = arith.constant 0 : i32
    %17 = arith.addi %arg1, %c0_i32_13 : i32
    %c0_14 = arith.constant 0 : index
    %18 = arith.index_cast %17 : i32 to index
    %c1_15 = arith.constant 1 : index
    %c0_16 = arith.constant 0 : index
    %19 = vector.load %arg2[%c0_14, %18, %c1_15, %c0_16] : memref<1x6x6x32xbf16, #tpu.memory_space<vmem>>, vector<1x1x4x32xbf16>
    %20 = vector.shape_cast %19 : vector<1x1x4x32xbf16> to vector<4x32xbf16>
    %c2 = arith.constant 2 : index
    %c0_17 = arith.constant 0 : index
    %c0_18 = arith.constant 0 : index
    %21 = vector.load %arg6[%c2, %c0_17, %c0_18] : memref<25x32x128xbf16, #tpu.memory_space<vmem>>, vector<1x32x128xbf16>
    %22 = vector.shape_cast %21 : vector<1x32x128xbf16> to vector<32x128xbf16>
    %cst_19 = arith.constant dense<0.000000e+00> : vector<4x128xf32>
    %23 = tpu.matmul %20, %22, %cst_19 {dimension_numbers = #tpu.dot_dimension_numbers<[1], [0], [0], [1], [0, 0, 1, 1], [], []>} : vector<4x32xbf16>, vector<32x128xbf16>, vector<4x128xf32> -> vector<4x128xf32>
    %24 = arith.addf %16, %23 : vector<4x128xf32>
    %c0_i32_20 = arith.constant 0 : i32
    %25 = arith.addi %arg1, %c0_i32_20 : i32
    %c0_21 = arith.constant 0 : index
    %26 = arith.index_cast %25 : i32 to index
    %c1_22 = arith.constant 1 : index
    %c0_23 = arith.constant 0 : index
    %27 = vector.load %arg3[%c0_21, %26, %c1_22, %c0_23] : memref<1x6x6x32xbf16, #tpu.memory_space<vmem>>, vector<1x1x4x32xbf16>
    %28 = vector.shape_cast %27 : vector<1x1x4x32xbf16> to vector<4x32xbf16>
    %c3 = arith.constant 3 : index
    %c0_24 = arith.constant 0 : index
    %c0_25 = arith.constant 0 : index
    %29 = vector.load %arg6[%c3, %c0_24, %c0_25] : memref<25x32x128xbf16, #tpu.memory_space<vmem>>, vector<1x32x128xbf16>
    %30 = vector.shape_cast %29 : vector<1x32x128xbf16> to vector<32x128xbf16>
    %cst_26 = arith.constant dense<0.000000e+00> : vector<4x128xf32>
    %31 = tpu.matmul %28, %30, %cst_26 {dimension_numbers = #tpu.dot_dimension_numbers<[1], [0], [0], [1], [0, 0, 1, 1], [], []>} : vector<4x32xbf16>, vector<32x128xbf16>, vector<4x128xf32> -> vector<4x128xf32>
    %32 = arith.addf %24, %31 : vector<4x128xf32>
    %c0_i32_27 = arith.constant 0 : i32
    %33 = arith.addi %arg1, %c0_i32_27 : i32
    %c0_28 = arith.constant 0 : index
    %34 = arith.index_cast %33 : i32 to index
    %c2_29 = arith.constant 2 : index
    %c0_30 = arith.constant 0 : index
    %35 = vector.load %arg2[%c0_28, %34, %c2_29, %c0_30] : memref<1x6x6x32xbf16, #tpu.memory_space<vmem>>, vector<1x1x4x32xbf16>
    %36 = vector.shape_cast %35 : vector<1x1x4x32xbf16> to vector<4x32xbf16>
    %c4 = arith.constant 4 : index
    %c0_31 = arith.constant 0 : index
    %c0_32 = arith.constant 0 : index
    %37 = vector.load %arg6[%c4, %c0_31, %c0_32] : memref<25x32x128xbf16, #tpu.memory_space<vmem>>, vector<1x32x128xbf16>
    %38 = vector.shape_cast %37 : vector<1x32x128xbf16> to vector<32x128xbf16>
    %cst_33 = arith.constant dense<0.000000e+00> : vector<4x128xf32>
    %39 = tpu.matmul %36, %38, %cst_33 {dimension_numbers = #tpu.dot_dimension_numbers<[1], [0], [0], [1], [0, 0, 1, 1], [], []>} : vector<4x32xbf16>, vector<32x128xbf16>, vector<4x128xf32> -> vector<4x128xf32>
    %40 = arith.addf %32, %39 : vector<4x128xf32>
    %c0_i32_34 = arith.constant 0 : i32
    %41 = arith.addi %arg1, %c0_i32_34 : i32
    %c0_35 = arith.constant 0 : index
    %42 = arith.index_cast %41 : i32 to index
    %c0_36 = arith.constant 0 : index
    %c0_37 = arith.constant 0 : index
    %43 = vector.load %arg4[%c0_35, %42, %c0_36, %c0_37] : memref<1x6x6x32xbf16, #tpu.memory_space<vmem>>, vector<1x1x4x32xbf16>
    %44 = vector.shape_cast %43 : vector<1x1x4x32xbf16> to vector<4x32xbf16>
    %c5 = arith.constant 5 : index
    %c0_38 = arith.constant 0 : index
    %c0_39 = arith.constant 0 : index
    %45 = vector.load %arg6[%c5, %c0_38, %c0_39] : memref<25x32x128xbf16, #tpu.memory_space<vmem>>, vector<1x32x128xbf16>
    %46 = vector.shape_cast %45 : vector<1x32x128xbf16> to vector<32x128xbf16>
    %cst_40 = arith.constant dense<0.000000e+00> : vector<4x128xf32>
    %47 = tpu.matmul %44, %46, %cst_40 {dimension_numbers = #tpu.dot_dimension_numbers<[1], [0], [0], [1], [0, 0, 1, 1], [], []>} : vector<4x32xbf16>, vector<32x128xbf16>, vector<4x128xf32> -> vector<4x128xf32>
    %48 = arith.addf %40, %47 : vector<4x128xf32>
    %c0_i32_41 = arith.constant 0 : i32
    %49 = arith.addi %arg1, %c0_i32_41 : i32
    %c0_42 = arith.constant 0 : index
    %50 = arith.index_cast %49 : i32 to index
    %c0_43 = arith.constant 0 : index
    %c0_44 = arith.constant 0 : index
    %51 = vector.load %arg5[%c0_42, %50, %c0_43, %c0_44] : memref<1x6x6x32xbf16, #tpu.memory_space<vmem>>, vector<1x1x4x32xbf16>
    %52 = vector.shape_cast %51 : vector<1x1x4x32xbf16> to vector<4x32xbf16>
    %c6 = arith.constant 6 : index
    %c0_45 = arith.constant 0 : index
    %c0_46 = arith.constant 0 : index
    %53 = vector.load %arg6[%c6, %c0_45, %c0_46] : memref<25x32x128xbf16, #tpu.memory_space<vmem>>, vector<1x32x128xbf16>
    %54 = vector.shape_cast %53 : vector<1x32x128xbf16> to vector<32x128xbf16>
    %cst_47 = arith.constant dense<0.000000e+00> : vector<4x128xf32>
    %55 = tpu.matmul %52, %54, %cst_47 {dimension_numbers = #tpu.dot_dimension_numbers<[1], [0], [0], [1], [0, 0, 1, 1], [], []>} : vector<4x32xbf16>, vector<32x128xbf16>, vector<4x128xf32> -> vector<4x128xf32>
    %56 = arith.addf %48, %55 : vector<4x128xf32>
    %c0_i32_48 = arith.constant 0 : i32
    %57 = arith.addi %arg1, %c0_i32_48 : i32
    %c0_49 = arith.constant 0 : index
    %58 = arith.index_cast %57 : i32 to index
    %c1_50 = arith.constant 1 : index
    %c0_51 = arith.constant 0 : index
    %59 = vector.load %arg4[%c0_49, %58, %c1_50, %c0_51] : memref<1x6x6x32xbf16, #tpu.memory_space<vmem>>, vector<1x1x4x32xbf16>
    %60 = vector.shape_cast %59 : vector<1x1x4x32xbf16> to vector<4x32xbf16>
    %c7 = arith.constant 7 : index
    %c0_52 = arith.constant 0 : index
    %c0_53 = arith.constant 0 : index
    %61 = vector.load %arg6[%c7, %c0_52, %c0_53] : memref<25x32x128xbf16, #tpu.memory_space<vmem>>, vector<1x32x128xbf16>
    %62 = vector.shape_cast %61 : vector<1x32x128xbf16> to vector<32x128xbf16>
    %cst_54 = arith.constant dense<0.000000e+00> : vector<4x128xf32>
    %63 = tpu.matmul %60, %62, %cst_54 {dimension_numbers = #tpu.dot_dimension_numbers<[1], [0], [0], [1], [0, 0, 1, 1], [], []>} : vector<4x32xbf16>, vector<32x128xbf16>, vector<4x128xf32> -> vector<4x128xf32>
    %64 = arith.addf %56, %63 : vector<4x128xf32>
    %c0_i32_55 = arith.constant 0 : i32
    %65 = arith.addi %arg1, %c0_i32_55 : i32
    %c0_56 = arith.constant 0 : index
    %66 = arith.index_cast %65 : i32 to index
    %c1_57 = arith.constant 1 : index
    %c0_58 = arith.constant 0 : index
    %67 = vector.load %arg5[%c0_56, %66, %c1_57, %c0_58] : memref<1x6x6x32xbf16, #tpu.memory_space<vmem>>, vector<1x1x4x32xbf16>
    %68 = vector.shape_cast %67 : vector<1x1x4x32xbf16> to vector<4x32xbf16>
    %c8 = arith.constant 8 : index
    %c0_59 = arith.constant 0 : index
    %c0_60 = arith.constant 0 : index
    %69 = vector.load %arg6[%c8, %c0_59, %c0_60] : memref<25x32x128xbf16, #tpu.memory_space<vmem>>, vector<1x32x128xbf16>
    %70 = vector.shape_cast %69 : vector<1x32x128xbf16> to vector<32x128xbf16>
    %cst_61 = arith.constant dense<0.000000e+00> : vector<4x128xf32>
    %71 = tpu.matmul %68, %70, %cst_61 {dimension_numbers = #tpu.dot_dimension_numbers<[1], [0], [0], [1], [0, 0, 1, 1], [], []>} : vector<4x32xbf16>, vector<32x128xbf16>, vector<4x128xf32> -> vector<4x128xf32>
    %72 = arith.addf %64, %71 : vector<4x128xf32>
    %c0_i32_62 = arith.constant 0 : i32
    %73 = arith.addi %arg1, %c0_i32_62 : i32
    %c0_63 = arith.constant 0 : index
    %74 = arith.index_cast %73 : i32 to index
    %c2_64 = arith.constant 2 : index
    %c0_65 = arith.constant 0 : index
    %75 = vector.load %arg4[%c0_63, %74, %c2_64, %c0_65] : memref<1x6x6x32xbf16, #tpu.memory_space<vmem>>, vector<1x1x4x32xbf16>
    %76 = vector.shape_cast %75 : vector<1x1x4x32xbf16> to vector<4x32xbf16>
    %c9 = arith.constant 9 : index
    %c0_66 = arith.constant 0 : index
    %c0_67 = arith.constant 0 : index
    %77 = vector.load %arg6[%c9, %c0_66, %c0_67] : memref<25x32x128xbf16, #tpu.memory_space<vmem>>, vector<1x32x128xbf16>
    %78 = vector.shape_cast %77 : vector<1x32x128xbf16> to vector<32x128xbf16>
    %cst_68 = arith.constant dense<0.000000e+00> : vector<4x128xf32>
    %79 = tpu.matmul %76, %78, %cst_68 {dimension_numbers = #tpu.dot_dimension_numbers<[1], [0], [0], [1], [0, 0, 1, 1], [], []>} : vector<4x32xbf16>, vector<32x128xbf16>, vector<4x128xf32> -> vector<4x128xf32>
    %80 = arith.addf %72, %79 : vector<4x128xf32>
    %c1_i32 = arith.constant 1 : i32
    %81 = arith.addi %arg1, %c1_i32 : i32
    %c0_69 = arith.constant 0 : index
    %82 = arith.index_cast %81 : i32 to index
    %c0_70 = arith.constant 0 : index
    %c0_71 = arith.constant 0 : index
    %83 = vector.load %arg2[%c0_69, %82, %c0_70, %c0_71] : memref<1x6x6x32xbf16, #tpu.memory_space<vmem>>, vector<1x1x4x32xbf16>
    %84 = vector.shape_cast %83 : vector<1x1x4x32xbf16> to vector<4x32xbf16>
    %c10 = arith.constant 10 : index
    %c0_72 = arith.constant 0 : index
    %c0_73 = arith.constant 0 : index
    %85 = vector.load %arg6[%c10, %c0_72, %c0_73] : memref<25x32x128xbf16, #tpu.memory_space<vmem>>, vector<1x32x128xbf16>
    %86 = vector.shape_cast %85 : vector<1x32x128xbf16> to vector<32x128xbf16>
    %cst_74 = arith.constant dense<0.000000e+00> : vector<4x128xf32>
    %87 = tpu.matmul %84, %86, %cst_74 {dimension_numbers = #tpu.dot_dimension_numbers<[1], [0], [0], [1], [0, 0, 1, 1], [], []>} : vector<4x32xbf16>, vector<32x128xbf16>, vector<4x128xf32> -> vector<4x128xf32>
    %88 = arith.addf %80, %87 : vector<4x128xf32>
    %c1_i32_75 = arith.constant 1 : i32
    %89 = arith.addi %arg1, %c1_i32_75 : i32
    %c0_76 = arith.constant 0 : index
    %90 = arith.index_cast %89 : i32 to index
    %c0_77 = arith.constant 0 : index
    %c0_78 = arith.constant 0 : index
    %91 = vector.load %arg3[%c0_76, %90, %c0_77, %c0_78] : memref<1x6x6x32xbf16, #tpu.memory_space<vmem>>, vector<1x1x4x32xbf16>
    %92 = vector.shape_cast %91 : vector<1x1x4x32xbf16> to vector<4x32xbf16>
    %c11 = arith.constant 11 : index
    %c0_79 = arith.constant 0 : index
    %c0_80 = arith.constant 0 : index
    %93 = vector.load %arg6[%c11, %c0_79, %c0_80] : memref<25x32x128xbf16, #tpu.memory_space<vmem>>, vector<1x32x128xbf16>
    %94 = vector.shape_cast %93 : vector<1x32x128xbf16> to vector<32x128xbf16>
    %cst_81 = arith.constant dense<0.000000e+00> : vector<4x128xf32>
    %95 = tpu.matmul %92, %94, %cst_81 {dimension_numbers = #tpu.dot_dimension_numbers<[1], [0], [0], [1], [0, 0, 1, 1], [], []>} : vector<4x32xbf16>, vector<32x128xbf16>, vector<4x128xf32> -> vector<4x128xf32>
    %96 = arith.addf %88, %95 : vector<4x128xf32>
    %c1_i32_82 = arith.constant 1 : i32
    %97 = arith.addi %arg1, %c1_i32_82 : i32
    %c0_83 = arith.constant 0 : index
    %98 = arith.index_cast %97 : i32 to index
    %c1_84 = arith.constant 1 : index
    %c0_85 = arith.constant 0 : index
    %99 = vector.load %arg2[%c0_83, %98, %c1_84, %c0_85] : memref<1x6x6x32xbf16, #tpu.memory_space<vmem>>, vector<1x1x4x32xbf16>
    %100 = vector.shape_cast %99 : vector<1x1x4x32xbf16> to vector<4x32xbf16>
    %c12 = arith.constant 12 : index
    %c0_86 = arith.constant 0 : index
    %c0_87 = arith.constant 0 : index
    %101 = vector.load %arg6[%c12, %c0_86, %c0_87] : memref<25x32x128xbf16, #tpu.memory_space<vmem>>, vector<1x32x128xbf16>
    %102 = vector.shape_cast %101 : vector<1x32x128xbf16> to vector<32x128xbf16>
    %cst_88 = arith.constant dense<0.000000e+00> : vector<4x128xf32>
    %103 = tpu.matmul %100, %102, %cst_88 {dimension_numbers = #tpu.dot_dimension_numbers<[1], [0], [0], [1], [0, 0, 1, 1], [], []>} : vector<4x32xbf16>, vector<32x128xbf16>, vector<4x128xf32> -> vector<4x128xf32>
    %104 = arith.addf %96, %103 : vector<4x128xf32>
    %c1_i32_89 = arith.constant 1 : i32
    %105 = arith.addi %arg1, %c1_i32_89 : i32
    %c0_90 = arith.constant 0 : index
    %106 = arith.index_cast %105 : i32 to index
    %c1_91 = arith.constant 1 : index
    %c0_92 = arith.constant 0 : index
    %107 = vector.load %arg3[%c0_90, %106, %c1_91, %c0_92] : memref<1x6x6x32xbf16, #tpu.memory_space<vmem>>, vector<1x1x4x32xbf16>
    %108 = vector.shape_cast %107 : vector<1x1x4x32xbf16> to vector<4x32xbf16>
    %c13 = arith.constant 13 : index
    %c0_93 = arith.constant 0 : index
    %c0_94 = arith.constant 0 : index
    %109 = vector.load %arg6[%c13, %c0_93, %c0_94] : memref<25x32x128xbf16, #tpu.memory_space<vmem>>, vector<1x32x128xbf16>
    %110 = vector.shape_cast %109 : vector<1x32x128xbf16> to vector<32x128xbf16>
    %cst_95 = arith.constant dense<0.000000e+00> : vector<4x128xf32>
    %111 = tpu.matmul %108, %110, %cst_95 {dimension_numbers = #tpu.dot_dimension_numbers<[1], [0], [0], [1], [0, 0, 1, 1], [], []>} : vector<4x32xbf16>, vector<32x128xbf16>, vector<4x128xf32> -> vector<4x128xf32>
    %112 = arith.addf %104, %111 : vector<4x128xf32>
    %c1_i32_96 = arith.constant 1 : i32
    %113 = arith.addi %arg1, %c1_i32_96 : i32
    %c0_97 = arith.constant 0 : index
    %114 = arith.index_cast %113 : i32 to index
    %c2_98 = arith.constant 2 : index
    %c0_99 = arith.constant 0 : index
    %115 = vector.load %arg2[%c0_97, %114, %c2_98, %c0_99] : memref<1x6x6x32xbf16, #tpu.memory_space<vmem>>, vector<1x1x4x32xbf16>
    %116 = vector.shape_cast %115 : vector<1x1x4x32xbf16> to vector<4x32xbf16>
    %c14 = arith.constant 14 : index
    %c0_100 = arith.constant 0 : index
    %c0_101 = arith.constant 0 : index
    %117 = vector.load %arg6[%c14, %c0_100, %c0_101] : memref<25x32x128xbf16, #tpu.memory_space<vmem>>, vector<1x32x128xbf16>
    %118 = vector.shape_cast %117 : vector<1x32x128xbf16> to vector<32x128xbf16>
    %cst_102 = arith.constant dense<0.000000e+00> : vector<4x128xf32>
    %119 = tpu.matmul %116, %118, %cst_102 {dimension_numbers = #tpu.dot_dimension_numbers<[1], [0], [0], [1], [0, 0, 1, 1], [], []>} : vector<4x32xbf16>, vector<32x128xbf16>, vector<4x128xf32> -> vector<4x128xf32>
    %120 = arith.addf %112, %119 : vector<4x128xf32>
    %c1_i32_103 = arith.constant 1 : i32
    %121 = arith.addi %arg1, %c1_i32_103 : i32
    %c0_104 = arith.constant 0 : index
    %122 = arith.index_cast %121 : i32 to index
    %c0_105 = arith.constant 0 : index
    %c0_106 = arith.constant 0 : index
    %123 = vector.load %arg4[%c0_104, %122, %c0_105, %c0_106] : memref<1x6x6x32xbf16, #tpu.memory_space<vmem>>, vector<1x1x4x32xbf16>
    %124 = vector.shape_cast %123 : vector<1x1x4x32xbf16> to vector<4x32xbf16>
    %c15 = arith.constant 15 : index
    %c0_107 = arith.constant 0 : index
    %c0_108 = arith.constant 0 : index
    %125 = vector.load %arg6[%c15, %c0_107, %c0_108] : memref<25x32x128xbf16, #tpu.memory_space<vmem>>, vector<1x32x128xbf16>
    %126 = vector.shape_cast %125 : vector<1x32x128xbf16> to vector<32x128xbf16>
    %cst_109 = arith.constant dense<0.000000e+00> : vector<4x128xf32>
    %127 = tpu.matmul %124, %126, %cst_109 {dimension_numbers = #tpu.dot_dimension_numbers<[1], [0], [0], [1], [0, 0, 1, 1], [], []>} : vector<4x32xbf16>, vector<32x128xbf16>, vector<4x128xf32> -> vector<4x128xf32>
    %128 = arith.addf %120, %127 : vector<4x128xf32>
    %c1_i32_110 = arith.constant 1 : i32
    %129 = arith.addi %arg1, %c1_i32_110 : i32
    %c0_111 = arith.constant 0 : index
    %130 = arith.index_cast %129 : i32 to index
    %c0_112 = arith.constant 0 : index
    %c0_113 = arith.constant 0 : index
    %131 = vector.load %arg5[%c0_111, %130, %c0_112, %c0_113] : memref<1x6x6x32xbf16, #tpu.memory_space<vmem>>, vector<1x1x4x32xbf16>
    %132 = vector.shape_cast %131 : vector<1x1x4x32xbf16> to vector<4x32xbf16>
    %c16 = arith.constant 16 : index
    %c0_114 = arith.constant 0 : index
    %c0_115 = arith.constant 0 : index
    %133 = vector.load %arg6[%c16, %c0_114, %c0_115] : memref<25x32x128xbf16, #tpu.memory_space<vmem>>, vector<1x32x128xbf16>
    %134 = vector.shape_cast %133 : vector<1x32x128xbf16> to vector<32x128xbf16>
    %cst_116 = arith.constant dense<0.000000e+00> : vector<4x128xf32>
    %135 = tpu.matmul %132, %134, %cst_116 {dimension_numbers = #tpu.dot_dimension_numbers<[1], [0], [0], [1], [0, 0, 1, 1], [], []>} : vector<4x32xbf16>, vector<32x128xbf16>, vector<4x128xf32> -> vector<4x128xf32>
    %136 = arith.addf %128, %135 : vector<4x128xf32>
    %c1_i32_117 = arith.constant 1 : i32
    %137 = arith.addi %arg1, %c1_i32_117 : i32
    %c0_118 = arith.constant 0 : index
    %138 = arith.index_cast %137 : i32 to index
    %c1_119 = arith.constant 1 : index
    %c0_120 = arith.constant 0 : index
    %139 = vector.load %arg4[%c0_118, %138, %c1_119, %c0_120] : memref<1x6x6x32xbf16, #tpu.memory_space<vmem>>, vector<1x1x4x32xbf16>
    %140 = vector.shape_cast %139 : vector<1x1x4x32xbf16> to vector<4x32xbf16>
    %c17 = arith.constant 17 : index
    %c0_121 = arith.constant 0 : index
    %c0_122 = arith.constant 0 : index
    %141 = vector.load %arg6[%c17, %c0_121, %c0_122] : memref<25x32x128xbf16, #tpu.memory_space<vmem>>, vector<1x32x128xbf16>
    %142 = vector.shape_cast %141 : vector<1x32x128xbf16> to vector<32x128xbf16>
    %cst_123 = arith.constant dense<0.000000e+00> : vector<4x128xf32>
    %143 = tpu.matmul %140, %142, %cst_123 {dimension_numbers = #tpu.dot_dimension_numbers<[1], [0], [0], [1], [0, 0, 1, 1], [], []>} : vector<4x32xbf16>, vector<32x128xbf16>, vector<4x128xf32> -> vector<4x128xf32>
    %144 = arith.addf %136, %143 : vector<4x128xf32>
    %c1_i32_124 = arith.constant 1 : i32
    %145 = arith.addi %arg1, %c1_i32_124 : i32
    %c0_125 = arith.constant 0 : index
    %146 = arith.index_cast %145 : i32 to index
    %c1_126 = arith.constant 1 : index
    %c0_127 = arith.constant 0 : index
    %147 = vector.load %arg5[%c0_125, %146, %c1_126, %c0_127] : memref<1x6x6x32xbf16, #tpu.memory_space<vmem>>, vector<1x1x4x32xbf16>
    %148 = vector.shape_cast %147 : vector<1x1x4x32xbf16> to vector<4x32xbf16>
    %c18 = arith.constant 18 : index
    %c0_128 = arith.constant 0 : index
    %c0_129 = arith.constant 0 : index
    %149 = vector.load %arg6[%c18, %c0_128, %c0_129] : memref<25x32x128xbf16, #tpu.memory_space<vmem>>, vector<1x32x128xbf16>
    %150 = vector.shape_cast %149 : vector<1x32x128xbf16> to vector<32x128xbf16>
    %cst_130 = arith.constant dense<0.000000e+00> : vector<4x128xf32>
    %151 = tpu.matmul %148, %150, %cst_130 {dimension_numbers = #tpu.dot_dimension_numbers<[1], [0], [0], [1], [0, 0, 1, 1], [], []>} : vector<4x32xbf16>, vector<32x128xbf16>, vector<4x128xf32> -> vector<4x128xf32>
    %152 = arith.addf %144, %151 : vector<4x128xf32>
    %c1_i32_131 = arith.constant 1 : i32
    %153 = arith.addi %arg1, %c1_i32_131 : i32
    %c0_132 = arith.constant 0 : index
    %154 = arith.index_cast %153 : i32 to index
    %c2_133 = arith.constant 2 : index
    %c0_134 = arith.constant 0 : index
    %155 = vector.load %arg4[%c0_132, %154, %c2_133, %c0_134] : memref<1x6x6x32xbf16, #tpu.memory_space<vmem>>, vector<1x1x4x32xbf16>
    %156 = vector.shape_cast %155 : vector<1x1x4x32xbf16> to vector<4x32xbf16>
    %c19 = arith.constant 19 : index
    %c0_135 = arith.constant 0 : index
    %c0_136 = arith.constant 0 : index
    %157 = vector.load %arg6[%c19, %c0_135, %c0_136] : memref<25x32x128xbf16, #tpu.memory_space<vmem>>, vector<1x32x128xbf16>
    %158 = vector.shape_cast %157 : vector<1x32x128xbf16> to vector<32x128xbf16>
    %cst_137 = arith.constant dense<0.000000e+00> : vector<4x128xf32>
    %159 = tpu.matmul %156, %158, %cst_137 {dimension_numbers = #tpu.dot_dimension_numbers<[1], [0], [0], [1], [0, 0, 1, 1], [], []>} : vector<4x32xbf16>, vector<32x128xbf16>, vector<4x128xf32> -> vector<4x128xf32>
    %160 = arith.addf %152, %159 : vector<4x128xf32>
    %c2_i32 = arith.constant 2 : i32
    %161 = arith.addi %arg1, %c2_i32 : i32
    %c0_138 = arith.constant 0 : index
    %162 = arith.index_cast %161 : i32 to index
    %c0_139 = arith.constant 0 : index
    %c0_140 = arith.constant 0 : index
    %163 = vector.load %arg2[%c0_138, %162, %c0_139, %c0_140] : memref<1x6x6x32xbf16, #tpu.memory_space<vmem>>, vector<1x1x4x32xbf16>
    %164 = vector.shape_cast %163 : vector<1x1x4x32xbf16> to vector<4x32xbf16>
    %c20 = arith.constant 20 : index
    %c0_141 = arith.constant 0 : index
    %c0_142 = arith.constant 0 : index
    %165 = vector.load %arg6[%c20, %c0_141, %c0_142] : memref<25x32x128xbf16, #tpu.memory_space<vmem>>, vector<1x32x128xbf16>
    %166 = vector.shape_cast %165 : vector<1x32x128xbf16> to vector<32x128xbf16>
    %cst_143 = arith.constant dense<0.000000e+00> : vector<4x128xf32>
    %167 = tpu.matmul %164, %166, %cst_143 {dimension_numbers = #tpu.dot_dimension_numbers<[1], [0], [0], [1], [0, 0, 1, 1], [], []>} : vector<4x32xbf16>, vector<32x128xbf16>, vector<4x128xf32> -> vector<4x128xf32>
    %168 = arith.addf %160, %167 : vector<4x128xf32>
    %c2_i32_144 = arith.constant 2 : i32
    %169 = arith.addi %arg1, %c2_i32_144 : i32
    %c0_145 = arith.constant 0 : index
    %170 = arith.index_cast %169 : i32 to index
    %c0_146 = arith.constant 0 : index
    %c0_147 = arith.constant 0 : index
    %171 = vector.load %arg3[%c0_145, %170, %c0_146, %c0_147] : memref<1x6x6x32xbf16, #tpu.memory_space<vmem>>, vector<1x1x4x32xbf16>
    %172 = vector.shape_cast %171 : vector<1x1x4x32xbf16> to vector<4x32xbf16>
    %c21 = arith.constant 21 : index
    %c0_148 = arith.constant 0 : index
    %c0_149 = arith.constant 0 : index
    %173 = vector.load %arg6[%c21, %c0_148, %c0_149] : memref<25x32x128xbf16, #tpu.memory_space<vmem>>, vector<1x32x128xbf16>
    %174 = vector.shape_cast %173 : vector<1x32x128xbf16> to vector<32x128xbf16>
    %cst_150 = arith.constant dense<0.000000e+00> : vector<4x128xf32>
    %175 = tpu.matmul %172, %174, %cst_150 {dimension_numbers = #tpu.dot_dimension_numbers<[1], [0], [0], [1], [0, 0, 1, 1], [], []>} : vector<4x32xbf16>, vector<32x128xbf16>, vector<4x128xf32> -> vector<4x128xf32>
    %176 = arith.addf %168, %175 : vector<4x128xf32>
    %c2_i32_151 = arith.constant 2 : i32
    %177 = arith.addi %arg1, %c2_i32_151 : i32
    %c0_152 = arith.constant 0 : index
    %178 = arith.index_cast %177 : i32 to index
    %c1_153 = arith.constant 1 : index
    %c0_154 = arith.constant 0 : index
    %179 = vector.load %arg2[%c0_152, %178, %c1_153, %c0_154] : memref<1x6x6x32xbf16, #tpu.memory_space<vmem>>, vector<1x1x4x32xbf16>
    %180 = vector.shape_cast %179 : vector<1x1x4x32xbf16> to vector<4x32xbf16>
    %c22 = arith.constant 22 : index
    %c0_155 = arith.constant 0 : index
    %c0_156 = arith.constant 0 : index
    %181 = vector.load %arg6[%c22, %c0_155, %c0_156] : memref<25x32x128xbf16, #tpu.memory_space<vmem>>, vector<1x32x128xbf16>
    %182 = vector.shape_cast %181 : vector<1x32x128xbf16> to vector<32x128xbf16>
    %cst_157 = arith.constant dense<0.000000e+00> : vector<4x128xf32>
    %183 = tpu.matmul %180, %182, %cst_157 {dimension_numbers = #tpu.dot_dimension_numbers<[1], [0], [0], [1], [0, 0, 1, 1], [], []>} : vector<4x32xbf16>, vector<32x128xbf16>, vector<4x128xf32> -> vector<4x128xf32>
    %184 = arith.addf %176, %183 : vector<4x128xf32>
    %c2_i32_158 = arith.constant 2 : i32
    %185 = arith.addi %arg1, %c2_i32_158 : i32
    %c0_159 = arith.constant 0 : index
    %186 = arith.index_cast %185 : i32 to index
    %c1_160 = arith.constant 1 : index
    %c0_161 = arith.constant 0 : index
    %187 = vector.load %arg3[%c0_159, %186, %c1_160, %c0_161] : memref<1x6x6x32xbf16, #tpu.memory_space<vmem>>, vector<1x1x4x32xbf16>
    %188 = vector.shape_cast %187 : vector<1x1x4x32xbf16> to vector<4x32xbf16>
    %c23 = arith.constant 23 : index
    %c0_162 = arith.constant 0 : index
    %c0_163 = arith.constant 0 : index
    %189 = vector.load %arg6[%c23, %c0_162, %c0_163] : memref<25x32x128xbf16, #tpu.memory_space<vmem>>, vector<1x32x128xbf16>
    %190 = vector.shape_cast %189 : vector<1x32x128xbf16> to vector<32x128xbf16>
    %cst_164 = arith.constant dense<0.000000e+00> : vector<4x128xf32>
    %191 = tpu.matmul %188, %190, %cst_164 {dimension_numbers = #tpu.dot_dimension_numbers<[1], [0], [0], [1], [0, 0, 1, 1], [], []>} : vector<4x32xbf16>, vector<32x128xbf16>, vector<4x128xf32> -> vector<4x128xf32>
    %192 = arith.addf %184, %191 : vector<4x128xf32>
    %c2_i32_165 = arith.constant 2 : i32
    %193 = arith.addi %arg1, %c2_i32_165 : i32
    %c0_166 = arith.constant 0 : index
    %194 = arith.index_cast %193 : i32 to index
    %c2_167 = arith.constant 2 : index
    %c0_168 = arith.constant 0 : index
    %195 = vector.load %arg2[%c0_166, %194, %c2_167, %c0_168] : memref<1x6x6x32xbf16, #tpu.memory_space<vmem>>, vector<1x1x4x32xbf16>
    %196 = vector.shape_cast %195 : vector<1x1x4x32xbf16> to vector<4x32xbf16>
    %c24 = arith.constant 24 : index
    %c0_169 = arith.constant 0 : index
    %c0_170 = arith.constant 0 : index
    %197 = vector.load %arg6[%c24, %c0_169, %c0_170] : memref<25x32x128xbf16, #tpu.memory_space<vmem>>, vector<1x32x128xbf16>
    %198 = vector.shape_cast %197 : vector<1x32x128xbf16> to vector<32x128xbf16>
    %cst_171 = arith.constant dense<0.000000e+00> : vector<4x128xf32>
    %199 = tpu.matmul %196, %198, %cst_171 {dimension_numbers = #tpu.dot_dimension_numbers<[1], [0], [0], [1], [0, 0, 1, 1], [], []>} : vector<4x32xbf16>, vector<32x128xbf16>, vector<4x128xf32> -> vector<4x128xf32>
    %200 = arith.addf %192, %199 : vector<4x128xf32>
    %c0_172 = arith.constant 0 : index
    %c0_173 = arith.constant 0 : index
    %201 = vector.load %arg7[%c0_172, %c0_173] : memref<1x128xf32, #tpu.memory_space<vmem>>, vector<1x128xf32>
    %202 = vector.broadcast %201 : vector<1x128xf32> to vector<4x128xf32>
    %203 = arith.addf %200, %202 : vector<4x128xf32>
    %204 = arith.mulf %203, %203 : vector<4x128xf32>
    %c0_174 = arith.constant 0 : index
    %c0_175 = arith.constant 0 : index
    %205 = vector.load %arg8[%c0_174, %c0_175] : memref<128x128xf32, #tpu.memory_space<vmem>>, vector<128x128xf32>
    %cst_176 = arith.constant dense<0.000000e+00> : vector<4x128xf32>
    %206 = tpu.matmul %204, %205, %cst_176 {dimension_numbers = #tpu.dot_dimension_numbers<[1], [0], [0], [1], [0, 0, 1, 1], [], []>} : vector<4x128xf32>, vector<128x128xf32>, vector<4x128xf32> -> vector<4x128xf32>
    %c0_177 = arith.constant 0 : index
    %c0_178 = arith.constant 0 : index
    %207 = vector.load %arg9[%c0_177, %c0_178] : memref<1x128xf32, #tpu.memory_space<vmem>>, vector<1x128xf32>
    %208 = vector.broadcast %207 : vector<1x128xf32> to vector<4x128xf32>
    %209 = arith.addf %206, %208 : vector<4x128xf32>
    %210 = math.rsqrt %209 : vector<4x128xf32>
    %211 = arith.mulf %203, %210 : vector<4x128xf32>
    %c0_179 = arith.constant 0 : index
    %c0_180 = arith.constant 0 : index
    %c0_181 = arith.constant 0 : index
    %c0_182 = arith.constant 0 : index
    %212 = vector.load %arg10[%c0_179, %c0_180, %c0_181, %c0_182] : memref<1x1x4x128xf32, #tpu.memory_space<vmem>>, vector<1x1x4x128xf32>
    %213 = vector.shape_cast %212 : vector<1x1x4x128xf32> to vector<4x128xf32>
    %214 = vector.shape_cast %211 : vector<4x128xf32> to vector<1x1x4x128xf32>
    tpu.vector_store %arg10[%c0_179, %c0_180, %c0_181, %c0_182], %214 {strides = array<i32>} : memref<1x1x4x128xf32, #tpu.memory_space<vmem>>, vector<1x1x4x128xf32>,
    return
  }
  func.func @transform_0(%arg0: i32, %arg1: i32) -> (i32, i32, i32, i32) {
    %c0_i32 = arith.constant 0 : i32
    %c0_i32_0 = arith.constant 0 : i32
    %c0_i32_1 = arith.constant 0 : i32
    %c0_i32_2 = arith.constant 0 : i32
    return %arg0, %c0_i32, %c0_i32_0, %c0_i32_1 : i32, i32, i32, i32
  }
  func.func @transform_1(%arg0: i32, %arg1: i32) -> (i32, i32, i32, i32) {
    %c0_i32 = arith.constant 0 : i32
    %c0_i32_0 = arith.constant 0 : i32
    %c0_i32_1 = arith.constant 0 : i32
    %c0_i32_2 = arith.constant 0 : i32
    return %arg0, %c0_i32, %c0_i32_0, %c0_i32_1 : i32, i32, i32, i32
  }
  func.func @transform_2(%arg0: i32, %arg1: i32) -> (i32, i32, i32, i32) {
    %c0_i32 = arith.constant 0 : i32
    %c0_i32_0 = arith.constant 0 : i32
    %c0_i32_1 = arith.constant 0 : i32
    %c0_i32_2 = arith.constant 0 : i32
    return %arg0, %c0_i32, %c0_i32_0, %c0_i32_1 : i32, i32, i32, i32
  }
  func.func @transform_3(%arg0: i32, %arg1: i32) -> (i32, i32, i32, i32) {
    %c0_i32 = arith.constant 0 : i32
    %c0_i32_0 = arith.constant 0 : i32
    %c0_i32_1 = arith.constant 0 : i32
    %c0_i32_2 = arith.constant 0 : i32
    return %arg0, %c0_i32, %c0_i32_0, %c0_i32_1 : i32, i32, i32, i32
  }
  func.func @transform_4(%arg0: i32, %arg1: i32) -> (i32, i32, i32) {
    %c0_i32 = arith.constant 0 : i32
    %c0_i32_0 = arith.constant 0 : i32
    %c0_i32_1 = arith.constant 0 : i32
    %c0_i32_2 = arith.constant 0 : i32
    return %c0_i32, %c0_i32_0, %c0_i32_1 : i32, i32, i32
  }
  func.func @transform_5(%arg0: i32, %arg1: i32) -> (i32, i32) {
    %c0_i32 = arith.constant 0 : i32
    %c0_i32_0 = arith.constant 0 : i32
    %c0_i32_1 = arith.constant 0 : i32
    return %c0_i32, %c0_i32_0 : i32, i32
  }
  func.func @transform_6(%arg0: i32, %arg1: i32) -> (i32, i32) {
    %c0_i32 = arith.constant 0 : i32
    %c0_i32_0 = arith.constant 0 : i32
    %c0_i32_1 = arith.constant 0 : i32
    return %c0_i32, %c0_i32_0 : i32, i32
  }
  func.func @transform_7(%arg0: i32, %arg1: i32) -> (i32, i32) {
    %c0_i32 = arith.constant 0 : i32
    %c0_i32_0 = arith.constant 0 : i32
    %c0_i32_1 = arith.constant 0 : i32
    return %c0_i32, %c0_i32_0 : i32, i32
  }
  func.func @transform_8(%arg0: i32, %arg1: i32) -> (i32, i32, i32, i32) {
    %c0_i32 = arith.constant 0 : i32
    %c0_i32_0 = arith.constant 0 : i32
    %c0_i32_1 = arith.constant 0 : i32
    return %arg0, %arg1, %c0_i32, %c0_i32_0 : i32, i32, i32, i32
  }
}

module attributes {stable_mosaic.version = 11 : i64} {
  func.func @kernel(%arg0: i32, %arg1: i32, %arg2: memref<1x4x4x32xbf16, #tpu.memory_space<vmem>>, %arg3: memref<1x4x4x32xbf16, #tpu.memory_space<vmem>>, %arg4: memref<1x4x4x32xbf16, #tpu.memory_space<vmem>>, %arg5: memref<1x4x4x32xbf16, #tpu.memory_space<vmem>>, %arg6: memref<25x32x128xbf16, #tpu.memory_space<vmem>>, %arg7: memref<1x1x2x128xf32, #tpu.memory_space<vmem>>) attributes {dimension_semantics = [#tpu.dimension_semantics<parallel>, #tpu.dimension_semantics<parallel>], iteration_bounds = array<i64: 2, 2>, scalar_prefetch = 0 : i64, scratch_operands = 0 : i64, tpu.core_type = #tpu.core_type<tc>, window_params = [{transform_indices = @transform_0, window_bounds = array<i64: 1, 4, 4, 32>}, {transform_indices = @transform_1, window_bounds = array<i64: 1, 4, 4, 32>}, {transform_indices = @transform_2, window_bounds = array<i64: 1, 4, 4, 32>}, {transform_indices = @transform_3, window_bounds = array<i64: 1, 4, 4, 32>}, {pipeline_mode = #tpu.pipeline_mode<synchronous>, transform_indices = @transform_4, window_bounds = array<i64: 25, 32, 128>}, {transform_indices = @transform_5, window_bounds = array<i64: 1, 1, 2, 128>}]} {
    %cst = arith.constant 0.000000e+00 : f32
    %0 = vector.broadcast %cst : f32 to vector<2x128xf32>
    %c0_i32 = arith.constant 0 : i32
    %1 = arith.addi %arg1, %c0_i32 : i32
    %c0 = arith.constant 0 : index
    %2 = arith.index_cast %1 : i32 to index
    %c0_0 = arith.constant 0 : index
    %c0_1 = arith.constant 0 : index
    %3 = vector.load %arg2[%c0, %2, %c0_0, %c0_1] : memref<1x4x4x32xbf16, #tpu.memory_space<vmem>>, vector<1x1x2x32xbf16>
    %4 = vector.shape_cast %3 : vector<1x1x2x32xbf16> to vector<2x32xbf16>
    %c0_2 = arith.constant 0 : index
    %c0_3 = arith.constant 0 : index
    %c0_4 = arith.constant 0 : index
    %5 = vector.load %arg6[%c0_2, %c0_3, %c0_4] : memref<25x32x128xbf16, #tpu.memory_space<vmem>>, vector<1x32x128xbf16>
    %6 = vector.shape_cast %5 : vector<1x32x128xbf16> to vector<32x128xbf16>
    %cst_5 = arith.constant dense<0.000000e+00> : vector<2x128xf32>
    %7 = tpu.matmul %4, %6, %cst_5 {dimension_numbers = #tpu.dot_dimension_numbers<[1], [0], [0], [1], [0, 0, 1, 1], [], []>} : vector<2x32xbf16>, vector<32x128xbf16>, vector<2x128xf32> -> vector<2x128xf32>
    %8 = arith.addf %0, %7 : vector<2x128xf32>
    %c0_i32_6 = arith.constant 0 : i32
    %9 = arith.addi %arg1, %c0_i32_6 : i32
    %c0_7 = arith.constant 0 : index
    %10 = arith.index_cast %9 : i32 to index
    %c0_8 = arith.constant 0 : index
    %c0_9 = arith.constant 0 : index
    %11 = vector.load %arg3[%c0_7, %10, %c0_8, %c0_9] : memref<1x4x4x32xbf16, #tpu.memory_space<vmem>>, vector<1x1x2x32xbf16>
    %12 = vector.shape_cast %11 : vector<1x1x2x32xbf16> to vector<2x32xbf16>
    %c1 = arith.constant 1 : index
    %c0_10 = arith.constant 0 : index
    %c0_11 = arith.constant 0 : index
    %13 = vector.load %arg6[%c1, %c0_10, %c0_11] : memref<25x32x128xbf16, #tpu.memory_space<vmem>>, vector<1x32x128xbf16>
    %14 = vector.shape_cast %13 : vector<1x32x128xbf16> to vector<32x128xbf16>
    %cst_12 = arith.constant dense<0.000000e+00> : vector<2x128xf32>
    %15 = tpu.matmul %12, %14, %cst_12 {dimension_numbers = #tpu.dot_dimension_numbers<[1], [0], [0], [1], [0, 0, 1, 1], [], []>} : vector<2x32xbf16>, vector<32x128xbf16>, vector<2x128xf32> -> vector<2x128xf32>
    %16 = arith.addf %8, %15 : vector<2x128xf32>
    %c0_i32_13 = arith.constant 0 : i32
    %17 = arith.addi %arg1, %c0_i32_13 : i32
    %c0_14 = arith.constant 0 : index
    %18 = arith.index_cast %17 : i32 to index
    %c1_15 = arith.constant 1 : index
    %c0_16 = arith.constant 0 : index
    %19 = vector.load %arg2[%c0_14, %18, %c1_15, %c0_16] : memref<1x4x4x32xbf16, #tpu.memory_space<vmem>>, vector<1x1x2x32xbf16>
    %20 = vector.shape_cast %19 : vector<1x1x2x32xbf16> to vector<2x32xbf16>
    %c2 = arith.constant 2 : index
    %c0_17 = arith.constant 0 : index
    %c0_18 = arith.constant 0 : index
    %21 = vector.load %arg6[%c2, %c0_17, %c0_18] : memref<25x32x128xbf16, #tpu.memory_space<vmem>>, vector<1x32x128xbf16>
    %22 = vector.shape_cast %21 : vector<1x32x128xbf16> to vector<32x128xbf16>
    %cst_19 = arith.constant dense<0.000000e+00> : vector<2x128xf32>
    %23 = tpu.matmul %20, %22, %cst_19 {dimension_numbers = #tpu.dot_dimension_numbers<[1], [0], [0], [1], [0, 0, 1, 1], [], []>} : vector<2x32xbf16>, vector<32x128xbf16>, vector<2x128xf32> -> vector<2x128xf32>
    %24 = arith.addf %16, %23 : vector<2x128xf32>
    %c0_i32_20 = arith.constant 0 : i32
    %25 = arith.addi %arg1, %c0_i32_20 : i32
    %c0_21 = arith.constant 0 : index
    %26 = arith.index_cast %25 : i32 to index
    %c1_22 = arith.constant 1 : index
    %c0_23 = arith.constant 0 : index
    %27 = vector.load %arg3[%c0_21, %26, %c1_22, %c0_23] : memref<1x4x4x32xbf16, #tpu.memory_space<vmem>>, vector<1x1x2x32xbf16>
    %28 = vector.shape_cast %27 : vector<1x1x2x32xbf16> to vector<2x32xbf16>
    %c3 = arith.constant 3 : index
    %c0_24 = arith.constant 0 : index
    %c0_25 = arith.constant 0 : index
    %29 = vector.load %arg6[%c3, %c0_24, %c0_25] : memref<25x32x128xbf16, #tpu.memory_space<vmem>>, vector<1x32x128xbf16>
    %30 = vector.shape_cast %29 : vector<1x32x128xbf16> to vector<32x128xbf16>
    %cst_26 = arith.constant dense<0.000000e+00> : vector<2x128xf32>
    %31 = tpu.matmul %28, %30, %cst_26 {dimension_numbers = #tpu.dot_dimension_numbers<[1], [0], [0], [1], [0, 0, 1, 1], [], []>} : vector<2x32xbf16>, vector<32x128xbf16>, vector<2x128xf32> -> vector<2x128xf32>
    %32 = arith.addf %24, %31 : vector<2x128xf32>
    %c0_i32_27 = arith.constant 0 : i32
    %33 = arith.addi %arg1, %c0_i32_27 : i32
    %c0_28 = arith.constant 0 : index
    %34 = arith.index_cast %33 : i32 to index
    %c2_29 = arith.constant 2 : index
    %c0_30 = arith.constant 0 : index
    %35 = vector.load %arg2[%c0_28, %34, %c2_29, %c0_30] : memref<1x4x4x32xbf16, #tpu.memory_space<vmem>>, vector<1x1x2x32xbf16>
    %36 = vector.shape_cast %35 : vector<1x1x2x32xbf16> to vector<2x32xbf16>
    %c4 = arith.constant 4 : index
    %c0_31 = arith.constant 0 : index
    %c0_32 = arith.constant 0 : index
    %37 = vector.load %arg6[%c4, %c0_31, %c0_32] : memref<25x32x128xbf16, #tpu.memory_space<vmem>>, vector<1x32x128xbf16>
    %38 = vector.shape_cast %37 : vector<1x32x128xbf16> to vector<32x128xbf16>
    %cst_33 = arith.constant dense<0.000000e+00> : vector<2x128xf32>
    %39 = tpu.matmul %36, %38, %cst_33 {dimension_numbers = #tpu.dot_dimension_numbers<[1], [0], [0], [1], [0, 0, 1, 1], [], []>} : vector<2x32xbf16>, vector<32x128xbf16>, vector<2x128xf32> -> vector<2x128xf32>
    %40 = arith.addf %32, %39 : vector<2x128xf32>
    %c0_i32_34 = arith.constant 0 : i32
    %41 = arith.addi %arg1, %c0_i32_34 : i32
    %c0_35 = arith.constant 0 : index
    %42 = arith.index_cast %41 : i32 to index
    %c0_36 = arith.constant 0 : index
    %c0_37 = arith.constant 0 : index
    %43 = vector.load %arg4[%c0_35, %42, %c0_36, %c0_37] : memref<1x4x4x32xbf16, #tpu.memory_space<vmem>>, vector<1x1x2x32xbf16>
    %44 = vector.shape_cast %43 : vector<1x1x2x32xbf16> to vector<2x32xbf16>
    %c5 = arith.constant 5 : index
    %c0_38 = arith.constant 0 : index
    %c0_39 = arith.constant 0 : index
    %45 = vector.load %arg6[%c5, %c0_38, %c0_39] : memref<25x32x128xbf16, #tpu.memory_space<vmem>>, vector<1x32x128xbf16>
    %46 = vector.shape_cast %45 : vector<1x32x128xbf16> to vector<32x128xbf16>
    %cst_40 = arith.constant dense<0.000000e+00> : vector<2x128xf32>
    %47 = tpu.matmul %44, %46, %cst_40 {dimension_numbers = #tpu.dot_dimension_numbers<[1], [0], [0], [1], [0, 0, 1, 1], [], []>} : vector<2x32xbf16>, vector<32x128xbf16>, vector<2x128xf32> -> vector<2x128xf32>
    %48 = arith.addf %40, %47 : vector<2x128xf32>
    %c0_i32_41 = arith.constant 0 : i32
    %49 = arith.addi %arg1, %c0_i32_41 : i32
    %c0_42 = arith.constant 0 : index
    %50 = arith.index_cast %49 : i32 to index
    %c0_43 = arith.constant 0 : index
    %c0_44 = arith.constant 0 : index
    %51 = vector.load %arg5[%c0_42, %50, %c0_43, %c0_44] : memref<1x4x4x32xbf16, #tpu.memory_space<vmem>>, vector<1x1x2x32xbf16>
    %52 = vector.shape_cast %51 : vector<1x1x2x32xbf16> to vector<2x32xbf16>
    %c6 = arith.constant 6 : index
    %c0_45 = arith.constant 0 : index
    %c0_46 = arith.constant 0 : index
    %53 = vector.load %arg6[%c6, %c0_45, %c0_46] : memref<25x32x128xbf16, #tpu.memory_space<vmem>>, vector<1x32x128xbf16>
    %54 = vector.shape_cast %53 : vector<1x32x128xbf16> to vector<32x128xbf16>
    %cst_47 = arith.constant dense<0.000000e+00> : vector<2x128xf32>
    %55 = tpu.matmul %52, %54, %cst_47 {dimension_numbers = #tpu.dot_dimension_numbers<[1], [0], [0], [1], [0, 0, 1, 1], [], []>} : vector<2x32xbf16>, vector<32x128xbf16>, vector<2x128xf32> -> vector<2x128xf32>
    %56 = arith.addf %48, %55 : vector<2x128xf32>
    %c0_i32_48 = arith.constant 0 : i32
    %57 = arith.addi %arg1, %c0_i32_48 : i32
    %c0_49 = arith.constant 0 : index
    %58 = arith.index_cast %57 : i32 to index
    %c1_50 = arith.constant 1 : index
    %c0_51 = arith.constant 0 : index
    %59 = vector.load %arg4[%c0_49, %58, %c1_50, %c0_51] : memref<1x4x4x32xbf16, #tpu.memory_space<vmem>>, vector<1x1x2x32xbf16>
    %60 = vector.shape_cast %59 : vector<1x1x2x32xbf16> to vector<2x32xbf16>
    %c7 = arith.constant 7 : index
    %c0_52 = arith.constant 0 : index
    %c0_53 = arith.constant 0 : index
    %61 = vector.load %arg6[%c7, %c0_52, %c0_53] : memref<25x32x128xbf16, #tpu.memory_space<vmem>>, vector<1x32x128xbf16>
    %62 = vector.shape_cast %61 : vector<1x32x128xbf16> to vector<32x128xbf16>
    %cst_54 = arith.constant dense<0.000000e+00> : vector<2x128xf32>
    %63 = tpu.matmul %60, %62, %cst_54 {dimension_numbers = #tpu.dot_dimension_numbers<[1], [0], [0], [1], [0, 0, 1, 1], [], []>} : vector<2x32xbf16>, vector<32x128xbf16>, vector<2x128xf32> -> vector<2x128xf32>
    %64 = arith.addf %56, %63 : vector<2x128xf32>
    %c0_i32_55 = arith.constant 0 : i32
    %65 = arith.addi %arg1, %c0_i32_55 : i32
    %c0_56 = arith.constant 0 : index
    %66 = arith.index_cast %65 : i32 to index
    %c1_57 = arith.constant 1 : index
    %c0_58 = arith.constant 0 : index
    %67 = vector.load %arg5[%c0_56, %66, %c1_57, %c0_58] : memref<1x4x4x32xbf16, #tpu.memory_space<vmem>>, vector<1x1x2x32xbf16>
    %68 = vector.shape_cast %67 : vector<1x1x2x32xbf16> to vector<2x32xbf16>
    %c8 = arith.constant 8 : index
    %c0_59 = arith.constant 0 : index
    %c0_60 = arith.constant 0 : index
    %69 = vector.load %arg6[%c8, %c0_59, %c0_60] : memref<25x32x128xbf16, #tpu.memory_space<vmem>>, vector<1x32x128xbf16>
    %70 = vector.shape_cast %69 : vector<1x32x128xbf16> to vector<32x128xbf16>
    %cst_61 = arith.constant dense<0.000000e+00> : vector<2x128xf32>
    %71 = tpu.matmul %68, %70, %cst_61 {dimension_numbers = #tpu.dot_dimension_numbers<[1], [0], [0], [1], [0, 0, 1, 1], [], []>} : vector<2x32xbf16>, vector<32x128xbf16>, vector<2x128xf32> -> vector<2x128xf32>
    %72 = arith.addf %64, %71 : vector<2x128xf32>
    %c0_i32_62 = arith.constant 0 : i32
    %73 = arith.addi %arg1, %c0_i32_62 : i32
    %c0_63 = arith.constant 0 : index
    %74 = arith.index_cast %73 : i32 to index
    %c2_64 = arith.constant 2 : index
    %c0_65 = arith.constant 0 : index
    %75 = vector.load %arg4[%c0_63, %74, %c2_64, %c0_65] : memref<1x4x4x32xbf16, #tpu.memory_space<vmem>>, vector<1x1x2x32xbf16>
    %76 = vector.shape_cast %75 : vector<1x1x2x32xbf16> to vector<2x32xbf16>
    %c9 = arith.constant 9 : index
    %c0_66 = arith.constant 0 : index
    %c0_67 = arith.constant 0 : index
    %77 = vector.load %arg6[%c9, %c0_66, %c0_67] : memref<25x32x128xbf16, #tpu.memory_space<vmem>>, vector<1x32x128xbf16>
    %78 = vector.shape_cast %77 : vector<1x32x128xbf16> to vector<32x128xbf16>
    %cst_68 = arith.constant dense<0.000000e+00> : vector<2x128xf32>
    %79 = tpu.matmul %76, %78, %cst_68 {dimension_numbers = #tpu.dot_dimension_numbers<[1], [0], [0], [1], [0, 0, 1, 1], [], []>} : vector<2x32xbf16>, vector<32x128xbf16>, vector<2x128xf32> -> vector<2x128xf32>
    %80 = arith.addf %72, %79 : vector<2x128xf32>
    %c1_i32 = arith.constant 1 : i32
    %81 = arith.addi %arg1, %c1_i32 : i32
    %c0_69 = arith.constant 0 : index
    %82 = arith.index_cast %81 : i32 to index
    %c0_70 = arith.constant 0 : index
    %c0_71 = arith.constant 0 : index
    %83 = vector.load %arg2[%c0_69, %82, %c0_70, %c0_71] : memref<1x4x4x32xbf16, #tpu.memory_space<vmem>>, vector<1x1x2x32xbf16>
    %84 = vector.shape_cast %83 : vector<1x1x2x32xbf16> to vector<2x32xbf16>
    %c10 = arith.constant 10 : index
    %c0_72 = arith.constant 0 : index
    %c0_73 = arith.constant 0 : index
    %85 = vector.load %arg6[%c10, %c0_72, %c0_73] : memref<25x32x128xbf16, #tpu.memory_space<vmem>>, vector<1x32x128xbf16>
    %86 = vector.shape_cast %85 : vector<1x32x128xbf16> to vector<32x128xbf16>
    %cst_74 = arith.constant dense<0.000000e+00> : vector<2x128xf32>
    %87 = tpu.matmul %84, %86, %cst_74 {dimension_numbers = #tpu.dot_dimension_numbers<[1], [0], [0], [1], [0, 0, 1, 1], [], []>} : vector<2x32xbf16>, vector<32x128xbf16>, vector<2x128xf32> -> vector<2x128xf32>
    %88 = arith.addf %80, %87 : vector<2x128xf32>
    %c1_i32_75 = arith.constant 1 : i32
    %89 = arith.addi %arg1, %c1_i32_75 : i32
    %c0_76 = arith.constant 0 : index
    %90 = arith.index_cast %89 : i32 to index
    %c0_77 = arith.constant 0 : index
    %c0_78 = arith.constant 0 : index
    %91 = vector.load %arg3[%c0_76, %90, %c0_77, %c0_78] : memref<1x4x4x32xbf16, #tpu.memory_space<vmem>>, vector<1x1x2x32xbf16>
    %92 = vector.shape_cast %91 : vector<1x1x2x32xbf16> to vector<2x32xbf16>
    %c11 = arith.constant 11 : index
    %c0_79 = arith.constant 0 : index
    %c0_80 = arith.constant 0 : index
    %93 = vector.load %arg6[%c11, %c0_79, %c0_80] : memref<25x32x128xbf16, #tpu.memory_space<vmem>>, vector<1x32x128xbf16>
    %94 = vector.shape_cast %93 : vector<1x32x128xbf16> to vector<32x128xbf16>
    %cst_81 = arith.constant dense<0.000000e+00> : vector<2x128xf32>
    %95 = tpu.matmul %92, %94, %cst_81 {dimension_numbers = #tpu.dot_dimension_numbers<[1], [0], [0], [1], [0, 0, 1, 1], [], []>} : vector<2x32xbf16>, vector<32x128xbf16>, vector<2x128xf32> -> vector<2x128xf32>
    %96 = arith.addf %88, %95 : vector<2x128xf32>
    %c1_i32_82 = arith.constant 1 : i32
    %97 = arith.addi %arg1, %c1_i32_82 : i32
    %c0_83 = arith.constant 0 : index
    %98 = arith.index_cast %97 : i32 to index
    %c1_84 = arith.constant 1 : index
    %c0_85 = arith.constant 0 : index
    %99 = vector.load %arg2[%c0_83, %98, %c1_84, %c0_85] : memref<1x4x4x32xbf16, #tpu.memory_space<vmem>>, vector<1x1x2x32xbf16>
    %100 = vector.shape_cast %99 : vector<1x1x2x32xbf16> to vector<2x32xbf16>
    %c12 = arith.constant 12 : index
    %c0_86 = arith.constant 0 : index
    %c0_87 = arith.constant 0 : index
    %101 = vector.load %arg6[%c12, %c0_86, %c0_87] : memref<25x32x128xbf16, #tpu.memory_space<vmem>>, vector<1x32x128xbf16>
    %102 = vector.shape_cast %101 : vector<1x32x128xbf16> to vector<32x128xbf16>
    %cst_88 = arith.constant dense<0.000000e+00> : vector<2x128xf32>
    %103 = tpu.matmul %100, %102, %cst_88 {dimension_numbers = #tpu.dot_dimension_numbers<[1], [0], [0], [1], [0, 0, 1, 1], [], []>} : vector<2x32xbf16>, vector<32x128xbf16>, vector<2x128xf32> -> vector<2x128xf32>
    %104 = arith.addf %96, %103 : vector<2x128xf32>
    %c1_i32_89 = arith.constant 1 : i32
    %105 = arith.addi %arg1, %c1_i32_89 : i32
    %c0_90 = arith.constant 0 : index
    %106 = arith.index_cast %105 : i32 to index
    %c1_91 = arith.constant 1 : index
    %c0_92 = arith.constant 0 : index
    %107 = vector.load %arg3[%c0_90, %106, %c1_91, %c0_92] : memref<1x4x4x32xbf16, #tpu.memory_space<vmem>>, vector<1x1x2x32xbf16>
    %108 = vector.shape_cast %107 : vector<1x1x2x32xbf16> to vector<2x32xbf16>
    %c13 = arith.constant 13 : index
    %c0_93 = arith.constant 0 : index
    %c0_94 = arith.constant 0 : index
    %109 = vector.load %arg6[%c13, %c0_93, %c0_94] : memref<25x32x128xbf16, #tpu.memory_space<vmem>>, vector<1x32x128xbf16>
    %110 = vector.shape_cast %109 : vector<1x32x128xbf16> to vector<32x128xbf16>
    %cst_95 = arith.constant dense<0.000000e+00> : vector<2x128xf32>
    %111 = tpu.matmul %108, %110, %cst_95 {dimension_numbers = #tpu.dot_dimension_numbers<[1], [0], [0], [1], [0, 0, 1, 1], [], []>} : vector<2x32xbf16>, vector<32x128xbf16>, vector<2x128xf32> -> vector<2x128xf32>
    %112 = arith.addf %104, %111 : vector<2x128xf32>
    %c1_i32_96 = arith.constant 1 : i32
    %113 = arith.addi %arg1, %c1_i32_96 : i32
    %c0_97 = arith.constant 0 : index
    %114 = arith.index_cast %113 : i32 to index
    %c2_98 = arith.constant 2 : index
    %c0_99 = arith.constant 0 : index
    %115 = vector.load %arg2[%c0_97, %114, %c2_98, %c0_99] : memref<1x4x4x32xbf16, #tpu.memory_space<vmem>>, vector<1x1x2x32xbf16>
    %116 = vector.shape_cast %115 : vector<1x1x2x32xbf16> to vector<2x32xbf16>
    %c14 = arith.constant 14 : index
    %c0_100 = arith.constant 0 : index
    %c0_101 = arith.constant 0 : index
    %117 = vector.load %arg6[%c14, %c0_100, %c0_101] : memref<25x32x128xbf16, #tpu.memory_space<vmem>>, vector<1x32x128xbf16>
    %118 = vector.shape_cast %117 : vector<1x32x128xbf16> to vector<32x128xbf16>
    %cst_102 = arith.constant dense<0.000000e+00> : vector<2x128xf32>
    %119 = tpu.matmul %116, %118, %cst_102 {dimension_numbers = #tpu.dot_dimension_numbers<[1], [0], [0], [1], [0, 0, 1, 1], [], []>} : vector<2x32xbf16>, vector<32x128xbf16>, vector<2x128xf32> -> vector<2x128xf32>
    %120 = arith.addf %112, %119 : vector<2x128xf32>
    %c1_i32_103 = arith.constant 1 : i32
    %121 = arith.addi %arg1, %c1_i32_103 : i32
    %c0_104 = arith.constant 0 : index
    %122 = arith.index_cast %121 : i32 to index
    %c0_105 = arith.constant 0 : index
    %c0_106 = arith.constant 0 : index
    %123 = vector.load %arg4[%c0_104, %122, %c0_105, %c0_106] : memref<1x4x4x32xbf16, #tpu.memory_space<vmem>>, vector<1x1x2x32xbf16>
    %124 = vector.shape_cast %123 : vector<1x1x2x32xbf16> to vector<2x32xbf16>
    %c15 = arith.constant 15 : index
    %c0_107 = arith.constant 0 : index
    %c0_108 = arith.constant 0 : index
    %125 = vector.load %arg6[%c15, %c0_107, %c0_108] : memref<25x32x128xbf16, #tpu.memory_space<vmem>>, vector<1x32x128xbf16>
    %126 = vector.shape_cast %125 : vector<1x32x128xbf16> to vector<32x128xbf16>
    %cst_109 = arith.constant dense<0.000000e+00> : vector<2x128xf32>
    %127 = tpu.matmul %124, %126, %cst_109 {dimension_numbers = #tpu.dot_dimension_numbers<[1], [0], [0], [1], [0, 0, 1, 1], [], []>} : vector<2x32xbf16>, vector<32x128xbf16>, vector<2x128xf32> -> vector<2x128xf32>
    %128 = arith.addf %120, %127 : vector<2x128xf32>
    %c1_i32_110 = arith.constant 1 : i32
    %129 = arith.addi %arg1, %c1_i32_110 : i32
    %c0_111 = arith.constant 0 : index
    %130 = arith.index_cast %129 : i32 to index
    %c0_112 = arith.constant 0 : index
    %c0_113 = arith.constant 0 : index
    %131 = vector.load %arg5[%c0_111, %130, %c0_112, %c0_113] : memref<1x4x4x32xbf16, #tpu.memory_space<vmem>>, vector<1x1x2x32xbf16>
    %132 = vector.shape_cast %131 : vector<1x1x2x32xbf16> to vector<2x32xbf16>
    %c16 = arith.constant 16 : index
    %c0_114 = arith.constant 0 : index
    %c0_115 = arith.constant 0 : index
    %133 = vector.load %arg6[%c16, %c0_114, %c0_115] : memref<25x32x128xbf16, #tpu.memory_space<vmem>>, vector<1x32x128xbf16>
    %134 = vector.shape_cast %133 : vector<1x32x128xbf16> to vector<32x128xbf16>
    %cst_116 = arith.constant dense<0.000000e+00> : vector<2x128xf32>
    %135 = tpu.matmul %132, %134, %cst_116 {dimension_numbers = #tpu.dot_dimension_numbers<[1], [0], [0], [1], [0, 0, 1, 1], [], []>} : vector<2x32xbf16>, vector<32x128xbf16>, vector<2x128xf32> -> vector<2x128xf32>
    %136 = arith.addf %128, %135 : vector<2x128xf32>
    %c1_i32_117 = arith.constant 1 : i32
    %137 = arith.addi %arg1, %c1_i32_117 : i32
    %c0_118 = arith.constant 0 : index
    %138 = arith.index_cast %137 : i32 to index
    %c1_119 = arith.constant 1 : index
    %c0_120 = arith.constant 0 : index
    %139 = vector.load %arg4[%c0_118, %138, %c1_119, %c0_120] : memref<1x4x4x32xbf16, #tpu.memory_space<vmem>>, vector<1x1x2x32xbf16>
    %140 = vector.shape_cast %139 : vector<1x1x2x32xbf16> to vector<2x32xbf16>
    %c17 = arith.constant 17 : index
    %c0_121 = arith.constant 0 : index
    %c0_122 = arith.constant 0 : index
    %141 = vector.load %arg6[%c17, %c0_121, %c0_122] : memref<25x32x128xbf16, #tpu.memory_space<vmem>>, vector<1x32x128xbf16>
    %142 = vector.shape_cast %141 : vector<1x32x128xbf16> to vector<32x128xbf16>
    %cst_123 = arith.constant dense<0.000000e+00> : vector<2x128xf32>
    %143 = tpu.matmul %140, %142, %cst_123 {dimension_numbers = #tpu.dot_dimension_numbers<[1], [0], [0], [1], [0, 0, 1, 1], [], []>} : vector<2x32xbf16>, vector<32x128xbf16>, vector<2x128xf32> -> vector<2x128xf32>
    %144 = arith.addf %136, %143 : vector<2x128xf32>
    %c1_i32_124 = arith.constant 1 : i32
    %145 = arith.addi %arg1, %c1_i32_124 : i32
    %c0_125 = arith.constant 0 : index
    %146 = arith.index_cast %145 : i32 to index
    %c1_126 = arith.constant 1 : index
    %c0_127 = arith.constant 0 : index
    %147 = vector.load %arg5[%c0_125, %146, %c1_126, %c0_127] : memref<1x4x4x32xbf16, #tpu.memory_space<vmem>>, vector<1x1x2x32xbf16>
    %148 = vector.shape_cast %147 : vector<1x1x2x32xbf16> to vector<2x32xbf16>
    %c18 = arith.constant 18 : index
    %c0_128 = arith.constant 0 : index
    %c0_129 = arith.constant 0 : index
    %149 = vector.load %arg6[%c18, %c0_128, %c0_129] : memref<25x32x128xbf16, #tpu.memory_space<vmem>>, vector<1x32x128xbf16>
    %150 = vector.shape_cast %149 : vector<1x32x128xbf16> to vector<32x128xbf16>
    %cst_130 = arith.constant dense<0.000000e+00> : vector<2x128xf32>
    %151 = tpu.matmul %148, %150, %cst_130 {dimension_numbers = #tpu.dot_dimension_numbers<[1], [0], [0], [1], [0, 0, 1, 1], [], []>} : vector<2x32xbf16>, vector<32x128xbf16>, vector<2x128xf32> -> vector<2x128xf32>
    %152 = arith.addf %144, %151 : vector<2x128xf32>
    %c1_i32_131 = arith.constant 1 : i32
    %153 = arith.addi %arg1, %c1_i32_131 : i32
    %c0_132 = arith.constant 0 : index
    %154 = arith.index_cast %153 : i32 to index
    %c2_133 = arith.constant 2 : index
    %c0_134 = arith.constant 0 : index
    %155 = vector.load %arg4[%c0_132, %154, %c2_133, %c0_134] : memref<1x4x4x32xbf16, #tpu.memory_space<vmem>>, vector<1x1x2x32xbf16>
    %156 = vector.shape_cast %155 : vector<1x1x2x32xbf16> to vector<2x32xbf16>
    %c19 = arith.constant 19 : index
    %c0_135 = arith.constant 0 : index
    %c0_136 = arith.constant 0 : index
    %157 = vector.load %arg6[%c19, %c0_135, %c0_136] : memref<25x32x128xbf16, #tpu.memory_space<vmem>>, vector<1x32x128xbf16>
    %158 = vector.shape_cast %157 : vector<1x32x128xbf16> to vector<32x128xbf16>
    %cst_137 = arith.constant dense<0.000000e+00> : vector<2x128xf32>
    %159 = tpu.matmul %156, %158, %cst_137 {dimension_numbers = #tpu.dot_dimension_numbers<[1], [0], [0], [1], [0, 0, 1, 1], [], []>} : vector<2x32xbf16>, vector<32x128xbf16>, vector<2x128xf32> -> vector<2x128xf32>
    %160 = arith.addf %152, %159 : vector<2x128xf32>
    %c2_i32 = arith.constant 2 : i32
    %161 = arith.addi %arg1, %c2_i32 : i32
    %c0_138 = arith.constant 0 : index
    %162 = arith.index_cast %161 : i32 to index
    %c0_139 = arith.constant 0 : index
    %c0_140 = arith.constant 0 : index
    %163 = vector.load %arg2[%c0_138, %162, %c0_139, %c0_140] : memref<1x4x4x32xbf16, #tpu.memory_space<vmem>>, vector<1x1x2x32xbf16>
    %164 = vector.shape_cast %163 : vector<1x1x2x32xbf16> to vector<2x32xbf16>
    %c20 = arith.constant 20 : index
    %c0_141 = arith.constant 0 : index
    %c0_142 = arith.constant 0 : index
    %165 = vector.load %arg6[%c20, %c0_141, %c0_142] : memref<25x32x128xbf16, #tpu.memory_space<vmem>>, vector<1x32x128xbf16>
    %166 = vector.shape_cast %165 : vector<1x32x128xbf16> to vector<32x128xbf16>
    %cst_143 = arith.constant dense<0.000000e+00> : vector<2x128xf32>
    %167 = tpu.matmul %164, %166, %cst_143 {dimension_numbers = #tpu.dot_dimension_numbers<[1], [0], [0], [1], [0, 0, 1, 1], [], []>} : vector<2x32xbf16>, vector<32x128xbf16>, vector<2x128xf32> -> vector<2x128xf32>
    %168 = arith.addf %160, %167 : vector<2x128xf32>
    %c2_i32_144 = arith.constant 2 : i32
    %169 = arith.addi %arg1, %c2_i32_144 : i32
    %c0_145 = arith.constant 0 : index
    %170 = arith.index_cast %169 : i32 to index
    %c0_146 = arith.constant 0 : index
    %c0_147 = arith.constant 0 : index
    %171 = vector.load %arg3[%c0_145, %170, %c0_146, %c0_147] : memref<1x4x4x32xbf16, #tpu.memory_space<vmem>>, vector<1x1x2x32xbf16>
    %172 = vector.shape_cast %171 : vector<1x1x2x32xbf16> to vector<2x32xbf16>
    %c21 = arith.constant 21 : index
    %c0_148 = arith.constant 0 : index
    %c0_149 = arith.constant 0 : index
    %173 = vector.load %arg6[%c21, %c0_148, %c0_149] : memref<25x32x128xbf16, #tpu.memory_space<vmem>>, vector<1x32x128xbf16>
    %174 = vector.shape_cast %173 : vector<1x32x128xbf16> to vector<32x128xbf16>
    %cst_150 = arith.constant dense<0.000000e+00> : vector<2x128xf32>
    %175 = tpu.matmul %172, %174, %cst_150 {dimension_numbers = #tpu.dot_dimension_numbers<[1], [0], [0], [1], [0, 0, 1, 1], [], []>} : vector<2x32xbf16>, vector<32x128xbf16>, vector<2x128xf32> -> vector<2x128xf32>
    %176 = arith.addf %168, %175 : vector<2x128xf32>
    %c2_i32_151 = arith.constant 2 : i32
    %177 = arith.addi %arg1, %c2_i32_151 : i32
    %c0_152 = arith.constant 0 : index
    %178 = arith.index_cast %177 : i32 to index
    %c1_153 = arith.constant 1 : index
    %c0_154 = arith.constant 0 : index
    %179 = vector.load %arg2[%c0_152, %178, %c1_153, %c0_154] : memref<1x4x4x32xbf16, #tpu.memory_space<vmem>>, vector<1x1x2x32xbf16>
    %180 = vector.shape_cast %179 : vector<1x1x2x32xbf16> to vector<2x32xbf16>
    %c22 = arith.constant 22 : index
    %c0_155 = arith.constant 0 : index
    %c0_156 = arith.constant 0 : index
    %181 = vector.load %arg6[%c22, %c0_155, %c0_156] : memref<25x32x128xbf16, #tpu.memory_space<vmem>>, vector<1x32x128xbf16>
    %182 = vector.shape_cast %181 : vector<1x32x128xbf16> to vector<32x128xbf16>
    %cst_157 = arith.constant dense<0.000000e+00> : vector<2x128xf32>
    %183 = tpu.matmul %180, %182, %cst_157 {dimension_numbers = #tpu.dot_dimension_numbers<[1], [0], [0], [1], [0, 0, 1, 1], [], []>} : vector<2x32xbf16>, vector<32x128xbf16>, vector<2x128xf32> -> vector<2x128xf32>
    %184 = arith.addf %176, %183 : vector<2x128xf32>
    %c2_i32_158 = arith.constant 2 : i32
    %185 = arith.addi %arg1, %c2_i32_158 : i32
    %c0_159 = arith.constant 0 : index
    %186 = arith.index_cast %185 : i32 to index
    %c1_160 = arith.constant 1 : index
    %c0_161 = arith.constant 0 : index
    %187 = vector.load %arg3[%c0_159, %186, %c1_160, %c0_161] : memref<1x4x4x32xbf16, #tpu.memory_space<vmem>>, vector<1x1x2x32xbf16>
    %188 = vector.shape_cast %187 : vector<1x1x2x32xbf16> to vector<2x32xbf16>
    %c23 = arith.constant 23 : index
    %c0_162 = arith.constant 0 : index
    %c0_163 = arith.constant 0 : index
    %189 = vector.load %arg6[%c23, %c0_162, %c0_163] : memref<25x32x128xbf16, #tpu.memory_space<vmem>>, vector<1x32x128xbf16>
    %190 = vector.shape_cast %189 : vector<1x32x128xbf16> to vector<32x128xbf16>
    %cst_164 = arith.constant dense<0.000000e+00> : vector<2x128xf32>
    %191 = tpu.matmul %188, %190, %cst_164 {dimension_numbers = #tpu.dot_dimension_numbers<[1], [0], [0], [1], [0, 0, 1, 1], [], []>} : vector<2x32xbf16>, vector<32x128xbf16>, vector<2x128xf32> -> vector<2x128xf32>
    %192 = arith.addf %184, %191 : vector<2x128xf32>
    %c2_i32_165 = arith.constant 2 : i32
    %193 = arith.addi %arg1, %c2_i32_165 : i32
    %c0_166 = arith.constant 0 : index
    %194 = arith.index_cast %193 : i32 to index
    %c2_167 = arith.constant 2 : index
    %c0_168 = arith.constant 0 : index
    %195 = vector.load %arg2[%c0_166, %194, %c2_167, %c0_168] : memref<1x4x4x32xbf16, #tpu.memory_space<vmem>>, vector<1x1x2x32xbf16>
    %196 = vector.shape_cast %195 : vector<1x1x2x32xbf16> to vector<2x32xbf16>
    %c24 = arith.constant 24 : index
    %c0_169 = arith.constant 0 : index
    %c0_170 = arith.constant 0 : index
    %197 = vector.load %arg6[%c24, %c0_169, %c0_170] : memref<25x32x128xbf16, #tpu.memory_space<vmem>>, vector<1x32x128xbf16>
    %198 = vector.shape_cast %197 : vector<1x32x128xbf16> to vector<32x128xbf16>
    %cst_171 = arith.constant dense<0.000000e+00> : vector<2x128xf32>
    %199 = tpu.matmul %196, %198, %cst_171 {dimension_numbers = #tpu.dot_dimension_numbers<[1], [0], [0], [1], [0, 0, 1, 1], [], []>} : vector<2x32xbf16>, vector<32x128xbf16>, vector<2x128xf32> -> vector<2x128xf32>
    %200 = arith.addf %192, %199 : vector<2x128xf32>
    %c0_172 = arith.constant 0 : index
    %c0_173 = arith.constant 0 : index
    %c0_174 = arith.constant 0 : index
    %c0_175 = arith.constant 0 : index
    %201 = vector.load %arg7[%c0_172, %c0_173, %c0_174, %c0_175] : memref<1x1x2x128xf32, #tpu.memory_space<vmem>>, vector<1x1x2x128xf32>
    %202 = vector.shape_cast %201 : vector<1x1x2x128xf32> to vector<2x128xf32>
    %203 = vector.shape_cast %200 : vector<2x128xf32> to vector<1x1x2x128xf32>
    tpu.vector_store %arg7[%c0_172, %c0_173, %c0_174, %c0_175], %203 {strides = array<i32>} : memref<1x1x2x128xf32, #tpu.memory_space<vmem>>, vector<1x1x2x128xf32>,
    return
  }
  func.func @transform_0(%arg0: i32, %arg1: i32) -> (i32, i32, i32, i32) {
    %c0_i32 = arith.constant 0 : i32
    %c0_i32_0 = arith.constant 0 : i32
    %c0_i32_1 = arith.constant 0 : i32
    %c0_i32_2 = arith.constant 0 : i32
    return %arg0, %c0_i32, %c0_i32_0, %c0_i32_1 : i32, i32, i32, i32
  }
  func.func @transform_1(%arg0: i32, %arg1: i32) -> (i32, i32, i32, i32) {
    %c0_i32 = arith.constant 0 : i32
    %c0_i32_0 = arith.constant 0 : i32
    %c0_i32_1 = arith.constant 0 : i32
    %c0_i32_2 = arith.constant 0 : i32
    return %arg0, %c0_i32, %c0_i32_0, %c0_i32_1 : i32, i32, i32, i32
  }
  func.func @transform_2(%arg0: i32, %arg1: i32) -> (i32, i32, i32, i32) {
    %c0_i32 = arith.constant 0 : i32
    %c0_i32_0 = arith.constant 0 : i32
    %c0_i32_1 = arith.constant 0 : i32
    %c0_i32_2 = arith.constant 0 : i32
    return %arg0, %c0_i32, %c0_i32_0, %c0_i32_1 : i32, i32, i32, i32
  }
  func.func @transform_3(%arg0: i32, %arg1: i32) -> (i32, i32, i32, i32) {
    %c0_i32 = arith.constant 0 : i32
    %c0_i32_0 = arith.constant 0 : i32
    %c0_i32_1 = arith.constant 0 : i32
    %c0_i32_2 = arith.constant 0 : i32
    return %arg0, %c0_i32, %c0_i32_0, %c0_i32_1 : i32, i32, i32, i32
  }
  func.func @transform_4(%arg0: i32, %arg1: i32) -> (i32, i32, i32) {
    %c0_i32 = arith.constant 0 : i32
    %c0_i32_0 = arith.constant 0 : i32
    %c0_i32_1 = arith.constant 0 : i32
    %c0_i32_2 = arith.constant 0 : i32
    return %c0_i32, %c0_i32_0, %c0_i32_1 : i32, i32, i32
  }
  func.func @transform_5(%arg0: i32, %arg1: i32) -> (i32, i32, i32, i32) {
    %c0_i32 = arith.constant 0 : i32
    %c0_i32_0 = arith.constant 0 : i32
    %c0_i32_1 = arith.constant 0 : i32
    return %arg0, %arg1, %c0_i32, %c0_i32_0 : i32, i32, i32, i32
  }
}

</mosaic_0001>

<llo_original>
// kernel: binary_encoder_forward.3
$region0: #{binary_encoder_forward.3}
  #allocation0 [shape = 'u32[]', space=smem, size = 0x4, offset = 0x4, fixed_abs, tag = 'smem constant byte address 0x4 - core index']
  #allocation1 [shape = 'u32[144,128]{1,0:T(1,128)}', space=vmem, size = 0x12000, scoped, tag = 'internal scratch']
  %s0 = inlined_call_operand.vmem [shape: bf16[128,243], index: 0, kind: input, shape index: {}]
  %s1 = inlined_call_operand.vmem [shape: bf16[243,128], index: 1, kind: input, shape index: {}]
  %s2 = inlined_call_operand.vmem [shape: f32[1,128], index: 2, kind: input, shape index: {}]
  %s3 = inlined_call_operand.vmem [shape: f32[128,128], index: 3, kind: input, shape index: {}]
  %s4 = inlined_call_operand.vmem [shape: f32[1,128], index: 4, kind: input, shape index: {}]
  %s5 = inlined_call_operand.vmem [shape: f32[128,128], index: 5, kind: output, shape index: {}]
  %s6 = sld [smem:[#allocation0]]
  $region30: #{binary_encoder_forward.3} parent=0
    _
  %s8 = ssub.s32 1, %s6
  %s9 = scalar_select 0, %s8, %s6
  // Predicated region
  $region2: #{binary_encoder_forward.3} parent=0 // pred_check
    _
  $region3: #{binary_encoder_forward.3} parent=0 // pred_check_branch
    %11 = sbr.rel (0) target = $region5
  $region4: #{binary_encoder_forward.3} parent=0 // pred_region
    _
  $region5: #{binary_encoder_forward.3} parent=0 // pred_fallthru
    _
  // Predicated region
  $region6: #{binary_encoder_forward.3} parent=0 // pred_check
    _
  $region7: #{binary_encoder_forward.3} parent=0 // pred_check_branch
    %13 = sbr.rel (0) target = $region9
  $region8: #{binary_encoder_forward.3} parent=0 // pred_region
    _
  $region9: #{binary_encoder_forward.3} parent=0 // pred_fallthru
    _
  // Predicated region
  $region10: #{binary_encoder_forward.3} parent=0 // pred_check
    _
  $region11: #{binary_encoder_forward.3} parent=0 // pred_check_branch
    %15 = sbr.rel (0) target = $region13
  $region12: #{binary_encoder_forward.3} parent=0 // pred_region
    _
  $region13: #{binary_encoder_forward.3} parent=0 // pred_fallthru
    _
  // Predicated region
  $region14: #{binary_encoder_forward.3} parent=0 // pred_check
    _
  $region15: #{binary_encoder_forward.3} parent=0 // pred_check_branch
    %17 = sbr.rel (0) target = $region17
  $region16: #{binary_encoder_forward.3} parent=0 // pred_region
    _
  $region17: #{binary_encoder_forward.3} parent=0 // pred_fallthru
    _
  // Predicated region
  $region18: #{binary_encoder_forward.3} parent=0 // pred_check
    _
  $region19: #{binary_encoder_forward.3} parent=0 // pred_check_branch
    %19 = sbr.rel (0) target = $region21
  $region20: #{binary_encoder_forward.3} parent=0 // pred_region
    _
  $region21: #{binary_encoder_forward.3} parent=0 // pred_fallthru
    _
  %v21 = vld [vmem:[%s0] sm:$0xff]
  %v22 = vld [vmem:[%s0 + $0x8] sm:$0xff]
  %v23 = vld [vmem:[%s0 + $0x10] sm:$0xff]
  %v24 = vld [vmem:[%s0 + $0x18] sm:$0xff]
  %v25 = vld [vmem:[%s0 + $0x20] sm:$0xff]
  %v26 = vld [vmem:[%s0 + $0x28] sm:$0xff]
  %v27 = vld [vmem:[%s0 + $0x30] sm:$0xff]
  %v28 = vld [vmem:[%s0 + $0x38] sm:$0xff]
  %v29 = vld [vmem:[%s0 + $0x40] sm:$0xff]
  %v30 = vld [vmem:[%s0 + $0x48] sm:$0xff]
  %v31 = vld [vmem:[%s0 + $0x50] sm:$0xff]
  %v32 = vld [vmem:[%s0 + $0x58] sm:$0xff]
  %v33 = vld [vmem:[%s0 + $0x60] sm:$0xff]
  %v34 = vld [vmem:[%s0 + $0x68] sm:$0xff]
  %v35 = vld [vmem:[%s0 + $0x70] sm:$0xff]
  %v36 = vld [vmem:[%s0 + $0x78] sm:$0xff]
  %v37 = vld [vmem:[%s1] sm:$0xf]
  %v38 = vld [vmem:[%s1 + $0x4] sm:$0xf]
  %v39 = vld [vmem:[%s1 + $0x8] sm:$0xf]
  %v40 = vld [vmem:[%s1 + $0xc] sm:$0xf]
  %v41 = vld [vmem:[%s1 + $0x10] sm:$0xf]
  %v42 = vld [vmem:[%s1 + $0x14] sm:$0xf]
  %v43 = vld [vmem:[%s1 + $0x18] sm:$0xf]
  %v44 = vld [vmem:[%s1 + $0x1c] sm:$0xf]
  %v45 = vld [vmem:[%s1 + $0x20] sm:$0xf]
  %v46 = vld [vmem:[%s1 + $0x24] sm:$0xf]
  %v47 = vld [vmem:[%s1 + $0x28] sm:$0xf]
  %v48 = vld [vmem:[%s1 + $0x2c] sm:$0xf]
  %v49 = vld [vmem:[%s1 + $0x30] sm:$0xf]
  %v50 = vld [vmem:[%s1 + $0x34] sm:$0xf]
  %v51 = vld [vmem:[%s1 + $0x38] sm:$0xf]
  %v52 = vld [vmem:[%s1 + $0x3c] sm:$0xf]
  %v53 = vld [vmem:[%s1 + $0x40] sm:$0xf]
  %v54 = vld [vmem:[%s1 + $0x44] sm:$0xf]
  %v55 = vld [vmem:[%s1 + $0x48] sm:$0xf]
  %v56 = vld [vmem:[%s1 + $0x4c] sm:$0xf]
  %v57 = vld [vmem:[%s1 + $0x50] sm:$0xf]
  %v58 = vld [vmem:[%s1 + $0x54] sm:$0xf]
  %v59 = vld [vmem:[%s1 + $0x58] sm:$0xf]
  %v60 = vld [vmem:[%s1 + $0x5c] sm:$0xf]
  %v61 = vld [vmem:[%s1 + $0x60] sm:$0xf]
  %v62 = vld [vmem:[%s1 + $0x64] sm:$0xf]
  %v63 = vld [vmem:[%s1 + $0x68] sm:$0xf]
  %v64 = vld [vmem:[%s1 + $0x6c] sm:$0xf]
  %v65 = vld [vmem:[%s1 + $0x70] sm:$0xf]
  %v66 = vld [vmem:[%s1 + $0x74] sm:$0xf]
  %v67 = vld [vmem:[%s1 + $0x78] sm:$0x3]
  %v68 = vld [vmem:[%s2] sm:$0x1]
  %v70 = vlaneseq
  %v71 = vshrl.u32 %v70, 7
  %v72 = vsub.s32 0, %v71
  %v73 = vrot.slane %v68, %v72
  %v91 = vunpack.c.l.b16 %v21
  %v92 = vunpack.c.h.b16 %v21
  %v93 = vunpack.c.l.b16 %v22
  %v94 = vunpack.c.h.b16 %v22
  %v95 = vunpack.c.l.b16 %v23
  %v96 = vunpack.c.h.b16 %v23
  %v97 = vunpack.c.l.b16 %v24
  %v98 = vunpack.c.h.b16 %v24
  %v99 = vunpack.c.l.b16 %v25
  %v100 = vunpack.c.h.b16 %v25
  %v101 = vunpack.c.l.b16 %v26
  %v102 = vunpack.c.h.b16 %v26
  %v103 = vunpack.c.l.b16 %v27
  %v104 = vunpack.c.h.b16 %v27
  %v105 = vunpack.c.l.b16 %v28
  %v106 = vunpack.c.h.b16 %v28
  %v107 = vunpack.c.l.b16 %v29
  %v108 = vunpack.c.h.b16 %v29
  %v109 = vunpack.c.l.b16 %v30
  %v110 = vunpack.c.h.b16 %v30
  %v111 = vunpack.c.l.b16 %v31
  %v112 = vunpack.c.h.b16 %v31
  %v113 = vunpack.c.l.b16 %v32
  %v114 = vunpack.c.h.b16 %v32
  %v115 = vunpack.c.l.b16 %v33
  %v116 = vunpack.c.h.b16 %v33
  %v117 = vunpack.c.l.b16 %v34
  %v118 = vunpack.c.h.b16 %v34
  %v119 = vunpack.c.l.b16 %v35
  %v120 = vunpack.c.h.b16 %v35
  %v121 = vunpack.c.l.b16 %v36
  %v122 = vunpack.c.h.b16 %v36
  %v123 = vpack.c.b16 %v93, %v91
  %v124 = vpack.c.b16 %v94, %v92
  %v125 = vpack.c.b16 %v97, %v95
  %v126 = vpack.c.b16 %v98, %v96
  %v127 = vpack.c.b16 %v101, %v99
  %v128 = vpack.c.b16 %v102, %v100
  %v129 = vpack.c.b16 %v105, %v103
  %v130 = vpack.c.b16 %v106, %v104
  %v131 = vpack.c.b16 %v109, %v107
  %v132 = vpack.c.b16 %v110, %v108
  %v133 = vpack.c.b16 %v113, %v111
  %v134 = vpack.c.b16 %v114, %v112
  %v135 = vpack.c.b16 %v117, %v115
  %v136 = vpack.c.b16 %v118, %v116
  %v137 = vpack.c.b16 %v121, %v119
  %v138 = vpack.c.b16 %v122, %v120
  %v178 = vunpack.c.l.b16 %v37
  %v179 = vunpack.c.l.b16 %v38
  %v180 = vunpack.c.l.b16 %v39
  %v181 = vunpack.c.l.b16 %v40
  %v182 = vunpack.c.l.b16 %v41
  %v183 = vunpack.c.l.b16 %v42
  %v184 = vunpack.c.l.b16 %v43
  %v185 = vunpack.c.l.b16 %v44
  %v186 = vunpack.c.l.b16 %v45
  %v187 = vunpack.c.l.b16 %v46
  %v188 = vunpack.c.l.b16 %v47
  %v189 = vunpack.c.l.b16 %v48
  %v190 = vunpack.c.l.b16 %v49
  %v191 = vunpack.c.l.b16 %v50
  %v192 = vunpack.c.l.b16 %v51
  %v193 = vunpack.c.l.b16 %v52
  %v194 = vunpack.c.l.b16 %v53
  %v195 = vunpack.c.l.b16 %v54
  %v196 = vunpack.c.l.b16 %v55
  %v197 = vunpack.c.l.b16 %v56
  %v198 = vunpack.c.l.b16 %v57
  %v199 = vunpack.c.l.b16 %v58
  %v200 = vunpack.c.l.b16 %v59
  %v201 = vunpack.c.l.b16 %v60
  %v202 = vunpack.c.l.b16 %v61
  %v203 = vunpack.c.l.b16 %v62
  %v204 = vunpack.c.l.b16 %v63
  %v205 = vunpack.c.l.b16 %v64
  %v206 = vunpack.c.l.b16 %v65
  %v207 = vunpack.c.l.b16 %v66
  %v208 = vunpack.c.l.b16 %v67
  %v209 = vpack.c.b16 %v179, %v178
  %v210 = vpack.c.b16 %v181, %v180
  %v211 = vpack.c.b16 %v183, %v182
  %v212 = vpack.c.b16 %v185, %v184
  %v213 = vpack.c.b16 %v187, %v186
  %v214 = vpack.c.b16 %v189, %v188
  %v215 = vpack.c.b16 %v191, %v190
  %v216 = vpack.c.b16 %v193, %v192
  %v217 = vpack.c.b16 %v195, %v194
  %v218 = vpack.c.b16 %v197, %v196
  %v219 = vpack.c.b16 %v199, %v198
  %v220 = vpack.c.b16 %v201, %v200
  %v221 = vpack.c.b16 %v203, %v202
  %v222 = vpack.c.b16 %v205, %v204
  %v223 = vpack.c.b16 %v207, %v206
  %v224 = vpack.c.b16 %v208, %v208
  %vm240 = vcmask 941056
  %v242 = vsel %vm240, %v124, 0
  %v245 = vsel %vm240, %v126, 0
  %v248 = vsel %vm240, %v128, 0
  %v251 = vsel %vm240, %v130, 0
  %v254 = vsel %vm240, %v132, 0
  %v257 = vsel %vm240, %v134, 0
  %v260 = vsel %vm240, %v136, 0
  %v263 = vsel %vm240, %v138, 0
  %vm265 = vcmask 1040384
  %vm266 = vcmask 1041408
  %v267 = vsel %vm265, 4294967295, 65535
  %v268 = vsel %vm266, %v267, 0
  %v270 = vand.u32 %v224, %v268
  %272 = vmatprep.subr.bf16.mxu0 0
  %273 = vmatpush1.bf16.msra.mxu0 %v216
  %274 = vmatprep.subr.bf16.mxu0 0
  %275 = vmatpush1.bf16.msra.mxu0 %v215
  %276 = vmatprep.subr.bf16.mxu0 0
  %277 = vmatpush1.bf16.msra.mxu0 %v214
  %278 = vmatprep.subr.bf16.mxu0 0
  %279 = vmatpush1.bf16.msra.mxu0 %v213
  %280 = vmatprep.subr.bf16.mxu0 0
  %281 = vmatpush1.bf16.msra.mxu0 %v212
  %282 = vmatprep.subr.bf16.mxu0 0
  %283 = vmatpush1.bf16.msra.mxu0 %v211
  %284 = vmatprep.subr.bf16.mxu0 0
  %285 = vmatpush1.bf16.msra.mxu0 %v210
  %286 = vmatprep.subr.bf16.mxu0 0
  %287 = vmatpush1.bf16.msra.mxu0 %v209
  %288 = vmatprep.subr.bf16.mxu0 0
  %289 = vmatpush2.bf16.msra.mxu0 %v270
  %290 = vmatprep.subr.bf16.mxu0 0
  %291 = vmatpush2.bf16.msra.mxu0 %v223
  %292 = vmatprep.subr.bf16.mxu0 0
  %293 = vmatpush2.bf16.msra.mxu0 %v222
  %294 = vmatprep.subr.bf16.mxu0 0
  %295 = vmatpush2.bf16.msra.mxu0 %v221
  %296 = vmatprep.subr.bf16.mxu0 0
  %297 = vmatpush2.bf16.msra.mxu0 %v220
  %298 = vmatprep.subr.bf16.mxu0 0
  %299 = vmatpush2.bf16.msra.mxu0 %v219
  %300 = vmatprep.subr.bf16.mxu0 0
  %301 = vmatpush2.bf16.msra.mxu0 %v218
  %302 = vmatprep.subr.bf16.mxu0 0
  %303 = vmatpush2.bf16.msra.mxu0 %v217
  %304 = vmatprep.mubr.bf16.mxu0 %v242
  %305 = vmatmul.mubr.bf16.gmra.mxu0 %v123
  %v306 = vpop.f32.mrf.mxu0
  %v307 = vadd.f32 %v73, %v306
  %v308 = vpop.f32.mrf.mxu0
  %v309 = vpop.f32.mrf.mxu0
  %v310 = vadd.f32 %v73, %v309
  %v311 = vpop.f32.mrf.mxu0
  %312 = vmatprep.mubr.bf16.mxu0 %v245
  %313 = vmatmul.mubr.bf16.gmra.mxu0 %v125
  %v314 = vpop.f32.mrf.mxu0
  %v315 = vadd.f32 %v73, %v314
  %v316 = vpop.f32.mrf.mxu0
  %v317 = vpop.f32.mrf.mxu0
  %v318 = vadd.f32 %v73, %v317
  %v319 = vpop.f32.mrf.mxu0
  %320 = vmatprep.mubr.bf16.mxu0 %v248
  %321 = vmatmul.mubr.bf16.gmra.mxu0 %v127
  %v322 = vpop.f32.mrf.mxu0
  %v323 = vadd.f32 %v73, %v322
  %v324 = vpop.f32.mrf.mxu0
  %v325 = vpop.f32.mrf.mxu0
  %v326 = vadd.f32 %v73, %v325
  %v327 = vpop.f32.mrf.mxu0
  %328 = vmatprep.mubr.bf16.mxu0 %v251
  %329 = vmatmul.mubr.bf16.gmra.mxu0 %v129
  %v330 = vpop.f32.mrf.mxu0
  %v331 = vadd.f32 %v73, %v330
  %v332 = vpop.f32.mrf.mxu0
  %v333 = vpop.f32.mrf.mxu0
  %v334 = vadd.f32 %v73, %v333
  %v335 = vpop.f32.mrf.mxu0
  %336 = vmatprep.mubr.bf16.mxu0 %v254
  %337 = vmatmul.mubr.bf16.gmra.mxu0 %v131
  %v338 = vpop.f32.mrf.mxu0
  %v339 = vadd.f32 %v73, %v338
  %v340 = vpop.f32.mrf.mxu0
  %v341 = vpop.f32.mrf.mxu0
  %v342 = vadd.f32 %v73, %v341
  %v343 = vpop.f32.mrf.mxu0
  %344 = vmatprep.mubr.bf16.mxu0 %v257
  %345 = vmatmul.mubr.bf16.gmra.mxu0 %v133
  %v346 = vpop.f32.mrf.mxu0
  %v347 = vadd.f32 %v73, %v346
  %v348 = vpop.f32.mrf.mxu0
  %v349 = vpop.f32.mrf.mxu0
  %v350 = vadd.f32 %v73, %v349
  %v351 = vpop.f32.mrf.mxu0
  %352 = vmatprep.mubr.bf16.mxu0 %v260
  %353 = vmatmul.mubr.bf16.gmra.mxu0 %v135
  %v354 = vpop.f32.mrf.mxu0
  %v355 = vadd.f32 %v73, %v354
  %v356 = vpop.f32.mrf.mxu0
  %v357 = vpop.f32.mrf.mxu0
  %v358 = vadd.f32 %v73, %v357
  %v359 = vpop.f32.mrf.mxu0
  %360 = vmatprep.mubr.bf16.mxu0 %v263
  %361 = vmatmul.mubr.bf16.gmra.mxu0 %v137
  %v362 = vpop.f32.mrf.mxu0
  %v363 = vadd.f32 %v73, %v362
  %v364 = vpop.f32.mrf.mxu0
  %v365 = vpop.f32.mrf.mxu0
  %v366 = vadd.f32 %v73, %v365
  %v367 = vpop.f32.mrf.mxu0
  %368 = vdwg.mxu0
  %v369 = vmul.f32 %v307, %v307
  %v370 = vmul.f32 %v310, %v310
  %v371 = vmul.f32 %v315, %v315
  %v372 = vmul.f32 %v318, %v318
  %v373 = vmul.f32 %v323, %v323
  %v374 = vmul.f32 %v326, %v326
  %v375 = vmul.f32 %v331, %v331
  %v376 = vmul.f32 %v334, %v334
  %v377 = vmul.f32 %v339, %v339
  %v378 = vmul.f32 %v342, %v342
  %v379 = vmul.f32 %v347, %v347
  %v380 = vmul.f32 %v350, %v350
  %v381 = vmul.f32 %v355, %v355
  %v382 = vmul.f32 %v358, %v358
  %v383 = vmul.f32 %v363, %v363
  %v384 = vmul.f32 %v366, %v366
  %v385 = vld [vmem:[%s3] sm:$0xff]
  %v386 = vld [vmem:[%s3 + $0x8] sm:$0xff]
  %v387 = vld [vmem:[%s3 + $0x10] sm:$0xff]
  %v388 = vld [vmem:[%s3 + $0x18] sm:$0xff]
  %v389 = vld [vmem:[%s3 + $0x20] sm:$0xff]
  %v390 = vld [vmem:[%s3 + $0x28] sm:$0xff]
  %v391 = vld [vmem:[%s3 + $0x30] sm:$0xff]
  %v392 = vld [vmem:[%s3 + $0x38] sm:$0xff]
  %v393 = vld [vmem:[%s3 + $0x40] sm:$0xff]
  %v394 = vld [vmem:[%s3 + $0x48] sm:$0xff]
  %v395 = vld [vmem:[%s3 + $0x50] sm:$0xff]
  %v396 = vld [vmem:[%s3 + $0x58] sm:$0xff]
  %v397 = vld [vmem:[%s3 + $0x60] sm:$0xff]
  %v398 = vld [vmem:[%s3 + $0x68] sm:$0xff]
  %v399 = vld [vmem:[%s3 + $0x70] sm:$0xff]
  %v400 = vld [vmem:[%s3 + $0x78] sm:$0xff]
  %v401 = vld [vmem:[%s4] sm:$0x1]
  %v403 = vlaneseq
  %v404 = vshrl.u32 %v403, 7
  %v405 = vsub.s32 0, %v404
  %v406 = vrot.slane %v401, %v405
  %408 = vmatprep.subr.mxu0 0.0
  %409 = vmatpush1.msra.mxu0 %v400
  %410 = vmatprep.subr.mxu0 0.0
  %411 = vmatpush1.msra.mxu0 %v399
  %412 = vmatprep.subr.mxu0 0.0
  %413 = vmatpush1.msra.mxu0 %v398
  %414 = vmatprep.subr.mxu0 0.0
  %415 = vmatpush1.msra.mxu0 %v397
  %416 = vmatprep.subr.mxu0 0.0
  %417 = vmatpush1.msra.mxu0 %v396
  %418 = vmatprep.subr.mxu0 0.0
  %419 = vmatpush1.msra.mxu0 %v395
  %420 = vmatprep.subr.mxu0 0.0
  %421 = vmatpush1.msra.mxu0 %v394
  %422 = vmatprep.subr.mxu0 0.0
  %423 = vmatpush1.msra.mxu0 %v393
  %424 = vmatprep.subr.mxu0 0.0
  %425 = vmatpush1.msra.mxu0 %v392
  %426 = vmatprep.subr.mxu0 0.0
  %427 = vmatpush1.msra.mxu0 %v391
  %428 = vmatprep.subr.mxu0 0.0
  %429 = vmatpush1.msra.mxu0 %v390
  %430 = vmatprep.subr.mxu0 0.0
  %431 = vmatpush1.msra.mxu0 %v389
  %432 = vmatprep.subr.mxu0 0.0
  %433 = vmatpush1.msra.mxu0 %v388
  %434 = vmatprep.subr.mxu0 0.0
  %435 = vmatpush1.msra.mxu0 %v387
  %436 = vmatprep.subr.mxu0 0.0
  %437 = vmatpush1.msra.mxu0 %v386
  %438 = vmatprep.subr.mxu0 0.0
  %439 = vmatpush1.msra.mxu0 %v385
  %440 = vmatprep.subr.mxu0 0.0
  %441 = vmatpush2.msra.mxu0 0.0
  %442 = vmatprep.subr.mxu0 0.0
  %443 = vmatpush2.msra.mxu0 0.0
  %444 = vmatprep.subr.mxu0 0.0
  %445 = vmatpush2.msra.mxu0 0.0
  %446 = vmatprep.subr.mxu0 0.0
  %447 = vmatpush2.msra.mxu0 0.0
  %448 = vmatprep.subr.mxu0 0.0
  %449 = vmatpush2.msra.mxu0 0.0
  %450 = vmatprep.subr.mxu0 0.0
  %451 = vmatpush2.msra.mxu0 0.0
  %452 = vmatprep.subr.mxu0 0.0
  %453 = vmatpush2.msra.mxu0 0.0
  %454 = vmatprep.subr.mxu0 0.0
  %455 = vmatpush2.msra.mxu0 0.0
  %456 = vmatprep.subr.mxu0 0.0
  %457 = vmatpush2.msra.mxu0 0.0
  %458 = vmatprep.subr.mxu0 0.0
  %459 = vmatpush2.msra.mxu0 0.0
  %460 = vmatprep.subr.mxu0 0.0
  %461 = vmatpush2.msra.mxu0 0.0
  %462 = vmatprep.subr.mxu0 0.0
  %463 = vmatpush2.msra.mxu0 0.0
  %464 = vmatprep.subr.mxu0 0.0
  %465 = vmatpush2.msra.mxu0 0.0
  %466 = vmatprep.subr.mxu0 0.0
  %467 = vmatpush2.msra.mxu0 0.0
  %468 = vmatprep.subr.mxu0 0.0
  %469 = vmatpush2.msra.mxu0 0.0
  %470 = vmatprep.subr.mxu0 0.0
  %471 = vmatpush2.msra.mxu0 0.0
  %472 = vmatprep.mubr.f32.mxu0 0.0
  %473 = vmatmul.mubr.f32.gmra.mxu0 %v369
  %v474 = vpop.f32.mrf.mxu0
  %v475 = vadd.f32 %v406, %v474
  %v476 = vpop.f32.mrf.mxu0
  %477 = vmatprep.mubr.f32.mxu0 0.0
  %478 = vmatmul.mubr.f32.gmra.mxu0 %v370
  %v479 = vpop.f32.mrf.mxu0
  %v480 = vadd.f32 %v406, %v479
  %v481 = vpop.f32.mrf.mxu0
  %482 = vmatprep.mubr.f32.mxu0 0.0
  %483 = vmatmul.mubr.f32.gmra.mxu0 %v371
  %v484 = vpop.f32.mrf.mxu0
  %v485 = vadd.f32 %v406, %v484
  %v486 = vpop.f32.mrf.mxu0
  %487 = vmatprep.mubr.f32.mxu0 0.0
  %488 = vmatmul.mubr.f32.gmra.mxu0 %v372
  %v489 = vpop.f32.mrf.mxu0
  %v490 = vadd.f32 %v406, %v489
  %v491 = vpop.f32.mrf.mxu0
  %492 = vmatprep.mubr.f32.mxu0 0.0
  %493 = vmatmul.mubr.f32.gmra.mxu0 %v373
  %v494 = vpop.f32.mrf.mxu0
  %v495 = vadd.f32 %v406, %v494
  %v496 = vpop.f32.mrf.mxu0
  %497 = vmatprep.mubr.f32.mxu0 0.0
  %498 = vmatmul.mubr.f32.gmra.mxu0 %v374
  %v499 = vpop.f32.mrf.mxu0
  %v500 = vadd.f32 %v406, %v499
  %v501 = vpop.f32.mrf.mxu0
  %502 = vmatprep.mubr.f32.mxu0 0.0
  %503 = vmatmul.mubr.f32.gmra.mxu0 %v375
  %v504 = vpop.f32.mrf.mxu0
  %v505 = vadd.f32 %v406, %v504
  %v506 = vpop.f32.mrf.mxu0
  %507 = vmatprep.mubr.f32.mxu0 0.0
  %508 = vmatmul.mubr.f32.gmra.mxu0 %v376
  %v509 = vpop.f32.mrf.mxu0
  %v510 = vadd.f32 %v406, %v509
  %v511 = vpop.f32.mrf.mxu0
  %512 = vmatprep.mubr.f32.mxu0 0.0
  %513 = vmatmul.mubr.f32.gmra.mxu0 %v377
  %v514 = vpop.f32.mrf.mxu0
  %v515 = vadd.f32 %v406, %v514
  %v516 = vpop.f32.mrf.mxu0
  %517 = vmatprep.mubr.f32.mxu0 0.0
  %518 = vmatmul.mubr.f32.gmra.mxu0 %v378
  %v519 = vpop.f32.mrf.mxu0
  %v520 = vadd.f32 %v406, %v519
  %v521 = vpop.f32.mrf.mxu0
  %522 = vmatprep.mubr.f32.mxu0 0.0
  %523 = vmatmul.mubr.f32.gmra.mxu0 %v379
  %v524 = vpop.f32.mrf.mxu0
  %v525 = vadd.f32 %v406, %v524
  %v526 = vpop.f32.mrf.mxu0
  %527 = vmatprep.mubr.f32.mxu0 0.0
  %528 = vmatmul.mubr.f32.gmra.mxu0 %v380
  %v529 = vpop.f32.mrf.mxu0
  %v530 = vadd.f32 %v406, %v529
  %v531 = vpop.f32.mrf.mxu0
  %532 = vmatprep.mubr.f32.mxu0 0.0
  %533 = vmatmul.mubr.f32.gmra.mxu0 %v381
  %v534 = vpop.f32.mrf.mxu0
  %v535 = vadd.f32 %v406, %v534
  %v536 = vpop.f32.mrf.mxu0
  %537 = vmatprep.mubr.f32.mxu0 0.0
  %538 = vmatmul.mubr.f32.gmra.mxu0 %v382
  %v539 = vpop.f32.mrf.mxu0
  %v540 = vadd.f32 %v406, %v539
  %v541 = vpop.f32.mrf.mxu0
  %542 = vmatprep.mubr.f32.mxu0 0.0
  %543 = vmatmul.mubr.f32.gmra.mxu0 %v383
  %v544 = vpop.f32.mrf.mxu0
  %v545 = vadd.f32 %v406, %v544
  %v546 = vpop.f32.mrf.mxu0
  %547 = vmatprep.mubr.f32.mxu0 0.0
  %548 = vmatmul.mubr.f32.gmra.mxu0 %v384
  %v549 = vpop.f32.mrf.mxu0
  %v550 = vadd.f32 %v406, %v549
  %v551 = vpop.f32.mrf.mxu0
  %552 = vdwg.mxu0
  %v553 = vrsqrt.pop %v475
  %v554 = vrsqrt.pop %v480
  %v555 = vrsqrt.pop %v485
  %v556 = vrsqrt.pop %v490
  %v557 = vrsqrt.pop %v495
  %v558 = vrsqrt.pop %v500
  %v559 = vrsqrt.pop %v505
  %v560 = vrsqrt.pop %v510
  %v561 = vrsqrt.pop %v515
  %v562 = vrsqrt.pop %v520
  %v563 = vrsqrt.pop %v525
  %v564 = vrsqrt.pop %v530
  %v565 = vrsqrt.pop %v535
  %v566 = vrsqrt.pop %v540
  %v567 = vrsqrt.pop %v545
  %v568 = vrsqrt.pop %v550
  %v569 = vmul.f32 %v307, %v553
  %v570 = vmul.f32 %v310, %v554
  %v571 = vmul.f32 %v315, %v555
  %v572 = vmul.f32 %v318, %v556
  %v573 = vmul.f32 %v323, %v557
  %v574 = vmul.f32 %v326, %v558
  %v575 = vmul.f32 %v331, %v559
  %v576 = vmul.f32 %v334, %v560
  %v577 = vmul.f32 %v339, %v561
  %v578 = vmul.f32 %v342, %v562
  %v579 = vmul.f32 %v347, %v563
  %v580 = vmul.f32 %v350, %v564
  %v581 = vmul.f32 %v355, %v565
  %v582 = vmul.f32 %v358, %v566
  %v583 = vmul.f32 %v363, %v567
  %v584 = vmul.f32 %v366, %v568
  %585 = vst [vmem:[%s5] sm:$0xff] %v569
  %586 = vst [vmem:[%s5 + $0x8] sm:$0xff] %v570
  %587 = vst [vmem:[%s5 + $0x10] sm:$0xff] %v571
  %588 = vst [vmem:[%s5 + $0x18] sm:$0xff] %v572
  %589 = vst [vmem:[%s5 + $0x20] sm:$0xff] %v573
  %590 = vst [vmem:[%s5 + $0x28] sm:$0xff] %v574
  %591 = vst [vmem:[%s5 + $0x30] sm:$0xff] %v575
  %592 = vst [vmem:[%s5 + $0x38] sm:$0xff] %v576
  %593 = vst [vmem:[%s5 + $0x40] sm:$0xff] %v577
  %594 = vst [vmem:[%s5 + $0x48] sm:$0xff] %v578
  %595 = vst [vmem:[%s5 + $0x50] sm:$0xff] %v579
  %596 = vst [vmem:[%s5 + $0x58] sm:$0xff] %v580
  %597 = vst [vmem:[%s5 + $0x60] sm:$0xff] %v581
  %598 = vst [vmem:[%s5 + $0x68] sm:$0xff] %v582
  %599 = vst [vmem:[%s5 + $0x70] sm:$0xff] %v583
  %600 = vst [vmem:[%s5 + $0x78] sm:$0xff] %v584
  // Predicated region
  $region22: #{binary_encoder_forward.3} parent=0 // pred_check
    _
  $region23: #{binary_encoder_forward.3} parent=0 // pred_check_branch
    %602 = sbr.rel (0) target = $region25
  $region24: #{binary_encoder_forward.3} parent=0 // pred_region
    _
  $region25: #{binary_encoder_forward.3} parent=0 // pred_fallthru
    _
  // Predicated region
  $region26: #{binary_encoder_forward.3} parent=0 // pred_check
    _
  $region27: #{binary_encoder_forward.3} parent=0 // pred_check_branch
    %604 = sbr.rel (0) target = $region29
  $region28: #{binary_encoder_forward.3} parent=0 // pred_region
    _
  $region29: #{binary_encoder_forward.3} parent=0 // pred_fallthru
    _

// kernel: binary_encoder_forward.4
$region0: #{binary_encoder_forward.4}
  #allocation0 [shape = 'u32[]', space=smem, size = 0x4, offset = 0x4, fixed_abs, tag = 'smem constant byte address 0x4 - core index']
  #allocation1 [shape = 'u32[144,128]{1,0:T(1,128)}', space=vmem, size = 0x12000, scoped, tag = 'internal scratch']
  %s0 = inlined_call_operand.vmem [shape: bf16[2,6,6,32], index: 0, kind: input, shape index: {}]
  %s1 = inlined_call_operand.vmem [shape: bf16[2,6,6,32], index: 1, kind: input, shape index: {}]
  %s2 = inlined_call_operand.vmem [shape: bf16[2,6,6,32], index: 2, kind: input, shape index: {}]
  %s3 = inlined_call_operand.vmem [shape: bf16[2,6,6,32], index: 3, kind: input, shape index: {}]
  %s4 = inlined_call_operand.vmem [shape: bf16[25,32,128], index: 4, kind: input, shape index: {}]
  %s5 = inlined_call_operand.vmem [shape: f32[1,128], index: 5, kind: input, shape index: {}]
  %s6 = inlined_call_operand.vmem [shape: f32[128,128], index: 6, kind: input, shape index: {}]
  %s7 = inlined_call_operand.vmem [shape: f32[1,128], index: 7, kind: input, shape index: {}]
  %s8 = inlined_call_operand.vmem [shape: f32[2,4,4,128], index: 8, kind: output, shape index: {}]
  %s9 = sld [smem:[#allocation0]]
  $region65: #{binary_encoder_forward.4} parent=0
    _
  %s11 = ssub.s32 1, %s9
  %s12 = scalar_select 0, %s11, %s9
  loop: start=0, step=1, limit=10
  $region2: #{binary_encoder_forward.4} parent=0 // loop_pre_header
    _
  $region3: #{binary_encoder_forward.4} parent=0 // loop_header
    %s14 = sphi 0, %s18
    %p15 = scmp.ge.s32.totalorder %s14, 10
    %s21 = sphi 0, %s33
    %s22 = sphi 0, %s29
    %s23 = sphi 0, %s21
    %s24 = sphi 0, %s22
    %s25 = sphi 0, %s23
    %s26 = sphi 0, %s24
    %s36 = sphi 0, %s38
    %s39 = sphi 0, %s36
    %s40 = sphi 0, %s39
    %s56 = sphi 0, %s40
    %s62 = sphi 0, %s64
    %s65 = sphi 0, %s62
    %s66 = sphi 0, %s65
    %s82 = sphi 0, %s66
    %s88 = sphi 0, %s90
    %s91 = sphi 0, %s88
    %s92 = sphi 0, %s91
    %s108 = sphi 0, %s92
    %s114 = sphi 0, %s116
    %s117 = sphi 0, %s114
    %s118 = sphi 0, %s117
    %s134 = sphi 0, %s118
    %s138 = sphi 0, %s138
    %s140 = sphi 0, %s138
    %s141 = sphi 0, %s140
    %s155 = sphi 0, %s141
    %s159 = sphi 0, %s159
    %s161 = sphi 0, %s159
    %s162 = sphi 0, %s161
    %s176 = sphi 0, %s162
    %s180 = sphi 0, %s180
    %s182 = sphi 0, %s180
    %s183 = sphi 0, %s182
    %s197 = sphi 0, %s183
    %s201 = sphi 0, %s201
    %s203 = sphi 0, %s201
    %s204 = sphi 0, %s203
    %s218 = sphi 0, %s204
    %s226 = sphi 0, %s228
    %s229 = sphi 0, %s226
    %s230 = sphi 0, %s229
    %s246 = sphi 0, %s230
  $region4: #{binary_encoder_forward.4} parent=0 // loop_header_branch
    %17 = sbr.rel (%p15) target = $region8
  $region5: #{binary_encoder_forward.4} parent=0 // loop_body
    %s19 = ssub.s32 %s14, 1
    %s20 = ssub.s32 %s14, 2
    %s27 = sadd.s32 1, %s22
    %p28 = scmp.ge.s32.totalorder %s27, 4
    %s29 = scalar_select %p28, 0, %s27
    %s30 = sadd.s32 1, %s21
    %s31 = scalar_select %p28, %s30, %s21
    %p32 = scmp.ge.s32.totalorder %s31, 2
    %s33 = scalar_select %p32, 0, %s31
    %s34 = ssub.s32 %s21, %s33
    %p35 = scmp.eq.s32.totalorder %s34, 0
    %s37 = sadd.s32 %s36, 1
    %s38 = scalar_select %p35, %s36, %s37
    %p41 = pneg %p35
    %p42 = scmp.eq.s32.totalorder %s14, 7
    %p43 = por %p41, %p42
    %p44 = scmp.ne.s32.totalorder %s36, %s39
    %p45 = scmp.eq.s32.totalorder %s14, 0
    %p46 = por %p44, %p45
    %p47 = scmp.ne.s32.totalorder %s36, %s39
    %p48 = scmp.eq.s32.totalorder %s19, 7
    %p49 = por %p47, %p48
    %p50 = scmp.ne.s32.totalorder %s39, %s40
    %p51 = scmp.eq.s32.totalorder %s19, 0
    %p52 = por %p50, %p51
    %p53 = scmp.ne.s32.totalorder %s39, %s40
    %p54 = scmp.eq.s32.totalorder %s20, 7
    %p55 = por %p53, %p54
    %p57 = scmp.ne.s32.totalorder %s40, %s56
    %p58 = scmp.eq.s32.totalorder %s20, 0
    %p59 = por %p57, %p58
    %s60 = ssub.s32 %s21, %s33
    %p61 = scmp.eq.s32.totalorder %s60, 0
    %s63 = sadd.s32 %s62, 1
    %s64 = scalar_select %p61, %s62, %s63
    %p67 = pneg %p61
    %p68 = scmp.eq.s32.totalorder %s14, 7
    %p69 = por %p67, %p68
    %p70 = scmp.ne.s32.totalorder %s62, %s65
    %p71 = scmp.eq.s32.totalorder %s14, 0
    %p72 = por %p70, %p71
    %p73 = scmp.ne.s32.totalorder %s62, %s65
    %p74 = scmp.eq.s32.totalorder %s19, 7
    %p75 = por %p73, %p74
    %p76 = scmp.ne.s32.totalorder %s65, %s66
    %p77 = scmp.eq.s32.totalorder %s19, 0
    %p78 = por %p76, %p77
    %p79 = scmp.ne.s32.totalorder %s65, %s66
    %p80 = scmp.eq.s32.totalorder %s20, 7
    %p81 = por %p79, %p80
    %p83 = scmp.ne.s32.totalorder %s66, %s82
    %p84 = scmp.eq.s32.totalorder %s20, 0
    %p85 = por %p83, %p84
    %s86 = ssub.s32 %s21, %s33
    %p87 = scmp.eq.s32.totalorder %s86, 0
    %s89 = sadd.s32 %s88, 1
    %s90 = scalar_select %p87, %s88, %s89
    %p93 = pneg %p87
    %p94 = scmp.eq.s32.totalorder %s14, 7
    %p95 = por %p93, %p94
    %p96 = scmp.ne.s32.totalorder %s88, %s91
    %p97 = scmp.eq.s32.totalorder %s14, 0
    %p98 = por %p96, %p97
    %p99 = scmp.ne.s32.totalorder %s88, %s91
    %p100 = scmp.eq.s32.totalorder %s19, 7
    %p101 = por %p99, %p100
    %p102 = scmp.ne.s32.totalorder %s91, %s92
    %p103 = scmp.eq.s32.totalorder %s19, 0
    %p104 = por %p102, %p103
    %p105 = scmp.ne.s32.totalorder %s91, %s92
    %p106 = scmp.eq.s32.totalorder %s20, 7
    %p107 = por %p105, %p106
    %p109 = scmp.ne.s32.totalorder %s92, %s108
    %p110 = scmp.eq.s32.totalorder %s20, 0
    %p111 = por %p109, %p110
    %s112 = ssub.s32 %s21, %s33
    %p113 = scmp.eq.s32.totalorder %s112, 0
    %s115 = sadd.s32 %s114, 1
    %s116 = scalar_select %p113, %s114, %s115
    %p119 = pneg %p113
    %p120 = scmp.eq.s32.totalorder %s14, 7
    %p121 = por %p119, %p120
    %p122 = scmp.ne.s32.totalorder %s114, %s117
    %p123 = scmp.eq.s32.totalorder %s14, 0
    %p124 = por %p122, %p123
    %p125 = scmp.ne.s32.totalorder %s114, %s117
    %p126 = scmp.eq.s32.totalorder %s19, 7
    %p127 = por %p125, %p126
    %p128 = scmp.ne.s32.totalorder %s117, %s118
    %p129 = scmp.eq.s32.totalorder %s19, 0
    %p130 = por %p128, %p129
    %p131 = scmp.ne.s32.totalorder %s117, %s118
    %p132 = scmp.eq.s32.totalorder %s20, 7
    %p133 = por %p131, %p132
    %p135 = scmp.ne.s32.totalorder %s118, %s134
    %p136 = scmp.eq.s32.totalorder %s20, 0
    %p137 = por %p135, %p136
    %s139 = sadd.s32 %s138, 1
    %p142 = scmp.eq.s32.totalorder %s14, 7
    %p143 = scmp.ne.s32.totalorder %s138, %s140
    %p144 = scmp.eq.s32.totalorder %s14, 0
    %p145 = por %p143, %p144
    %p146 = scmp.ne.s32.totalorder %s138, %s140
    %p147 = scmp.eq.s32.totalorder %s19, 7
    %p148 = por %p146, %p147
    %p149 = scmp.ne.s32.totalorder %s140, %s141
    %p150 = scmp.eq.s32.totalorder %s19, 0
    %p151 = por %p149, %p150
    %p152 = scmp.ne.s32.totalorder %s140, %s141
    %p153 = scmp.eq.s32.totalorder %s20, 7
    %p154 = por %p152, %p153
    %p156 = scmp.ne.s32.totalorder %s141, %s155
    %p157 = scmp.eq.s32.totalorder %s20, 0
    %p158 = por %p156, %p157
    %s160 = sadd.s32 %s159, 1
    %p163 = scmp.eq.s32.totalorder %s14, 7
    %p164 = scmp.ne.s32.totalorder %s159, %s161
    %p165 = scmp.eq.s32.totalorder %s14, 0
    %p166 = por %p164, %p165
    %p167 = scmp.ne.s32.totalorder %s159, %s161
    %p168 = scmp.eq.s32.totalorder %s19, 7
    %p169 = por %p167, %p168
    %p170 = scmp.ne.s32.totalorder %s161, %s162
    %p171 = scmp.eq.s32.totalorder %s19, 0
    %p172 = por %p170, %p171
    %p173 = scmp.ne.s32.totalorder %s161, %s162
    %p174 = scmp.eq.s32.totalorder %s20, 7
    %p175 = por %p173, %p174
    %p177 = scmp.ne.s32.totalorder %s162, %s176
    %p178 = scmp.eq.s32.totalorder %s20, 0
    %p179 = por %p177, %p178
    %s181 = sadd.s32 %s180, 1
    %p184 = scmp.eq.s32.totalorder %s14, 7
    %p185 = scmp.ne.s32.totalorder %s180, %s182
    %p186 = scmp.eq.s32.totalorder %s14, 0
    %p187 = por %p185, %p186
    %p188 = scmp.ne.s32.totalorder %s180, %s182
    %p189 = scmp.eq.s32.totalorder %s19, 7
    %p190 = por %p188, %p189
    %p191 = scmp.ne.s32.totalorder %s182, %s183
    %p192 = scmp.eq.s32.totalorder %s19, 0
    %p193 = por %p191, %p192
    %p194 = scmp.ne.s32.totalorder %s182, %s183
    %p195 = scmp.eq.s32.totalorder %s20, 7
    %p196 = por %p194, %p195
    %p198 = scmp.ne.s32.totalorder %s183, %s197
    %p199 = scmp.eq.s32.totalorder %s20, 0
    %p200 = por %p198, %p199
    %s202 = sadd.s32 %s201, 1
    %p205 = scmp.eq.s32.totalorder %s14, 7
    %p206 = scmp.ne.s32.totalorder %s201, %s203
    %p207 = scmp.eq.s32.totalorder %s14, 0
    %p208 = por %p206, %p207
    %p209 = scmp.ne.s32.totalorder %s201, %s203
    %p210 = scmp.eq.s32.totalorder %s19, 7
    %p211 = por %p209, %p210
    %p212 = scmp.ne.s32.totalorder %s203, %s204
    %p213 = scmp.eq.s32.totalorder %s19, 0
    %p214 = por %p212, %p213
    %p215 = scmp.ne.s32.totalorder %s203, %s204
    %p216 = scmp.eq.s32.totalorder %s20, 7
    %p217 = por %p215, %p216
    %p219 = scmp.ne.s32.totalorder %s204, %s218
    %p220 = scmp.eq.s32.totalorder %s20, 0
    %p221 = por %p219, %p220
    %s222 = ssub.s32 %s21, %s33
    %s223 = ssub.s32 %s22, %s29
    %s224 = sor.u32 %s222, %s223
    %p225 = scmp.eq.s32.totalorder %s224, 0
    %s227 = sadd.s32 %s226, 1
    %s228 = scalar_select %p225, %s226, %s227
    %p231 = pneg %p225
    %p232 = scmp.eq.s32.totalorder %s14, 7
    %p233 = por %p231, %p232
    %p234 = scmp.ne.s32.totalorder %s226, %s229
    %p235 = scmp.eq.s32.totalorder %s14, 0
    %p236 = por %p234, %p235
    %p237 = scmp.ne.s32.totalorder %s226, %s229
    %p238 = scmp.eq.s32.totalorder %s19, 7
    %p239 = por %p237, %p238
    %p240 = scmp.ne.s32.totalorder %s229, %s230
    %p241 = scmp.eq.s32.totalorder %s19, 0
    %p242 = por %p240, %p241
    %p243 = scmp.ne.s32.totalorder %s229, %s230
    %p244 = scmp.eq.s32.totalorder %s20, 7
    %p245 = por %p243, %p244
    %p247 = scmp.ne.s32.totalorder %s230, %s246
    %p248 = scmp.eq.s32.totalorder %s20, 0
    %p249 = por %p247, %p248
    %p250 = scmp.le.s32.totalorder 1, %s14
    %p251 = scmp.lt.s32.totalorder %s14, 9
    %p252 = pnand %p250, %p251
    %p253 = pneg %p252
    // Predicated region
    $region9: #{binary_encoder_forward.4} parent=5 // pred_check
      _
    $region10: #{binary_encoder_forward.4} parent=5 // pred_check_branch
      %255 = sbr.rel (%p252) target = $region12
    $region11: #{binary_encoder_forward.4} parent=5 // pred_region
      %s256 = ssub.s32 %s14, 1
      // Predicated region
      $region13: #{binary_encoder_forward.4} parent=11 // pred_check
        %p257 = pneg %p151
      $region14: #{binary_encoder_forward.4} parent=11 // pred_check_branch
        %259 = sbr.rel (%p257) target = $region16
      $region15: #{binary_encoder_forward.4} parent=11 // pred_region
        _
      $region16: #{binary_encoder_forward.4} parent=11 // pred_fallthru
        _
      // Predicated region
      $region17: #{binary_encoder_forward.4} parent=11 // pred_check
        %p260 = pneg %p172
      $region18: #{binary_encoder_forward.4} parent=11 // pred_check_branch
        %262 = sbr.rel (%p260) target = $region20
      $region19: #{binary_encoder_forward.4} parent=11 // pred_region
        _
      $region20: #{binary_encoder_forward.4} parent=11 // pred_fallthru
        _
      // Predicated region
      $region21: #{binary_encoder_forward.4} parent=11 // pred_check
        %p263 = pneg %p193
      $region22: #{binary_encoder_forward.4} parent=11 // pred_check_branch
        %265 = sbr.rel (%p263) target = $region24
      $region23: #{binary_encoder_forward.4} parent=11 // pred_region
        _
      $region24: #{binary_encoder_forward.4} parent=11 // pred_fallthru
        _
      // Predicated region
      $region25: #{binary_encoder_forward.4} parent=11 // pred_check
        %p266 = pneg %p214
      $region26: #{binary_encoder_forward.4} parent=11 // pred_check_branch
        %268 = sbr.rel (%p266) target = $region28
      $region27: #{binary_encoder_forward.4} parent=11 // pred_region
        _
      $region28: #{binary_encoder_forward.4} parent=11 // pred_fallthru
        _
    $region12: #{binary_encoder_forward.4} parent=5 // pred_fallthru
      _
    %p269 = scmp.lt.s32.totalorder %s14, 8
    // Predicated region
    $region29: #{binary_encoder_forward.4} parent=5 // pred_check
      %p270 = pneg %p269
    $region30: #{binary_encoder_forward.4} parent=5 // pred_check_branch
      %272 = sbr.rel (%p270) target = $region32
    $region31: #{binary_encoder_forward.4} parent=5 // pred_region
      // Predicated region
      $region33: #{binary_encoder_forward.4} parent=31 // pred_check
        %p273 = pneg %p46
      $region34: #{binary_encoder_forward.4} parent=31 // pred_check_branch
        %275 = sbr.rel (%p273) target = $region36
      $region35: #{binary_encoder_forward.4} parent=31 // pred_region
        %p276 = scmp.lt.s32.totalorder %s21, 1
        %s277 = scalar_select %p276, %s21, 1
        %s278 = smul.addr %s277, 6
        %s279 = smul.addr %s278, 4
        %s280 = scalar_lea.vmem %s0, %s279
      $region36: #{binary_encoder_forward.4} parent=31 // pred_fallthru
        _
      // Predicated region
      $region37: #{binary_encoder_forward.4} parent=31 // pred_check
        %p281 = pneg %p72
      $region38: #{binary_encoder_forward.4} parent=31 // pred_check_branch
        %283 = sbr.rel (%p281) target = $region40
      $region39: #{binary_encoder_forward.4} parent=31 // pred_region
        %p284 = scmp.lt.s32.totalorder %s21, 1
        %s285 = scalar_select %p284, %s21, 1
        %s286 = smul.addr %s285, 6
        %s287 = smul.addr %s286, 4
        %s288 = scalar_lea.vmem %s1, %s287
      $region40: #{binary_encoder_forward.4} parent=31 // pred_fallthru
        _
      // Predicated region
      $region41: #{binary_encoder_forward.4} parent=31 // pred_check
        %p289 = pneg %p98
      $region42: #{binary_encoder_forward.4} parent=31 // pred_check_branch
        %291 = sbr.rel (%p289) target = $region44
      $region43: #{binary_encoder_forward.4} parent=31 // pred_region
        %p292 = scmp.lt.s32.totalorder %s21, 1
        %s293 = scalar_select %p292, %s21, 1
        %s294 = smul.addr %s293, 6
        %s295 = smul.addr %s294, 4
        %s296 = scalar_lea.vmem %s2, %s295
      $region44: #{binary_encoder_forward.4} parent=31 // pred_fallthru
        _
      // Predicated region
      $region45: #{binary_encoder_forward.4} parent=31 // pred_check
        %p297 = pneg %p124
      $region46: #{binary_encoder_forward.4} parent=31 // pred_check_branch
        %299 = sbr.rel (%p297) target = $region48
      $region47: #{binary_encoder_forward.4} parent=31 // pred_region
        %p300 = scmp.lt.s32.totalorder %s21, 1
        %s301 = scalar_select %p300, %s21, 1
        %s302 = smul.addr %s301, 6
        %s303 = smul.addr %s302, 4
        %s304 = scalar_lea.vmem %s3, %s303
      $region48: #{binary_encoder_forward.4} parent=31 // pred_fallthru
        _
    $region32: #{binary_encoder_forward.4} parent=5 // pred_fallthru
      _
    %p305 = scmp.le.s32.totalorder 1, %s14
    %p306 = scmp.lt.s32.totalorder %s14, 9
    %p307 = pnand %p305, %p306
    %p308 = pneg %p307
    // Predicated region
    $region49: #{binary_encoder_forward.4} parent=5 // pred_check
      _
    $region50: #{binary_encoder_forward.4} parent=5 // pred_check_branch
      %310 = sbr.rel (%p307) target = $region52
    $region51: #{binary_encoder_forward.4} parent=5 // pred_region
      %s311 = ssub.s32 %s14, 1
      %p312 = scmp.lt.s32.totalorder %s23, 1
      %s313 = scalar_select %p312, %s23, 1
      %s314 = smul.addr %s313, 6
      %s315 = smul.addr %s314, 4
      %s316 = scalar_lea.vmem %s0, %s315
      %p317 = pneg %p52
      %p318 = pneg %p49
      %p319 = scmp.lt.s32.totalorder %s23, 1
      %s320 = scalar_select %p319, %s23, 1
      %s321 = smul.addr %s320, 6
      %s322 = smul.addr %s321, 4
      %s323 = scalar_lea.vmem %s1, %s322
      %p324 = pneg %p78
      %p325 = pneg %p75
      %p326 = scmp.lt.s32.totalorder %s23, 1
      %s327 = scalar_select %p326, %s23, 1
      %s328 = smul.addr %s327, 6
      %s329 = smul.addr %s328, 4
      %s330 = scalar_lea.vmem %s2, %s329
      %p331 = pneg %p104
      %p332 = pneg %p101
      %p333 = scmp.lt.s32.totalorder %s23, 1
      %s334 = scalar_select %p333, %s23, 1
      %s335 = smul.addr %s334, 6
      %s336 = smul.addr %s335, 4
      %s337 = scalar_lea.vmem %s3, %s336
      %p338 = pneg %p130
      %p339 = pneg %p127
      %p340 = pneg %p151
      %p341 = pneg %p148
      %p342 = pneg %p172
      %p343 = pneg %p169
      %p344 = pneg %p193
      %p345 = pneg %p190
      %p346 = pneg %p214
      %p347 = pneg %p211
      %p348 = pneg %p242
      %p349 = pneg %p239
      %p350 = scmp.lt.s32.totalorder %s23, 1
      %s351 = scalar_select %p350, %s23, 1
      %p352 = scmp.lt.s32.totalorder %s24, 3
      %s353 = scalar_select %p352, %s24, 3
      %s354 = smul.addr %s351, 4
      %s355 = sadd.s32 %s353, %s354
      %s356 = smul.addr %s355, 4
      %s357 = scalar_lea.vmem %s8, %s356
      %p358 = scmp.lt.s32.totalorder %s23, 1
      %s359 = scalar_select %p358, %s23, 1
      %s360 = smul.addr %s359, 6
      %s361 = smul.addr %s360, 4
      %s362 = scalar_lea.vmem %s0, %s361
      %p363 = scmp.lt.s32.totalorder %s23, 1
      %s364 = scalar_select %p363, %s23, 1
      %s365 = smul.addr %s364, 6
      %s366 = smul.addr %s365, 4
      %s367 = scalar_lea.vmem %s1, %s366
      %p368 = scmp.lt.s32.totalorder %s23, 1
      %s369 = scalar_select %p368, %s23, 1
      %s370 = smul.addr %s369, 6
      %s371 = smul.addr %s370, 4
      %s372 = scalar_lea.vmem %s2, %s371
      %p373 = scmp.lt.s32.totalorder %s23, 1
      %s374 = scalar_select %p373, %s23, 1
      %s375 = smul.addr %s374, 6
      %s376 = smul.addr %s375, 4
      %s377 = scalar_lea.vmem %s3, %s376
      %p378 = scmp.lt.s32.totalorder %s23, 1
      %s379 = scalar_select %p378, %s23, 1
      %p380 = scmp.lt.s32.totalorder %s24, 3
      %s381 = scalar_select %p380, %s24, 3
      %s382 = smul.addr %s379, 4
      %s383 = sadd.s32 %s381, %s382
      %s384 = smul.addr %s383, 4
      %s385 = scalar_lea.vmem %s8, %s384
      %s387 = smul.addr %s24, 4
      %s388 = scalar_lea.vmem %s362, %s387
      %v389 = vld [vmem:[%s388] sm:$0x3]
      %v390 = vld [vmem:[%s4] sm:$0xf]
      %v391 = vld [vmem:[%s4 + $0x4] sm:$0xf]
      %v392 = vld [vmem:[%s4 + $0x8] sm:$0xf]
      %v393 = vld [vmem:[%s4 + $0xc] sm:$0xf]
      %s394 = smul.addr %s24, 4
      %s395 = scalar_lea.vmem %s367, %s394
      %v396 = vld [vmem:[%s395] sm:$0x3]
      %s397 = scalar_lea.vmem %s4, 16
      %v398 = vld [vmem:[%s397] sm:$0xf]
      %v399 = vld [vmem:[%s397 + $0x4] sm:$0xf]
      %v400 = vld [vmem:[%s397 + $0x8] sm:$0xf]
      %v401 = vld [vmem:[%s397 + $0xc] sm:$0xf]
      %v406 = vunpack.c.l.b16 %v398
      %v407 = vunpack.c.l.b16 %v399
      %v408 = vunpack.c.l.b16 %v400
      %v409 = vunpack.c.l.b16 %v401
      %v410 = vpack.c.b16 %v407, %v406
      %v411 = vpack.c.b16 %v409, %v408
      %vm414 = vcmask 261120
      %v416 = vsel %vm414, %v396, 0
      %418 = vmatprep.subr.bf16.mxu0 0
      %419 = vmatpush1.bf16.msra.mxu0 0
      %420 = vmatprep.subr.bf16.mxu0 0
      %421 = vmatpush1.bf16.msra.mxu0 0
      %422 = vmatprep.subr.bf16.mxu0 0
      %423 = vmatpush1.bf16.msra.mxu0 0
      %424 = vmatprep.subr.bf16.mxu0 0
      %425 = vmatpush1.bf16.msra.mxu0 0
      %426 = vmatprep.subr.bf16.mxu0 0
      %427 = vmatpush1.bf16.msra.mxu0 0
      %428 = vmatprep.subr.bf16.mxu0 0
      %429 = vmatpush1.bf16.msra.mxu0 0
      %430 = vmatprep.subr.bf16.mxu0 0
      %431 = vmatpush1.bf16.msra.mxu0 %v411
      %432 = vmatprep.subr.bf16.mxu0 0
      %433 = vmatpush1.bf16.msra.mxu0 %v410
      %434 = vmatprep.subr.bf16.mxu0 0
      %435 = vmatpush2.bf16.msra.mxu0 0
      %436 = vmatprep.subr.bf16.mxu0 0
      %437 = vmatpush2.bf16.msra.mxu0 0
      %438 = vmatprep.subr.bf16.mxu0 0
      %439 = vmatpush2.bf16.msra.mxu0 0
      %440 = vmatprep.subr.bf16.mxu0 0
      %441 = vmatpush2.bf16.msra.mxu0 0
      %442 = vmatprep.subr.bf16.mxu0 0
      %443 = vmatpush2.bf16.msra.mxu0 0
      %444 = vmatprep.subr.bf16.mxu0 0
      %445 = vmatpush2.bf16.msra.mxu0 0
      %446 = vmatprep.subr.bf16.mxu0 0
      %447 = vmatpush2.bf16.msra.mxu0 0
      %448 = vmatprep.subr.bf16.mxu0 0
      %449 = vmatpush2.bf16.msra.mxu0 0
      %450 = vmatprep.mubr.bf16.mxu0 0
      %451 = vmatmul.mubr.bf16.gmra.mxu0 %v416
      %v452 = vpop.f32.mrf.mxu0
      %v453 = vadd.f32 0.0, %v452
      %v454 = vpop.f32.mrf.mxu0
      %v455 = vpop.f32.mrf.mxu0
      %v456 = vpop.f32.mrf.mxu0
      %457 = vdwg.mxu0
      %v462 = vunpack.c.l.b16 %v390
      %v463 = vunpack.c.l.b16 %v391
      %v464 = vunpack.c.l.b16 %v392
      %v465 = vunpack.c.l.b16 %v393
      %v466 = vpack.c.b16 %v463, %v462
      %v467 = vpack.c.b16 %v465, %v464
      %v471 = vsel %vm414, %v389, 0
      %473 = vmatprep.subr.bf16.mxu0 0
      %474 = vmatpush1.bf16.msra.mxu0 0
      %475 = vmatprep.subr.bf16.mxu0 0
      %476 = vmatpush1.bf16.msra.mxu0 0
      %477 = vmatprep.subr.bf16.mxu0 0
      %478 = vmatpush1.bf16.msra.mxu0 0
      %479 = vmatprep.subr.bf16.mxu0 0
      %480 = vmatpush1.bf16.msra.mxu0 0
      %481 = vmatprep.subr.bf16.mxu0 0
      %482 = vmatpush1.bf16.msra.mxu0 0
      %483 = vmatprep.subr.bf16.mxu0 0
      %484 = vmatpush1.bf16.msra.mxu0 0
      %485 = vmatprep.subr.bf16.mxu0 0
      %486 = vmatpush1.bf16.msra.mxu0 %v467
      %487 = vmatprep.subr.bf16.mxu0 0
      %488 = vmatpush1.bf16.msra.mxu0 %v466
      %489 = vmatprep.subr.bf16.mxu0 0
      %490 = vmatpush2.bf16.msra.mxu0 0
      %491 = vmatprep.subr.bf16.mxu0 0
      %492 = vmatpush2.bf16.msra.mxu0 0
      %493 = vmatprep.subr.bf16.mxu0 0
      %494 = vmatpush2.bf16.msra.mxu0 0
      %495 = vmatprep.subr.bf16.mxu0 0
      %496 = vmatpush2.bf16.msra.mxu0 0
      %497 = vmatprep.subr.bf16.mxu0 0
      %498 = vmatpush2.bf16.msra.mxu0 0
      %499 = vmatprep.subr.bf16.mxu0 0
      %500 = vmatpush2.bf16.msra.mxu0 0
      %501 = vmatprep.subr.bf16.mxu0 0
      %502 = vmatpush2.bf16.msra.mxu0 0
      %503 = vmatprep.subr.bf16.mxu0 0
      %504 = vmatpush2.bf16.msra.mxu0 0
      %505 = vmatprep.mubr.bf16.mxu0 0
      %506 = vmatmul.mubr.bf16.gmra.mxu0 %v471
      %v507 = vpop.f32.mrf.mxu0
      %v508 = vadd.f32 %v453, %v507
      %v509 = vpop.f32.mrf.mxu0
      %v510 = vpop.f32.mrf.mxu0
      %v511 = vpop.f32.mrf.mxu0
      %512 = vdwg.mxu0
      %v513 = vld [vmem:[%s388] sm:$0x7]
      %s514 = scalar_lea.vmem %s4, 32
      %v515 = vld [vmem:[%s514] sm:$0xf]
      %v516 = vld [vmem:[%s514 + $0x4] sm:$0xf]
      %v517 = vld [vmem:[%s514 + $0x8] sm:$0xf]
      %v518 = vld [vmem:[%s514 + $0xc] sm:$0xf]
      %v520 = vunpack.c.l.b16 %v513
      %v521 = vpack.c.b16 %v520, %v520
      %v523 = vshrl.u32 %v521, 16
      %v525 = vshll.u32 %v521, 16
      %v527 = vrot.slane %v525, 1
      %v528 = vor.u32 %v523, %v527
      %v533 = vunpack.c.l.b16 %v515
      %v534 = vunpack.c.l.b16 %v516
      %v535 = vunpack.c.l.b16 %v517
      %v536 = vunpack.c.l.b16 %v518
      %v537 = vpack.c.b16 %v534, %v533
      %v538 = vpack.c.b16 %v536, %v535
      %v542 = vsel %vm414, %v528, 0
      %544 = vmatprep.subr.bf16.mxu0 0
      %545 = vmatpush1.bf16.msra.mxu0 0
      %546 = vmatprep.subr.bf16.mxu0 0
      %547 = vmatpush1.bf16.msra.mxu0 0
      %548 = vmatprep.subr.bf16.mxu0 0
      %549 = vmatpush1.bf16.msra.mxu0 0
      %550 = vmatprep.subr.bf16.mxu0 0
      %551 = vmatpush1.bf16.msra.mxu0 0
      %552 = vmatprep.subr.bf16.mxu0 0
      %553 = vmatpush1.bf16.msra.mxu0 0
      %554 = vmatprep.subr.bf16.mxu0 0
      %555 = vmatpush1.bf16.msra.mxu0 0
      %556 = vmatprep.subr.bf16.mxu0 0
      %557 = vmatpush1.bf16.msra.mxu0 %v538
      %558 = vmatprep.subr.bf16.mxu0 0
      %559 = vmatpush1.bf16.msra.mxu0 %v537
      %560 = vmatprep.subr.bf16.mxu0 0
      %561 = vmatpush2.bf16.msra.mxu0 0
      %562 = vmatprep.subr.bf16.mxu0 0
      %563 = vmatpush2.bf16.msra.mxu0 0
      %564 = vmatprep.subr.bf16.mxu0 0
      %565 = vmatpush2.bf16.msra.mxu0 0
      %566 = vmatprep.subr.bf16.mxu0 0
      %567 = vmatpush2.bf16.msra.mxu0 0
      %568 = vmatprep.subr.bf16.mxu0 0
      %569 = vmatpush2.bf16.msra.mxu0 0
      %570 = vmatprep.subr.bf16.mxu0 0
      %571 = vmatpush2.bf16.msra.mxu0 0
      %572 = vmatprep.subr.bf16.mxu0 0
      %573 = vmatpush2.bf16.msra.mxu0 0
      %574 = vmatprep.subr.bf16.mxu0 0
      %575 = vmatpush2.bf16.msra.mxu0 0
      %576 = vmatprep.mubr.bf16.mxu0 0
      %577 = vmatmul.mubr.bf16.gmra.mxu0 %v542
      %v578 = vpop.f32.mrf.mxu0
      %v579 = vadd.f32 0.0, %v578
      %v580 = vpop.f32.mrf.mxu0
      %v581 = vpop.f32.mrf.mxu0
      %v582 = vpop.f32.mrf.mxu0
      %583 = vdwg.mxu0
      %v584 = vadd.f32 %v508, %v579
      %v585 = vld [vmem:[%s395] sm:$0x7]
      %s586 = scalar_lea.vmem %s4, 48
      %v587 = vld [vmem:[%s586] sm:$0xf]
      %v588 = vld [vmem:[%s586 + $0x4] sm:$0xf]
      %v589 = vld [vmem:[%s586 + $0x8] sm:$0xf]
      %v590 = vld [vmem:[%s586 + $0xc] sm:$0xf]
      %v592 = vunpack.c.l.b16 %v585
      %v593 = vpack.c.b16 %v592, %v592
      %v595 = vshrl.u32 %v593, 16
      %v597 = vshll.u32 %v593, 16
      %v599 = vrot.slane %v597, 1
      %v600 = vor.u32 %v595, %v599
      %v605 = vunpack.c.l.b16 %v587
      %v606 = vunpack.c.l.b16 %v588
      %v607 = vunpack.c.l.b16 %v589
      %v608 = vunpack.c.l.b16 %v590
      %v609 = vpack.c.b16 %v606, %v605
      %v610 = vpack.c.b16 %v608, %v607
      %v614 = vsel %vm414, %v600, 0
      %616 = vmatprep.subr.bf16.mxu0 0
      %617 = vmatpush1.bf16.msra.mxu0 0
      %618 = vmatprep.subr.bf16.mxu0 0
      %619 = vmatpush1.bf16.msra.mxu0 0
      %620 = vmatprep.subr.bf16.mxu0 0
      %621 = vmatpush1.bf16.msra.mxu0 0
      %622 = vmatprep.subr.bf16.mxu0 0
      %623 = vmatpush1.bf16.msra.mxu0 0
      %624 = vmatprep.subr.bf16.mxu0 0
      %625 = vmatpush1.bf16.msra.mxu0 0
      %626 = vmatprep.subr.bf16.mxu0 0
      %627 = vmatpush1.bf16.msra.mxu0 0
      %628 = vmatprep.subr.bf16.mxu0 0
      %629 = vmatpush1.bf16.msra.mxu0 %v610
      %630 = vmatprep.subr.bf16.mxu0 0
      %631 = vmatpush1.bf16.msra.mxu0 %v609
      %632 = vmatprep.subr.bf16.mxu0 0
      %633 = vmatpush2.bf16.msra.mxu0 0
      %634 = vmatprep.subr.bf16.mxu0 0
      %635 = vmatpush2.bf16.msra.mxu0 0
      %636 = vmatprep.subr.bf16.mxu0 0
      %637 = vmatpush2.bf16.msra.mxu0 0
      %638 = vmatprep.subr.bf16.mxu0 0
      %639 = vmatpush2.bf16.msra.mxu0 0
      %640 = vmatprep.subr.bf16.mxu0 0
      %641 = vmatpush2.bf16.msra.mxu0 0
      %642 = vmatprep.subr.bf16.mxu0 0
      %643 = vmatpush2.bf16.msra.mxu0 0
      %644 = vmatprep.subr.bf16.mxu0 0
      %645 = vmatpush2.bf16.msra.mxu0 0
      %646 = vmatprep.subr.bf16.mxu0 0
      %647 = vmatpush2.bf16.msra.mxu0 0
      %648 = vmatprep.mubr.bf16.mxu0 0
      %649 = vmatmul.mubr.bf16.gmra.mxu0 %v614
      %v650 = vpop.f32.mrf.mxu0
      %v651 = vadd.f32 0.0, %v650
      %v652 = vpop.f32.mrf.mxu0
      %v653 = vpop.f32.mrf.mxu0
      %v654 = vpop.f32.mrf.mxu0
      %655 = vdwg.mxu0
      %v656 = vadd.f32 %v584, %v651
      %v657 = vld [vmem:[%s388] sm:$0x6]
      %s658 = scalar_lea.vmem %s4, 64
      %v659 = vld [vmem:[%s658] sm:$0xf]
      %v660 = vld [vmem:[%s658 + $0x4] sm:$0xf]
      %v661 = vld [vmem:[%s658 + $0x8] sm:$0xf]
      %v662 = vld [vmem:[%s658 + $0xc] sm:$0xf]
      %v664 = vunpack.c.l.b16 %v657
      %v665 = vpack.c.b16 %v664, %v664
      %v666 = vrot.slane %v665, 1
      %v671 = vunpack.c.l.b16 %v659
      %v672 = vunpack.c.l.b16 %v660
      %v673 = vunpack.c.l.b16 %v661
      %v674 = vunpack.c.l.b16 %v662
      %v675 = vpack.c.b16 %v672, %v671
      %v676 = vpack.c.b16 %v674, %v673
      %v680 = vsel %vm414, %v666, 0
      %682 = vmatprep.subr.bf16.mxu0 0
      %683 = vmatpush1.bf16.msra.mxu0 0
      %684 = vmatprep.subr.bf16.mxu0 0
      %685 = vmatpush1.bf16.msra.mxu0 0
      %686 = vmatprep.subr.bf16.mxu0 0
      %687 = vmatpush1.bf16.msra.mxu0 0
      %688 = vmatprep.subr.bf16.mxu0 0
      %689 = vmatpush1.bf16.msra.mxu0 0
      %690 = vmatprep.subr.bf16.mxu0 0
      %691 = vmatpush1.bf16.msra.mxu0 0
      %692 = vmatprep.subr.bf16.mxu0 0
      %693 = vmatpush1.bf16.msra.mxu0 0
      %694 = vmatprep.subr.bf16.mxu0 0
      %695 = vmatpush1.bf16.msra.mxu0 %v676
      %696 = vmatprep.subr.bf16.mxu0 0
      %697 = vmatpush1.bf16.msra.mxu0 %v675
      %698 = vmatprep.subr.bf16.mxu0 0
      %699 = vmatpush2.bf16.msra.mxu0 0
      %700 = vmatprep.subr.bf16.mxu0 0
      %701 = vmatpush2.bf16.msra.mxu0 0
      %702 = vmatprep.subr.bf16.mxu0 0
      %703 = vmatpush2.bf16.msra.mxu0 0
      %704 = vmatprep.subr.bf16.mxu0 0
      %705 = vmatpush2.bf16.msra.mxu0 0
      %706 = vmatprep.subr.bf16.mxu0 0
      %707 = vmatpush2.bf16.msra.mxu0 0
      %708 = vmatprep.subr.bf16.mxu0 0
      %709 = vmatpush2.bf16.msra.mxu0 0
      %710 = vmatprep.subr.bf16.mxu0 0
      %711 = vmatpush2.bf16.msra.mxu0 0
      %712 = vmatprep.subr.bf16.mxu0 0
      %713 = vmatpush2.bf16.msra.mxu0 0
      %714 = vmatprep.mubr.bf16.mxu0 0
      %715 = vmatmul.mubr.bf16.gmra.mxu0 %v680
      %v716 = vpop.f32.mrf.mxu0
      %v717 = vadd.f32 0.0, %v716
      %v718 = vpop.f32.mrf.mxu0
      %v719 = vpop.f32.mrf.mxu0
      %v720 = vpop.f32.mrf.mxu0
      %721 = vdwg.mxu0
      %v722 = vadd.f32 %v656, %v717
      %s723 = smul.addr %s24, 4
      %s724 = scalar_lea.vmem %s372, %s723
      %v725 = vld [vmem:[%s724] sm:$0x3]
      %s726 = scalar_lea.vmem %s4, 80
      %v727 = vld [vmem:[%s726] sm:$0xf]
      %v728 = vld [vmem:[%s726 + $0x4] sm:$0xf]
      %v729 = vld [vmem:[%s726 + $0x8] sm:$0xf]
      %v730 = vld [vmem:[%s726 + $0xc] sm:$0xf]
      %v735 = vunpack.c.l.b16 %v727
      %v736 = vunpack.c.l.b16 %v728
      %v737 = vunpack.c.l.b16 %v729
      %v738 = vunpack.c.l.b16 %v730
      %v739 = vpack.c.b16 %v736, %v735
      %v740 = vpack.c.b16 %v738, %v737
      %v744 = vsel %vm414, %v725, 0
      %746 = vmatprep.subr.bf16.mxu0 0
      %747 = vmatpush1.bf16.msra.mxu0 0
      %748 = vmatprep.subr.bf16.mxu0 0
      %749 = vmatpush1.bf16.msra.mxu0 0
      %750 = vmatprep.subr.bf16.mxu0 0
      %751 = vmatpush1.bf16.msra.mxu0 0
      %752 = vmatprep.subr.bf16.mxu0 0
      %753 = vmatpush1.bf16.msra.mxu0 0
      %754 = vmatprep.subr.bf16.mxu0 0
      %755 = vmatpush1.bf16.msra.mxu0 0
      %756 = vmatprep.subr.bf16.mxu0 0
      %757 = vmatpush1.bf16.msra.mxu0 0
      %758 = vmatprep.subr.bf16.mxu0 0
      %759 = vmatpush1.bf16.msra.mxu0 %v740
      %760 = vmatprep.subr.bf16.mxu0 0
      %761 = vmatpush1.bf16.msra.mxu0 %v739
      %762 = vmatprep.subr.bf16.mxu0 0
      %763 = vmatpush2.bf16.msra.mxu0 0
      %764 = vmatprep.subr.bf16.mxu0 0
      %765 = vmatpush2.bf16.msra.mxu0 0
      %766 = vmatprep.subr.bf16.mxu0 0
      %767 = vmatpush2.bf16.msra.mxu0 0
      %768 = vmatprep.subr.bf16.mxu0 0
      %769 = vmatpush2.bf16.msra.mxu0 0
      %770 = vmatprep.subr.bf16.mxu0 0
      %771 = vmatpush2.bf16.msra.mxu0 0
      %772 = vmatprep.subr.bf16.mxu0 0
      %773 = vmatpush2.bf16.msra.mxu0 0
      %774 = vmatprep.subr.bf16.mxu0 0
      %775 = vmatpush2.bf16.msra.mxu0 0
      %776 = vmatprep.subr.bf16.mxu0 0
      %777 = vmatpush2.bf16.msra.mxu0 0
      %778 = vmatprep.mubr.bf16.mxu0 0
      %779 = vmatmul.mubr.bf16.gmra.mxu0 %v744
      %v780 = vpop.f32.mrf.mxu0
      %v781 = vadd.f32 0.0, %v780
      %v782 = vpop.f32.mrf.mxu0
      %v783 = vpop.f32.mrf.mxu0
      %v784 = vpop.f32.mrf.mxu0
      %785 = vdwg.mxu0
      %v786 = vadd.f32 %v722, %v781
      %s787 = smul.addr %s24, 4
      %s788 = scalar_lea.vmem %s377, %s787
      %v789 = vld [vmem:[%s788] sm:$0x3]
      %s790 = scalar_lea.vmem %s4, 96
      %v791 = vld [vmem:[%s790] sm:$0xf]
      %v792 = vld [vmem:[%s790 + $0x4] sm:$0xf]
      %v793 = vld [vmem:[%s790 + $0x8] sm:$0xf]
      %v794 = vld [vmem:[%s790 + $0xc] sm:$0xf]
      %v799 = vunpack.c.l.b16 %v791
      %v800 = vunpack.c.l.b16 %v792
      %v801 = vunpack.c.l.b16 %v793
      %v802 = vunpack.c.l.b16 %v794
      %v803 = vpack.c.b16 %v800, %v799
      %v804 = vpack.c.b16 %v802, %v801
      %v808 = vsel %vm414, %v789, 0
      %810 = vmatprep.subr.bf16.mxu0 0
      %811 = vmatpush1.bf16.msra.mxu0 0
      %812 = vmatprep.subr.bf16.mxu0 0
      %813 = vmatpush1.bf16.msra.mxu0 0
      %814 = vmatprep.subr.bf16.mxu0 0
      %815 = vmatpush1.bf16.msra.mxu0 0
      %816 = vmatprep.subr.bf16.mxu0 0
      %817 = vmatpush1.bf16.msra.mxu0 0
      %818 = vmatprep.subr.bf16.mxu0 0
      %819 = vmatpush1.bf16.msra.mxu0 0
      %820 = vmatprep.subr.bf16.mxu0 0
      %821 = vmatpush1.bf16.msra.mxu0 0
      %822 = vmatprep.subr.bf16.mxu0 0
      %823 = vmatpush1.bf16.msra.mxu0 %v804
      %824 = vmatprep.subr.bf16.mxu0 0
      %825 = vmatpush1.bf16.msra.mxu0 %v803
      %826 = vmatprep.subr.bf16.mxu0 0
      %827 = vmatpush2.bf16.msra.mxu0 0
      %828 = vmatprep.subr.bf16.mxu0 0
      %829 = vmatpush2.bf16.msra.mxu0 0
      %830 = vmatprep.subr.bf16.mxu0 0
      %831 = vmatpush2.bf16.msra.mxu0 0
      %832 = vmatprep.subr.bf16.mxu0 0
      %833 = vmatpush2.bf16.msra.mxu0 0
      %834 = vmatprep.subr.bf16.mxu0 0
      %835 = vmatpush2.bf16.msra.mxu0 0
      %836 = vmatprep.subr.bf16.mxu0 0
      %837 = vmatpush2.bf16.msra.mxu0 0
      %838 = vmatprep.subr.bf16.mxu0 0
      %839 = vmatpush2.bf16.msra.mxu0 0
      %840 = vmatprep.subr.bf16.mxu0 0
      %841 = vmatpush2.bf16.msra.mxu0 0
      %842 = vmatprep.mubr.bf16.mxu0 0
      %843 = vmatmul.mubr.bf16.gmra.mxu0 %v808
      %v844 = vpop.f32.mrf.mxu0
      %v845 = vadd.f32 0.0, %v844
      %v846 = vpop.f32.mrf.mxu0
      %v847 = vpop.f32.mrf.mxu0
      %v848 = vpop.f32.mrf.mxu0
      %849 = vdwg.mxu0
      %v850 = vadd.f32 %v786, %v845
      %v851 = vld [vmem:[%s724] sm:$0x7]
      %s852 = scalar_lea.vmem %s4, 112
      %v853 = vld [vmem:[%s852] sm:$0xf]
      %v854 = vld [vmem:[%s852 + $0x4] sm:$0xf]
      %v855 = vld [vmem:[%s852 + $0x8] sm:$0xf]
      %v856 = vld [vmem:[%s852 + $0xc] sm:$0xf]
      %v858 = vunpack.c.l.b16 %v851
      %v859 = vpack.c.b16 %v858, %v858
      %v861 = vshrl.u32 %v859, 16
      %v863 = vshll.u32 %v859, 16
      %v865 = vrot.slane %v863, 1
      %v866 = vor.u32 %v861, %v865
      %v871 = vunpack.c.l.b16 %v853
      %v872 = vunpack.c.l.b16 %v854
      %v873 = vunpack.c.l.b16 %v855
      %v874 = vunpack.c.l.b16 %v856
      %v875 = vpack.c.b16 %v872, %v871
      %v876 = vpack.c.b16 %v874, %v873
      %v880 = vsel %vm414, %v866, 0
      %882 = vmatprep.subr.bf16.mxu0 0
      %883 = vmatpush1.bf16.msra.mxu0 0
      %884 = vmatprep.subr.bf16.mxu0 0
      %885 = vmatpush1.bf16.msra.mxu0 0
      %886 = vmatprep.subr.bf16.mxu0 0
      %887 = vmatpush1.bf16.msra.mxu0 0
      %888 = vmatprep.subr.bf16.mxu0 0
      %889 = vmatpush1.bf16.msra.mxu0 0
      %890 = vmatprep.subr.bf16.mxu0 0
      %891 = vmatpush1.bf16.msra.mxu0 0
      %892 = vmatprep.subr.bf16.mxu0 0
      %893 = vmatpush1.bf16.msra.mxu0 0
      %894 = vmatprep.subr.bf16.mxu0 0
      %895 = vmatpush1.bf16.msra.mxu0 %v876
      %896 = vmatprep.subr.bf16.mxu0 0
      %897 = vmatpush1.bf16.msra.mxu0 %v875
      %898 = vmatprep.subr.bf16.mxu0 0
      %899 = vmatpush2.bf16.msra.mxu0 0
      %900 = vmatprep.subr.bf16.mxu0 0
      %901 = vmatpush2.bf16.msra.mxu0 0
      %902 = vmatprep.subr.bf16.mxu0 0
      %903 = vmatpush2.bf16.msra.mxu0 0
      %904 = vmatprep.subr.bf16.mxu0 0
      %905 = vmatpush2.bf16.msra.mxu0 0
      %906 = vmatprep.subr.bf16.mxu0 0
      %907 = vmatpush2.bf16.msra.mxu0 0
      %908 = vmatprep.subr.bf16.mxu0 0
      %909 = vmatpush2.bf16.msra.mxu0 0
      %910 = vmatprep.subr.bf16.mxu0 0
      %911 = vmatpush2.bf16.msra.mxu0 0
      %912 = vmatprep.subr.bf16.mxu0 0
      %913 = vmatpush2.bf16.msra.mxu0 0
      %914 = vmatprep.mubr.bf16.mxu0 0
      %915 = vmatmul.mubr.bf16.gmra.mxu0 %v880
      %v916 = vpop.f32.mrf.mxu0
      %v917 = vadd.f32 0.0, %v916
      %v918 = vpop.f32.mrf.mxu0
      %v919 = vpop.f32.mrf.mxu0
      %v920 = vpop.f32.mrf.mxu0
      %921 = vdwg.mxu0
      %v922 = vadd.f32 %v850, %v917
      %v923 = vld [vmem:[%s788] sm:$0x7]
      %s924 = scalar_lea.vmem %s4, 128
      %v925 = vld [vmem:[%s924] sm:$0xf]
      %v926 = vld [vmem:[%s924 + $0x4] sm:$0xf]
      %v927 = vld [vmem:[%s924 + $0x8] sm:$0xf]
      %v928 = vld [vmem:[%s924 + $0xc] sm:$0xf]
      %v930 = vunpack.c.l.b16 %v923
      %v931 = vpack.c.b16 %v930, %v930
      %v933 = vshrl.u32 %v931, 16
      %v935 = vshll.u32 %v931, 16
      %v937 = vrot.slane %v935, 1
      %v938 = vor.u32 %v933, %v937
      %v943 = vunpack.c.l.b16 %v925
      %v944 = vunpack.c.l.b16 %v926
      %v945 = vunpack.c.l.b16 %v927
      %v946 = vunpack.c.l.b16 %v928
      %v947 = vpack.c.b16 %v944, %v943
      %v948 = vpack.c.b16 %v946, %v945
      %v952 = vsel %vm414, %v938, 0
      %954 = vmatprep.subr.bf16.mxu0 0
      %955 = vmatpush1.bf16.msra.mxu0 0
      %956 = vmatprep.subr.bf16.mxu0 0
      %957 = vmatpush1.bf16.msra.mxu0 0
      %958 = vmatprep.subr.bf16.mxu0 0
      %959 = vmatpush1.bf16.msra.mxu0 0
      %960 = vmatprep.subr.bf16.mxu0 0
      %961 = vmatpush1.bf16.msra.mxu0 0
      %962 = vmatprep.subr.bf16.mxu0 0
      %963 = vmatpush1.bf16.msra.mxu0 0
      %964 = vmatprep.subr.bf16.mxu0 0
      %965 = vmatpush1.bf16.msra.mxu0 0
      %966 = vmatprep.subr.bf16.mxu0 0
      %967 = vmatpush1.bf16.msra.mxu0 %v948
      %968 = vmatprep.subr.bf16.mxu0 0
      %969 = vmatpush1.bf16.msra.mxu0 %v947
      %970 = vmatprep.subr.bf16.mxu0 0
      %971 = vmatpush2.bf16.msra.mxu0 0
      %972 = vmatprep.subr.bf16.mxu0 0
      %973 = vmatpush2.bf16.msra.mxu0 0
      %974 = vmatprep.subr.bf16.mxu0 0
      %975 = vmatpush2.bf16.msra.mxu0 0
      %976 = vmatprep.subr.bf16.mxu0 0
      %977 = vmatpush2.bf16.msra.mxu0 0
      %978 = vmatprep.subr.bf16.mxu0 0
      %979 = vmatpush2.bf16.msra.mxu0 0
      %980 = vmatprep.subr.bf16.mxu0 0
      %981 = vmatpush2.bf16.msra.mxu0 0
      %982 = vmatprep.subr.bf16.mxu0 0
      %983 = vmatpush2.bf16.msra.mxu0 0
      %984 = vmatprep.subr.bf16.mxu0 0
      %985 = vmatpush2.bf16.msra.mxu0 0
      %986 = vmatprep.mubr.bf16.mxu0 0
      %987 = vmatmul.mubr.bf16.gmra.mxu0 %v952
      %v988 = vpop.f32.mrf.mxu0
      %v989 = vadd.f32 0.0, %v988
      %v990 = vpop.f32.mrf.mxu0
      %v991 = vpop.f32.mrf.mxu0
      %v992 = vpop.f32.mrf.mxu0
      %993 = vdwg.mxu0
      %v994 = vadd.f32 %v922, %v989
      %v995 = vld [vmem:[%s724] sm:$0x6]
      %s996 = scalar_lea.vmem %s4, 144
      %v997 = vld [vmem:[%s996] sm:$0xf]
      %v998 = vld [vmem:[%s996 + $0x4] sm:$0xf]
      %v999 = vld [vmem:[%s996 + $0x8] sm:$0xf]
      %v1000 = vld [vmem:[%s996 + $0xc] sm:$0xf]
      %v1002 = vunpack.c.l.b16 %v995
      %v1003 = vpack.c.b16 %v1002, %v1002
      %v1004 = vrot.slane %v1003, 1
      %v1009 = vunpack.c.l.b16 %v997
      %v1010 = vunpack.c.l.b16 %v998
      %v1011 = vunpack.c.l.b16 %v999
      %v1012 = vunpack.c.l.b16 %v1000
      %v1013 = vpack.c.b16 %v1010, %v1009
      %v1014 = vpack.c.b16 %v1012, %v1011
      %v1018 = vsel %vm414, %v1004, 0
      %1020 = vmatprep.subr.bf16.mxu0 0
      %1021 = vmatpush1.bf16.msra.mxu0 0
      %1022 = vmatprep.subr.bf16.mxu0 0
      %1023 = vmatpush1.bf16.msra.mxu0 0
      %1024 = vmatprep.subr.bf16.mxu0 0
      %1025 = vmatpush1.bf16.msra.mxu0 0
      %1026 = vmatprep.subr.bf16.mxu0 0
      %1027 = vmatpush1.bf16.msra.mxu0 0
      %1028 = vmatprep.subr.bf16.mxu0 0
      %1029 = vmatpush1.bf16.msra.mxu0 0
      %1030 = vmatprep.subr.bf16.mxu0 0
      %1031 = vmatpush1.bf16.msra.mxu0 0
      %1032 = vmatprep.subr.bf16.mxu0 0
      %1033 = vmatpush1.bf16.msra.mxu0 %v1014
      %1034 = vmatprep.subr.bf16.mxu0 0
      %1035 = vmatpush1.bf16.msra.mxu0 %v1013
      %1036 = vmatprep.subr.bf16.mxu0 0
      %1037 = vmatpush2.bf16.msra.mxu0 0
      %1038 = vmatprep.subr.bf16.mxu0 0
      %1039 = vmatpush2.bf16.msra.mxu0 0
      %1040 = vmatprep.subr.bf16.mxu0 0
      %1041 = vmatpush2.bf16.msra.mxu0 0
      %1042 = vmatprep.subr.bf16.mxu0 0
      %1043 = vmatpush2.bf16.msra.mxu0 0
      %1044 = vmatprep.subr.bf16.mxu0 0
      %1045 = vmatpush2.bf16.msra.mxu0 0
      %1046 = vmatprep.subr.bf16.mxu0 0
      %1047 = vmatpush2.bf16.msra.mxu0 0
      %1048 = vmatprep.subr.bf16.mxu0 0
      %1049 = vmatpush2.bf16.msra.mxu0 0
      %1050 = vmatprep.subr.bf16.mxu0 0
      %1051 = vmatpush2.bf16.msra.mxu0 0
      %1052 = vmatprep.mubr.bf16.mxu0 0
      %1053 = vmatmul.mubr.bf16.gmra.mxu0 %v1018
      %v1054 = vpop.f32.mrf.mxu0
      %v1055 = vadd.f32 0.0, %v1054
      %v1056 = vpop.f32.mrf.mxu0
      %v1057 = vpop.f32.mrf.mxu0
      %v1058 = vpop.f32.mrf.mxu0
      %1059 = vdwg.mxu0
      %v1060 = vadd.f32 %v994, %v1055
      %s1061 = sadd.s32 %s24, 1
      %s1062 = smul.addr %s1061, 4
      %s1063 = scalar_lea.vmem %s362, %s1062
      %v1064 = vld [vmem:[%s1063] sm:$0x3]
      %s1065 = scalar_lea.vmem %s4, 160
      %v1066 = vld [vmem:[%s1065] sm:$0xf]
      %v1067 = vld [vmem:[%s1065 + $0x4] sm:$0xf]
      %v1068 = vld [vmem:[%s1065 + $0x8] sm:$0xf]
      %v1069 = vld [vmem:[%s1065 + $0xc] sm:$0xf]
      %v1074 = vunpack.c.l.b16 %v1066
      %v1075 = vunpack.c.l.b16 %v1067
      %v1076 = vunpack.c.l.b16 %v1068
      %v1077 = vunpack.c.l.b16 %v1069
      %v1078 = vpack.c.b16 %v1075, %v1074
      %v1079 = vpack.c.b16 %v1077, %v1076
      %v1083 = vsel %vm414, %v1064, 0
      %1085 = vmatprep.subr.bf16.mxu0 0
      %1086 = vmatpush1.bf16.msra.mxu0 0
      %1087 = vmatprep.subr.bf16.mxu0 0
      %1088 = vmatpush1.bf16.msra.mxu0 0
      %1089 = vmatprep.subr.bf16.mxu0 0
      %1090 = vmatpush1.bf16.msra.mxu0 0
      %1091 = vmatprep.subr.bf16.mxu0 0
      %1092 = vmatpush1.bf16.msra.mxu0 0
      %1093 = vmatprep.subr.bf16.mxu0 0
      %1094 = vmatpush1.bf16.msra.mxu0 0
      %1095 = vmatprep.subr.bf16.mxu0 0
      %1096 = vmatpush1.bf16.msra.mxu0 0
      %1097 = vmatprep.subr.bf16.mxu0 0
      %1098 = vmatpush1.bf16.msra.mxu0 %v1079
      %1099 = vmatprep.subr.bf16.mxu0 0
      %1100 = vmatpush1.bf16.msra.mxu0 %v1078
      %1101 = vmatprep.subr.bf16.mxu0 0
      %1102 = vmatpush2.bf16.msra.mxu0 0
      %1103 = vmatprep.subr.bf16.mxu0 0
      %1104 = vmatpush2.bf16.msra.mxu0 0
      %1105 = vmatprep.subr.bf16.mxu0 0
      %1106 = vmatpush2.bf16.msra.mxu0 0
      %1107 = vmatprep.subr.bf16.mxu0 0
      %1108 = vmatpush2.bf16.msra.mxu0 0
      %1109 = vmatprep.subr.bf16.mxu0 0
      %1110 = vmatpush2.bf16.msra.mxu0 0
      %1111 = vmatprep.subr.bf16.mxu0 0
      %1112 = vmatpush2.bf16.msra.mxu0 0
      %1113 = vmatprep.subr.bf16.mxu0 0
      %1114 = vmatpush2.bf16.msra.mxu0 0
      %1115 = vmatprep.subr.bf16.mxu0 0
      %1116 = vmatpush2.bf16.msra.mxu0 0
      %1117 = vmatprep.mubr.bf16.mxu0 0
      %1118 = vmatmul.mubr.bf16.gmra.mxu0 %v1083
      %v1119 = vpop.f32.mrf.mxu0
      %v1120 = vadd.f32 0.0, %v1119
      %v1121 = vpop.f32.mrf.mxu0
      %v1122 = vpop.f32.mrf.mxu0
      %v1123 = vpop.f32.mrf.mxu0
      %1124 = vdwg.mxu0
      %v1125 = vadd.f32 %v1060, %v1120
      %s1126 = smul.addr %s1061, 4
      %s1127 = scalar_lea.vmem %s367, %s1126
      %v1128 = vld [vmem:[%s1127] sm:$0x3]
      %s1129 = scalar_lea.vmem %s4, 176
      %v1130 = vld [vmem:[%s1129] sm:$0xf]
      %v1131 = vld [vmem:[%s1129 + $0x4] sm:$0xf]
      %v1132 = vld [vmem:[%s1129 + $0x8] sm:$0xf]
      %v1133 = vld [vmem:[%s1129 + $0xc] sm:$0xf]
      %v1138 = vunpack.c.l.b16 %v1130
      %v1139 = vunpack.c.l.b16 %v1131
      %v1140 = vunpack.c.l.b16 %v1132
      %v1141 = vunpack.c.l.b16 %v1133
      %v1142 = vpack.c.b16 %v1139, %v1138
      %v1143 = vpack.c.b16 %v1141, %v1140
      %v1147 = vsel %vm414, %v1128, 0
      %1149 = vmatprep.subr.bf16.mxu0 0
      %1150 = vmatpush1.bf16.msra.mxu0 0
      %1151 = vmatprep.subr.bf16.mxu0 0
      %1152 = vmatpush1.bf16.msra.mxu0 0
      %1153 = vmatprep.subr.bf16.mxu0 0
      %1154 = vmatpush1.bf16.msra.mxu0 0
      %1155 = vmatprep.subr.bf16.mxu0 0
      %1156 = vmatpush1.bf16.msra.mxu0 0
      %1157 = vmatprep.subr.bf16.mxu0 0
      %1158 = vmatpush1.bf16.msra.mxu0 0
      %1159 = vmatprep.subr.bf16.mxu0 0
      %1160 = vmatpush1.bf16.msra.mxu0 0
      %1161 = vmatprep.subr.bf16.mxu0 0
      %1162 = vmatpush1.bf16.msra.mxu0 %v1143
      %1163 = vmatprep.subr.bf16.mxu0 0
      %1164 = vmatpush1.bf16.msra.mxu0 %v1142
      %1165 = vmatprep.subr.bf16.mxu0 0
      %1166 = vmatpush2.bf16.msra.mxu0 0
      %1167 = vmatprep.subr.bf16.mxu0 0
      %1168 = vmatpush2.bf16.msra.mxu0 0
      %1169 = vmatprep.subr.bf16.mxu0 0
      %1170 = vmatpush2.bf16.msra.mxu0 0
      %1171 = vmatprep.subr.bf16.mxu0 0
      %1172 = vmatpush2.bf16.msra.mxu0 0
      %1173 = vmatprep.subr.bf16.mxu0 0
      %1174 = vmatpush2.bf16.msra.mxu0 0
      %1175 = vmatprep.subr.bf16.mxu0 0
      %1176 = vmatpush2.bf16.msra.mxu0 0
      %1177 = vmatprep.subr.bf16.mxu0 0
      %1178 = vmatpush2.bf16.msra.mxu0 0
      %1179 = vmatprep.subr.bf16.mxu0 0
      %1180 = vmatpush2.bf16.msra.mxu0 0
      %1181 = vmatprep.mubr.bf16.mxu0 0
      %1182 = vmatmul.mubr.bf16.gmra.mxu0 %v1147
      %v1183 = vpop.f32.mrf.mxu0
      %v1184 = vadd.f32 0.0, %v1183
      %v1185 = vpop.f32.mrf.mxu0
      %v1186 = vpop.f32.mrf.mxu0
      %v1187 = vpop.f32.mrf.mxu0
      %1188 = vdwg.mxu0
      %v1189 = vadd.f32 %v1125, %v1184
      %v1190 = vld [vmem:[%s1063] sm:$0x7]
      %s1191 = scalar_lea.vmem %s4, 192
      %v1192 = vld [vmem:[%s1191] sm:$0xf]
      %v1193 = vld [vmem:[%s1191 + $0x4] sm:$0xf]
      %v1194 = vld [vmem:[%s1191 + $0x8] sm:$0xf]
      %v1195 = vld [vmem:[%s1191 + $0xc] sm:$0xf]
      %v1197 = vunpack.c.l.b16 %v1190
      %v1198 = vpack.c.b16 %v1197, %v1197
      %v1200 = vshrl.u32 %v1198, 16
      %v1202 = vshll.u32 %v1198, 16
      %v1204 = vrot.slane %v1202, 1
      %v1205 = vor.u32 %v1200, %v1204
      %v1210 = vunpack.c.l.b16 %v1192
      %v1211 = vunpack.c.l.b16 %v1193
      %v1212 = vunpack.c.l.b16 %v1194
      %v1213 = vunpack.c.l.b16 %v1195
      %v1214 = vpack.c.b16 %v1211, %v1210
      %v1215 = vpack.c.b16 %v1213, %v1212
      %v1219 = vsel %vm414, %v1205, 0
      %1221 = vmatprep.subr.bf16.mxu0 0
      %1222 = vmatpush1.bf16.msra.mxu0 0
      %1223 = vmatprep.subr.bf16.mxu0 0
      %1224 = vmatpush1.bf16.msra.mxu0 0
      %1225 = vmatprep.subr.bf16.mxu0 0
      %1226 = vmatpush1.bf16.msra.mxu0 0
      %1227 = vmatprep.subr.bf16.mxu0 0
      %1228 = vmatpush1.bf16.msra.mxu0 0
      %1229 = vmatprep.subr.bf16.mxu0 0
      %1230 = vmatpush1.bf16.msra.mxu0 0
      %1231 = vmatprep.subr.bf16.mxu0 0
      %1232 = vmatpush1.bf16.msra.mxu0 0
      %1233 = vmatprep.subr.bf16.mxu0 0
      %1234 = vmatpush1.bf16.msra.mxu0 %v1215
      %1235 = vmatprep.subr.bf16.mxu0 0
      %1236 = vmatpush1.bf16.msra.mxu0 %v1214
      %1237 = vmatprep.subr.bf16.mxu0 0
      %1238 = vmatpush2.bf16.msra.mxu0 0
      %1239 = vmatprep.subr.bf16.mxu0 0
      %1240 = vmatpush2.bf16.msra.mxu0 0
      %1241 = vmatprep.subr.bf16.mxu0 0
      %1242 = vmatpush2.bf16.msra.mxu0 0
      %1243 = vmatprep.subr.bf16.mxu0 0
      %1244 = vmatpush2.bf16.msra.mxu0 0
      %1245 = vmatprep.subr.bf16.mxu0 0
      %1246 = vmatpush2.bf16.msra.mxu0 0
      %1247 = vmatprep.subr.bf16.mxu0 0
      %1248 = vmatpush2.bf16.msra.mxu0 0
      %1249 = vmatprep.subr.bf16.mxu0 0
      %1250 = vmatpush2.bf16.msra.mxu0 0
      %1251 = vmatprep.subr.bf16.mxu0 0
      %1252 = vmatpush2.bf16.msra.mxu0 0
      %1253 = vmatprep.mubr.bf16.mxu0 0
      %1254 = vmatmul.mubr.bf16.gmra.mxu0 %v1219
      %v1255 = vpop.f32.mrf.mxu0
      %v1256 = vadd.f32 0.0, %v1255
      %v1257 = vpop.f32.mrf.mxu0
      %v1258 = vpop.f32.mrf.mxu0
      %v1259 = vpop.f32.mrf.mxu0
      %1260 = vdwg.mxu0
      %v1261 = vadd.f32 %v1189, %v1256
      %v1262 = vld [vmem:[%s1127] sm:$0x7]
      %s1263 = scalar_lea.vmem %s4, 208
      %v1264 = vld [vmem:[%s1263] sm:$0xf]
      %v1265 = vld [vmem:[%s1263 + $0x4] sm:$0xf]
      %v1266 = vld [vmem:[%s1263 + $0x8] sm:$0xf]
      %v1267 = vld [vmem:[%s1263 + $0xc] sm:$0xf]
      %v1269 = vunpack.c.l.b16 %v1262
      %v1270 = vpack.c.b16 %v1269, %v1269
      %v1272 = vshrl.u32 %v1270, 16
      %v1274 = vshll.u32 %v1270, 16
      %v1276 = vrot.slane %v1274, 1
      %v1277 = vor.u32 %v1272, %v1276
      %v1282 = vunpack.c.l.b16 %v1264
      %v1283 = vunpack.c.l.b16 %v1265
      %v1284 = vunpack.c.l.b16 %v1266
      %v1285 = vunpack.c.l.b16 %v1267
      %v1286 = vpack.c.b16 %v1283, %v1282
      %v1287 = vpack.c.b16 %v1285, %v1284
      %v1291 = vsel %vm414, %v1277, 0
      %1293 = vmatprep.subr.bf16.mxu0 0
      %1294 = vmatpush1.bf16.msra.mxu0 0
      %1295 = vmatprep.subr.bf16.mxu0 0
      %1296 = vmatpush1.bf16.msra.mxu0 0
      %1297 = vmatprep.subr.bf16.mxu0 0
      %1298 = vmatpush1.bf16.msra.mxu0 0
      %1299 = vmatprep.subr.bf16.mxu0 0
      %1300 = vmatpush1.bf16.msra.mxu0 0
      %1301 = vmatprep.subr.bf16.mxu0 0
      %1302 = vmatpush1.bf16.msra.mxu0 0
      %1303 = vmatprep.subr.bf16.mxu0 0
      %1304 = vmatpush1.bf16.msra.mxu0 0
      %1305 = vmatprep.subr.bf16.mxu0 0
      %1306 = vmatpush1.bf16.msra.mxu0 %v1287
      %1307 = vmatprep.subr.bf16.mxu0 0
      %1308 = vmatpush1.bf16.msra.mxu0 %v1286
      %1309 = vmatprep.subr.bf16.mxu0 0
      %1310 = vmatpush2.bf16.msra.mxu0 0
      %1311 = vmatprep.subr.bf16.mxu0 0
      %1312 = vmatpush2.bf16.msra.mxu0 0
      %1313 = vmatprep.subr.bf16.mxu0 0
      %1314 = vmatpush2.bf16.msra.mxu0 0
      %1315 = vmatprep.subr.bf16.mxu0 0
      %1316 = vmatpush2.bf16.msra.mxu0 0
      %1317 = vmatprep.subr.bf16.mxu0 0
      %1318 = vmatpush2.bf16.msra.mxu0 0
      %1319 = vmatprep.subr.bf16.mxu0 0
      %1320 = vmatpush2.bf16.msra.mxu0 0
      %1321 = vmatprep.subr.bf16.mxu0 0
      %1322 = vmatpush2.bf16.msra.mxu0 0
      %1323 = vmatprep.subr.bf16.mxu0 0
      %1324 = vmatpush2.bf16.msra.mxu0 0
      %1325 = vmatprep.mubr.bf16.mxu0 0
      %1326 = vmatmul.mubr.bf16.gmra.mxu0 %v1291
      %v1327 = vpop.f32.mrf.mxu0
      %v1328 = vadd.f32 0.0, %v1327
      %v1329 = vpop.f32.mrf.mxu0
      %v1330 = vpop.f32.mrf.mxu0
      %v1331 = vpop.f32.mrf.mxu0
      %1332 = vdwg.mxu0
      %v1333 = vadd.f32 %v1261, %v1328
      %v1334 = vld [vmem:[%s1063] sm:$0x6]
      %s1335 = scalar_lea.vmem %s4, 224
      %v1336 = vld [vmem:[%s1335] sm:$0xf]
      %v1337 = vld [vmem:[%s1335 + $0x4] sm:$0xf]
      %v1338 = vld [vmem:[%s1335 + $0x8] sm:$0xf]
      %v1339 = vld [vmem:[%s1335 + $0xc] sm:$0xf]
      %v1341 = vunpack.c.l.b16 %v1334
      %v1342 = vpack.c.b16 %v1341, %v1341
      %v1343 = vrot.slane %v1342, 1
      %v1348 = vunpack.c.l.b16 %v1336
      %v1349 = vunpack.c.l.b16 %v1337
      %v1350 = vunpack.c.l.b16 %v1338
      %v1351 = vunpack.c.l.b16 %v1339
      %v1352 = vpack.c.b16 %v1349, %v1348
      %v1353 = vpack.c.b16 %v1351, %v1350
      %v1357 = vsel %vm414, %v1343, 0
      %1359 = vmatprep.subr.bf16.mxu0 0
      %1360 = vmatpush1.bf16.msra.mxu0 0
      %1361 = vmatprep.subr.bf16.mxu0 0
      %1362 = vmatpush1.bf16.msra.mxu0 0
      %1363 = vmatprep.subr.bf16.mxu0 0
      %1364 = vmatpush1.bf16.msra.mxu0 0
      %1365 = vmatprep.subr.bf16.mxu0 0
      %1366 = vmatpush1.bf16.msra.mxu0 0
      %1367 = vmatprep.subr.bf16.mxu0 0
      %1368 = vmatpush1.bf16.msra.mxu0 0
      %1369 = vmatprep.subr.bf16.mxu0 0
      %1370 = vmatpush1.bf16.msra.mxu0 0
      %1371 = vmatprep.subr.bf16.mxu0 0
      %1372 = vmatpush1.bf16.msra.mxu0 %v1353
      %1373 = vmatprep.subr.bf16.mxu0 0
      %1374 = vmatpush1.bf16.msra.mxu0 %v1352
      %1375 = vmatprep.subr.bf16.mxu0 0
      %1376 = vmatpush2.bf16.msra.mxu0 0
      %1377 = vmatprep.subr.bf16.mxu0 0
      %1378 = vmatpush2.bf16.msra.mxu0 0
      %1379 = vmatprep.subr.bf16.mxu0 0
      %1380 = vmatpush2.bf16.msra.mxu0 0
      %1381 = vmatprep.subr.bf16.mxu0 0
      %1382 = vmatpush2.bf16.msra.mxu0 0
      %1383 = vmatprep.subr.bf16.mxu0 0
      %1384 = vmatpush2.bf16.msra.mxu0 0
      %1385 = vmatprep.subr.bf16.mxu0 0
      %1386 = vmatpush2.bf16.msra.mxu0 0
      %1387 = vmatprep.subr.bf16.mxu0 0
      %1388 = vmatpush2.bf16.msra.mxu0 0
      %1389 = vmatprep.subr.bf16.mxu0 0
      %1390 = vmatpush2.bf16.msra.mxu0 0
      %1391 = vmatprep.mubr.bf16.mxu0 0
      %1392 = vmatmul.mubr.bf16.gmra.mxu0 %v1357
      %v1393 = vpop.f32.mrf.mxu0
      %v1394 = vadd.f32 0.0, %v1393
      %v1395 = vpop.f32.mrf.mxu0
      %v1396 = vpop.f32.mrf.mxu0
      %v1397 = vpop.f32.mrf.mxu0
      %1398 = vdwg.mxu0
      %v1399 = vadd.f32 %v1333, %v1394
      %s1400 = smul.addr %s1061, 4
      %s1401 = scalar_lea.vmem %s372, %s1400
      %v1402 = vld [vmem:[%s1401] sm:$0x3]
      %s1403 = scalar_lea.vmem %s4, 240
      %v1404 = vld [vmem:[%s1403] sm:$0xf]
      %v1405 = vld [vmem:[%s1403 + $0x4] sm:$0xf]
      %v1406 = vld [vmem:[%s1403 + $0x8] sm:$0xf]
      %v1407 = vld [vmem:[%s1403 + $0xc] sm:$0xf]
      %v1412 = vunpack.c.l.b16 %v1404
      %v1413 = vunpack.c.l.b16 %v1405
      %v1414 = vunpack.c.l.b16 %v1406
      %v1415 = vunpack.c.l.b16 %v1407
      %v1416 = vpack.c.b16 %v1413, %v1412
      %v1417 = vpack.c.b16 %v1415, %v1414
      %v1421 = vsel %vm414, %v1402, 0
      %1423 = vmatprep.subr.bf16.mxu0 0
      %1424 = vmatpush1.bf16.msra.mxu0 0
      %1425 = vmatprep.subr.bf16.mxu0 0
      %1426 = vmatpush1.bf16.msra.mxu0 0
      %1427 = vmatprep.subr.bf16.mxu0 0
      %1428 = vmatpush1.bf16.msra.mxu0 0
      %1429 = vmatprep.subr.bf16.mxu0 0
      %1430 = vmatpush1.bf16.msra.mxu0 0
      %1431 = vmatprep.subr.bf16.mxu0 0
      %1432 = vmatpush1.bf16.msra.mxu0 0
      %1433 = vmatprep.subr.bf16.mxu0 0
      %1434 = vmatpush1.bf16.msra.mxu0 0
      %1435 = vmatprep.subr.bf16.mxu0 0
      %1436 = vmatpush1.bf16.msra.mxu0 %v1417
      %1437 = vmatprep.subr.bf16.mxu0 0
      %1438 = vmatpush1.bf16.msra.mxu0 %v1416
      %1439 = vmatprep.subr.bf16.mxu0 0
      %1440 = vmatpush2.bf16.msra.mxu0 0
      %1441 = vmatprep.subr.bf16.mxu0 0
      %1442 = vmatpush2.bf16.msra.mxu0 0
      %1443 = vmatprep.subr.bf16.mxu0 0
      %1444 = vmatpush2.bf16.msra.mxu0 0
      %1445 = vmatprep.subr.bf16.mxu0 0
      %1446 = vmatpush2.bf16.msra.mxu0 0
      %1447 = vmatprep.subr.bf16.mxu0 0
      %1448 = vmatpush2.bf16.msra.mxu0 0
      %1449 = vmatprep.subr.bf16.mxu0 0
      %1450 = vmatpush2.bf16.msra.mxu0 0
      %1451 = vmatprep.subr.bf16.mxu0 0
      %1452 = vmatpush2.bf16.msra.mxu0 0
      %1453 = vmatprep.subr.bf16.mxu0 0
      %1454 = vmatpush2.bf16.msra.mxu0 0
      %1455 = vmatprep.mubr.bf16.mxu0 0
      %1456 = vmatmul.mubr.bf16.gmra.mxu0 %v1421
      %v1457 = vpop.f32.mrf.mxu0
      %v1458 = vadd.f32 0.0, %v1457
      %v1459 = vpop.f32.mrf.mxu0
      %v1460 = vpop.f32.mrf.mxu0
      %v1461 = vpop.f32.mrf.mxu0
      %1462 = vdwg.mxu0
      %v1463 = vadd.f32 %v1399, %v1458
      %s1464 = smul.addr %s1061, 4
      %s1465 = scalar_lea.vmem %s377, %s1464
      %v1466 = vld [vmem:[%s1465] sm:$0x3]
      %s1467 = scalar_lea.vmem %s4, 256
      %v1468 = vld [vmem:[%s1467] sm:$0xf]
      %v1469 = vld [vmem:[%s1467 + $0x4] sm:$0xf]
      %v1470 = vld [vmem:[%s1467 + $0x8] sm:$0xf]
      %v1471 = vld [vmem:[%s1467 + $0xc] sm:$0xf]
      %v1476 = vunpack.c.l.b16 %v1468
      %v1477 = vunpack.c.l.b16 %v1469
      %v1478 = vunpack.c.l.b16 %v1470
      %v1479 = vunpack.c.l.b16 %v1471
      %v1480 = vpack.c.b16 %v1477, %v1476
      %v1481 = vpack.c.b16 %v1479, %v1478
      %v1485 = vsel %vm414, %v1466, 0
      %1487 = vmatprep.subr.bf16.mxu0 0
      %1488 = vmatpush1.bf16.msra.mxu0 0
      %1489 = vmatprep.subr.bf16.mxu0 0
      %1490 = vmatpush1.bf16.msra.mxu0 0
      %1491 = vmatprep.subr.bf16.mxu0 0
      %1492 = vmatpush1.bf16.msra.mxu0 0
      %1493 = vmatprep.subr.bf16.mxu0 0
      %1494 = vmatpush1.bf16.msra.mxu0 0
      %1495 = vmatprep.subr.bf16.mxu0 0
      %1496 = vmatpush1.bf16.msra.mxu0 0
      %1497 = vmatprep.subr.bf16.mxu0 0
      %1498 = vmatpush1.bf16.msra.mxu0 0
      %1499 = vmatprep.subr.bf16.mxu0 0
      %1500 = vmatpush1.bf16.msra.mxu0 %v1481
      %1501 = vmatprep.subr.bf16.mxu0 0
      %1502 = vmatpush1.bf16.msra.mxu0 %v1480
      %1503 = vmatprep.subr.bf16.mxu0 0
      %1504 = vmatpush2.bf16.msra.mxu0 0
      %1505 = vmatprep.subr.bf16.mxu0 0
      %1506 = vmatpush2.bf16.msra.mxu0 0
      %1507 = vmatprep.subr.bf16.mxu0 0
      %1508 = vmatpush2.bf16.msra.mxu0 0
      %1509 = vmatprep.subr.bf16.mxu0 0
      %1510 = vmatpush2.bf16.msra.mxu0 0
      %1511 = vmatprep.subr.bf16.mxu0 0
      %1512 = vmatpush2.bf16.msra.mxu0 0
      %1513 = vmatprep.subr.bf16.mxu0 0
      %1514 = vmatpush2.bf16.msra.mxu0 0
      %1515 = vmatprep.subr.bf16.mxu0 0
      %1516 = vmatpush2.bf16.msra.mxu0 0
      %1517 = vmatprep.subr.bf16.mxu0 0
      %1518 = vmatpush2.bf16.msra.mxu0 0
      %1519 = vmatprep.mubr.bf16.mxu0 0
      %1520 = vmatmul.mubr.bf16.gmra.mxu0 %v1485
      %v1521 = vpop.f32.mrf.mxu0
      %v1522 = vadd.f32 0.0, %v1521
      %v1523 = vpop.f32.mrf.mxu0
      %v1524 = vpop.f32.mrf.mxu0
      %v1525 = vpop.f32.mrf.mxu0
      %1526 = vdwg.mxu0
      %v1527 = vadd.f32 %v1463, %v1522
      %v1528 = vld [vmem:[%s1401] sm:$0x7]
      %s1529 = scalar_lea.vmem %s4, 272
      %v1530 = vld [vmem:[%s1529] sm:$0xf]
      %v1531 = vld [vmem:[%s1529 + $0x4] sm:$0xf]
      %v1532 = vld [vmem:[%s1529 + $0x8] sm:$0xf]
      %v1533 = vld [vmem:[%s1529 + $0xc] sm:$0xf]
      %v1535 = vunpack.c.l.b16 %v1528
      %v1536 = vpack.c.b16 %v1535, %v1535
      %v1538 = vshrl.u32 %v1536, 16
      %v1540 = vshll.u32 %v1536, 16
      %v1542 = vrot.slane %v1540, 1
      %v1543 = vor.u32 %v1538, %v1542
      %v1548 = vunpack.c.l.b16 %v1530
      %v1549 = vunpack.c.l.b16 %v1531
      %v1550 = vunpack.c.l.b16 %v1532
      %v1551 = vunpack.c.l.b16 %v1533
      %v1552 = vpack.c.b16 %v1549, %v1548
      %v1553 = vpack.c.b16 %v1551, %v1550
      %v1557 = vsel %vm414, %v1543, 0
      %1559 = vmatprep.subr.bf16.mxu0 0
      %1560 = vmatpush1.bf16.msra.mxu0 0
      %1561 = vmatprep.subr.bf16.mxu0 0
      %1562 = vmatpush1.bf16.msra.mxu0 0
      %1563 = vmatprep.subr.bf16.mxu0 0
      %1564 = vmatpush1.bf16.msra.mxu0 0
      %1565 = vmatprep.subr.bf16.mxu0 0
      %1566 = vmatpush1.bf16.msra.mxu0 0
      %1567 = vmatprep.subr.bf16.mxu0 0
      %1568 = vmatpush1.bf16.msra.mxu0 0
      %1569 = vmatprep.subr.bf16.mxu0 0
      %1570 = vmatpush1.bf16.msra.mxu0 0
      %1571 = vmatprep.subr.bf16.mxu0 0
      %1572 = vmatpush1.bf16.msra.mxu0 %v1553
      %1573 = vmatprep.subr.bf16.mxu0 0
      %1574 = vmatpush1.bf16.msra.mxu0 %v1552
      %1575 = vmatprep.subr.bf16.mxu0 0
      %1576 = vmatpush2.bf16.msra.mxu0 0
      %1577 = vmatprep.subr.bf16.mxu0 0
      %1578 = vmatpush2.bf16.msra.mxu0 0
      %1579 = vmatprep.subr.bf16.mxu0 0
      %1580 = vmatpush2.bf16.msra.mxu0 0
      %1581 = vmatprep.subr.bf16.mxu0 0
      %1582 = vmatpush2.bf16.msra.mxu0 0
      %1583 = vmatprep.subr.bf16.mxu0 0
      %1584 = vmatpush2.bf16.msra.mxu0 0
      %1585 = vmatprep.subr.bf16.mxu0 0
      %1586 = vmatpush2.bf16.msra.mxu0 0
      %1587 = vmatprep.subr.bf16.mxu0 0
      %1588 = vmatpush2.bf16.msra.mxu0 0
      %1589 = vmatprep.subr.bf16.mxu0 0
      %1590 = vmatpush2.bf16.msra.mxu0 0
      %1591 = vmatprep.mubr.bf16.mxu0 0
      %1592 = vmatmul.mubr.bf16.gmra.mxu0 %v1557
      %v1593 = vpop.f32.mrf.mxu0
      %v1594 = vadd.f32 0.0, %v1593
      %v1595 = vpop.f32.mrf.mxu0
      %v1596 = vpop.f32.mrf.mxu0
      %v1597 = vpop.f32.mrf.mxu0
      %1598 = vdwg.mxu0
      %v1599 = vadd.f32 %v1527, %v1594
      %v1600 = vld [vmem:[%s1465] sm:$0x7]
      %s1601 = scalar_lea.vmem %s4, 288
      %v1602 = vld [vmem:[%s1601] sm:$0xf]
      %v1603 = vld [vmem:[%s1601 + $0x4] sm:$0xf]
      %v1604 = vld [vmem:[%s1601 + $0x8] sm:$0xf]
      %v1605 = vld [vmem:[%s1601 + $0xc] sm:$0xf]
      %v1607 = vunpack.c.l.b16 %v1600
      %v1608 = vpack.c.b16 %v1607, %v1607
      %v1610 = vshrl.u32 %v1608, 16
      %v1612 = vshll.u32 %v1608, 16
      %v1614 = vrot.slane %v1612, 1
      %v1615 = vor.u32 %v1610, %v1614
      %v1620 = vunpack.c.l.b16 %v1602
      %v1621 = vunpack.c.l.b16 %v1603
      %v1622 = vunpack.c.l.b16 %v1604
      %v1623 = vunpack.c.l.b16 %v1605
      %v1624 = vpack.c.b16 %v1621, %v1620
      %v1625 = vpack.c.b16 %v1623, %v1622
      %v1629 = vsel %vm414, %v1615, 0
      %1631 = vmatprep.subr.bf16.mxu0 0
      %1632 = vmatpush1.bf16.msra.mxu0 0
      %1633 = vmatprep.subr.bf16.mxu0 0
      %1634 = vmatpush1.bf16.msra.mxu0 0
      %1635 = vmatprep.subr.bf16.mxu0 0
      %1636 = vmatpush1.bf16.msra.mxu0 0
      %1637 = vmatprep.subr.bf16.mxu0 0
      %1638 = vmatpush1.bf16.msra.mxu0 0
      %1639 = vmatprep.subr.bf16.mxu0 0
      %1640 = vmatpush1.bf16.msra.mxu0 0
      %1641 = vmatprep.subr.bf16.mxu0 0
      %1642 = vmatpush1.bf16.msra.mxu0 0
      %1643 = vmatprep.subr.bf16.mxu0 0
      %1644 = vmatpush1.bf16.msra.mxu0 %v1625
      %1645 = vmatprep.subr.bf16.mxu0 0
      %1646 = vmatpush1.bf16.msra.mxu0 %v1624
      %1647 = vmatprep.subr.bf16.mxu0 0
      %1648 = vmatpush2.bf16.msra.mxu0 0
      %1649 = vmatprep.subr.bf16.mxu0 0
      %1650 = vmatpush2.bf16.msra.mxu0 0
      %1651 = vmatprep.subr.bf16.mxu0 0
      %1652 = vmatpush2.bf16.msra.mxu0 0
      %1653 = vmatprep.subr.bf16.mxu0 0
      %1654 = vmatpush2.bf16.msra.mxu0 0
      %1655 = vmatprep.subr.bf16.mxu0 0
      %1656 = vmatpush2.bf16.msra.mxu0 0
      %1657 = vmatprep.subr.bf16.mxu0 0
      %1658 = vmatpush2.bf16.msra.mxu0 0
      %1659 = vmatprep.subr.bf16.mxu0 0
      %1660 = vmatpush2.bf16.msra.mxu0 0
      %1661 = vmatprep.subr.bf16.mxu0 0
      %1662 = vmatpush2.bf16.msra.mxu0 0
      %1663 = vmatprep.mubr.bf16.mxu0 0
      %1664 = vmatmul.mubr.bf16.gmra.mxu0 %v1629
      %v1665 = vpop.f32.mrf.mxu0
      %v1666 = vadd.f32 0.0, %v1665
      %v1667 = vpop.f32.mrf.mxu0
      %v1668 = vpop.f32.mrf.mxu0
      %v1669 = vpop.f32.mrf.mxu0
      %1670 = vdwg.mxu0
      %v1671 = vadd.f32 %v1599, %v1666
      %v1672 = vld [vmem:[%s1401] sm:$0x6]
      %s1673 = scalar_lea.vmem %s4, 304
      %v1674 = vld [vmem:[%s1673] sm:$0xf]
      %v1675 = vld [vmem:[%s1673 + $0x4] sm:$0xf]
      %v1676 = vld [vmem:[%s1673 + $0x8] sm:$0xf]
      %v1677 = vld [vmem:[%s1673 + $0xc] sm:$0xf]
      %v1679 = vunpack.c.l.b16 %v1672
      %v1680 = vpack.c.b16 %v1679, %v1679
      %v1681 = vrot.slane %v1680, 1
      %v1686 = vunpack.c.l.b16 %v1674
      %v1687 = vunpack.c.l.b16 %v1675
      %v1688 = vunpack.c.l.b16 %v1676
      %v1689 = vunpack.c.l.b16 %v1677
      %v1690 = vpack.c.b16 %v1687, %v1686
      %v1691 = vpack.c.b16 %v1689, %v1688
      %v1695 = vsel %vm414, %v1681, 0
      %1697 = vmatprep.subr.bf16.mxu0 0
      %1698 = vmatpush1.bf16.msra.mxu0 0
      %1699 = vmatprep.subr.bf16.mxu0 0
      %1700 = vmatpush1.bf16.msra.mxu0 0
      %1701 = vmatprep.subr.bf16.mxu0 0
      %1702 = vmatpush1.bf16.msra.mxu0 0
      %1703 = vmatprep.subr.bf16.mxu0 0
      %1704 = vmatpush1.bf16.msra.mxu0 0
      %1705 = vmatprep.subr.bf16.mxu0 0
      %1706 = vmatpush1.bf16.msra.mxu0 0
      %1707 = vmatprep.subr.bf16.mxu0 0
      %1708 = vmatpush1.bf16.msra.mxu0 0
      %1709 = vmatprep.subr.bf16.mxu0 0
      %1710 = vmatpush1.bf16.msra.mxu0 %v1691
      %1711 = vmatprep.subr.bf16.mxu0 0
      %1712 = vmatpush1.bf16.msra.mxu0 %v1690
      %1713 = vmatprep.subr.bf16.mxu0 0
      %1714 = vmatpush2.bf16.msra.mxu0 0
      %1715 = vmatprep.subr.bf16.mxu0 0
      %1716 = vmatpush2.bf16.msra.mxu0 0
      %1717 = vmatprep.subr.bf16.mxu0 0
      %1718 = vmatpush2.bf16.msra.mxu0 0
      %1719 = vmatprep.subr.bf16.mxu0 0
      %1720 = vmatpush2.bf16.msra.mxu0 0
      %1721 = vmatprep.subr.bf16.mxu0 0
      %1722 = vmatpush2.bf16.msra.mxu0 0
      %1723 = vmatprep.subr.bf16.mxu0 0
      %1724 = vmatpush2.bf16.msra.mxu0 0
      %1725 = vmatprep.subr.bf16.mxu0 0
      %1726 = vmatpush2.bf16.msra.mxu0 0
      %1727 = vmatprep.subr.bf16.mxu0 0
      %1728 = vmatpush2.bf16.msra.mxu0 0
      %1729 = vmatprep.mubr.bf16.mxu0 0
      %1730 = vmatmul.mubr.bf16.gmra.mxu0 %v1695
      %v1731 = vpop.f32.mrf.mxu0
      %v1732 = vadd.f32 0.0, %v1731
      %v1733 = vpop.f32.mrf.mxu0
      %v1734 = vpop.f32.mrf.mxu0
      %v1735 = vpop.f32.mrf.mxu0
      %1736 = vdwg.mxu0
      %v1737 = vadd.f32 %v1671, %v1732
      %s1738 = sadd.s32 %s24, 2
      %s1739 = smul.addr %s1738, 4
      %s1740 = scalar_lea.vmem %s362, %s1739
      %v1741 = vld [vmem:[%s1740] sm:$0x3]
      %s1742 = scalar_lea.vmem %s4, 320
      %v1743 = vld [vmem:[%s1742] sm:$0xf]
      %v1744 = vld [vmem:[%s1742 + $0x4] sm:$0xf]
      %v1745 = vld [vmem:[%s1742 + $0x8] sm:$0xf]
      %v1746 = vld [vmem:[%s1742 + $0xc] sm:$0xf]
      %v1751 = vunpack.c.l.b16 %v1743
      %v1752 = vunpack.c.l.b16 %v1744
      %v1753 = vunpack.c.l.b16 %v1745
      %v1754 = vunpack.c.l.b16 %v1746
      %v1755 = vpack.c.b16 %v1752, %v1751
      %v1756 = vpack.c.b16 %v1754, %v1753
      %v1760 = vsel %vm414, %v1741, 0
      %1762 = vmatprep.subr.bf16.mxu0 0
      %1763 = vmatpush1.bf16.msra.mxu0 0
      %1764 = vmatprep.subr.bf16.mxu0 0
      %1765 = vmatpush1.bf16.msra.mxu0 0
      %1766 = vmatprep.subr.bf16.mxu0 0
      %1767 = vmatpush1.bf16.msra.mxu0 0
      %1768 = vmatprep.subr.bf16.mxu0 0
      %1769 = vmatpush1.bf16.msra.mxu0 0
      %1770 = vmatprep.subr.bf16.mxu0 0
      %1771 = vmatpush1.bf16.msra.mxu0 0
      %1772 = vmatprep.subr.bf16.mxu0 0
      %1773 = vmatpush1.bf16.msra.mxu0 0
      %1774 = vmatprep.subr.bf16.mxu0 0
      %1775 = vmatpush1.bf16.msra.mxu0 %v1756
      %1776 = vmatprep.subr.bf16.mxu0 0
      %1777 = vmatpush1.bf16.msra.mxu0 %v1755
      %1778 = vmatprep.subr.bf16.mxu0 0
      %1779 = vmatpush2.bf16.msra.mxu0 0
      %1780 = vmatprep.subr.bf16.mxu0 0
      %1781 = vmatpush2.bf16.msra.mxu0 0
      %1782 = vmatprep.subr.bf16.mxu0 0
      %1783 = vmatpush2.bf16.msra.mxu0 0
      %1784 = vmatprep.subr.bf16.mxu0 0
      %1785 = vmatpush2.bf16.msra.mxu0 0
      %1786 = vmatprep.subr.bf16.mxu0 0
      %1787 = vmatpush2.bf16.msra.mxu0 0
      %1788 = vmatprep.subr.bf16.mxu0 0
      %1789 = vmatpush2.bf16.msra.mxu0 0
      %1790 = vmatprep.subr.bf16.mxu0 0
      %1791 = vmatpush2.bf16.msra.mxu0 0
      %1792 = vmatprep.subr.bf16.mxu0 0
      %1793 = vmatpush2.bf16.msra.mxu0 0
      %1794 = vmatprep.mubr.bf16.mxu0 0
      %1795 = vmatmul.mubr.bf16.gmra.mxu0 %v1760
      %v1796 = vpop.f32.mrf.mxu0
      %v1797 = vadd.f32 0.0, %v1796
      %v1798 = vpop.f32.mrf.mxu0
      %v1799 = vpop.f32.mrf.mxu0
      %v1800 = vpop.f32.mrf.mxu0
      %1801 = vdwg.mxu0
      %v1802 = vadd.f32 %v1737, %v1797
      %s1803 = smul.addr %s1738, 4
      %s1804 = scalar_lea.vmem %s367, %s1803
      %v1805 = vld [vmem:[%s1804] sm:$0x3]
      %s1806 = scalar_lea.vmem %s4, 336
      %v1807 = vld [vmem:[%s1806] sm:$0xf]
      %v1808 = vld [vmem:[%s1806 + $0x4] sm:$0xf]
      %v1809 = vld [vmem:[%s1806 + $0x8] sm:$0xf]
      %v1810 = vld [vmem:[%s1806 + $0xc] sm:$0xf]
      %v1815 = vunpack.c.l.b16 %v1807
      %v1816 = vunpack.c.l.b16 %v1808
      %v1817 = vunpack.c.l.b16 %v1809
      %v1818 = vunpack.c.l.b16 %v1810
      %v1819 = vpack.c.b16 %v1816, %v1815
      %v1820 = vpack.c.b16 %v1818, %v1817
      %v1824 = vsel %vm414, %v1805, 0
      %1826 = vmatprep.subr.bf16.mxu0 0
      %1827 = vmatpush1.bf16.msra.mxu0 0
      %1828 = vmatprep.subr.bf16.mxu0 0
      %1829 = vmatpush1.bf16.msra.mxu0 0
      %1830 = vmatprep.subr.bf16.mxu0 0
      %1831 = vmatpush1.bf16.msra.mxu0 0
      %1832 = vmatprep.subr.bf16.mxu0 0
      %1833 = vmatpush1.bf16.msra.mxu0 0
      %1834 = vmatprep.subr.bf16.mxu0 0
      %1835 = vmatpush1.bf16.msra.mxu0 0
      %1836 = vmatprep.subr.bf16.mxu0 0
      %1837 = vmatpush1.bf16.msra.mxu0 0
      %1838 = vmatprep.subr.bf16.mxu0 0
      %1839 = vmatpush1.bf16.msra.mxu0 %v1820
      %1840 = vmatprep.subr.bf16.mxu0 0
      %1841 = vmatpush1.bf16.msra.mxu0 %v1819
      %1842 = vmatprep.subr.bf16.mxu0 0
      %1843 = vmatpush2.bf16.msra.mxu0 0
      %1844 = vmatprep.subr.bf16.mxu0 0
      %1845 = vmatpush2.bf16.msra.mxu0 0
      %1846 = vmatprep.subr.bf16.mxu0 0
      %1847 = vmatpush2.bf16.msra.mxu0 0
      %1848 = vmatprep.subr.bf16.mxu0 0
      %1849 = vmatpush2.bf16.msra.mxu0 0
      %1850 = vmatprep.subr.bf16.mxu0 0
      %1851 = vmatpush2.bf16.msra.mxu0 0
      %1852 = vmatprep.subr.bf16.mxu0 0
      %1853 = vmatpush2.bf16.msra.mxu0 0
      %1854 = vmatprep.subr.bf16.mxu0 0
      %1855 = vmatpush2.bf16.msra.mxu0 0
      %1856 = vmatprep.subr.bf16.mxu0 0
      %1857 = vmatpush2.bf16.msra.mxu0 0
      %1858 = vmatprep.mubr.bf16.mxu0 0
      %1859 = vmatmul.mubr.bf16.gmra.mxu0 %v1824
      %v1860 = vpop.f32.mrf.mxu0
      %v1861 = vadd.f32 0.0, %v1860
      %v1862 = vpop.f32.mrf.mxu0
      %v1863 = vpop.f32.mrf.mxu0
      %v1864 = vpop.f32.mrf.mxu0
      %1865 = vdwg.mxu0
      %v1866 = vadd.f32 %v1802, %v1861
      %v1867 = vld [vmem:[%s1740] sm:$0x7]
      %s1868 = scalar_lea.vmem %s4, 352
      %v1869 = vld [vmem:[%s1868] sm:$0xf]
      %v1870 = vld [vmem:[%s1868 + $0x4] sm:$0xf]
      %v1871 = vld [vmem:[%s1868 + $0x8] sm:$0xf]
      %v1872 = vld [vmem:[%s1868 + $0xc] sm:$0xf]
      %v1874 = vunpack.c.l.b16 %v1867
      %v1875 = vpack.c.b16 %v1874, %v1874
      %v1877 = vshrl.u32 %v1875, 16
      %v1879 = vshll.u32 %v1875, 16
      %v1881 = vrot.slane %v1879, 1
      %v1882 = vor.u32 %v1877, %v1881
      %v1887 = vunpack.c.l.b16 %v1869
      %v1888 = vunpack.c.l.b16 %v1870
      %v1889 = vunpack.c.l.b16 %v1871
      %v1890 = vunpack.c.l.b16 %v1872
      %v1891 = vpack.c.b16 %v1888, %v1887
      %v1892 = vpack.c.b16 %v1890, %v1889
      %v1896 = vsel %vm414, %v1882, 0
      %1898 = vmatprep.subr.bf16.mxu0 0
      %1899 = vmatpush1.bf16.msra.mxu0 0
      %1900 = vmatprep.subr.bf16.mxu0 0
      %1901 = vmatpush1.bf16.msra.mxu0 0
      %1902 = vmatprep.subr.bf16.mxu0 0
      %1903 = vmatpush1.bf16.msra.mxu0 0
      %1904 = vmatprep.subr.bf16.mxu0 0
      %1905 = vmatpush1.bf16.msra.mxu0 0
      %1906 = vmatprep.subr.bf16.mxu0 0
      %1907 = vmatpush1.bf16.msra.mxu0 0
      %1908 = vmatprep.subr.bf16.mxu0 0
      %1909 = vmatpush1.bf16.msra.mxu0 0
      %1910 = vmatprep.subr.bf16.mxu0 0
      %1911 = vmatpush1.bf16.msra.mxu0 %v1892
      %1912 = vmatprep.subr.bf16.mxu0 0
      %1913 = vmatpush1.bf16.msra.mxu0 %v1891
      %1914 = vmatprep.subr.bf16.mxu0 0
      %1915 = vmatpush2.bf16.msra.mxu0 0
      %1916 = vmatprep.subr.bf16.mxu0 0
      %1917 = vmatpush2.bf16.msra.mxu0 0
      %1918 = vmatprep.subr.bf16.mxu0 0
      %1919 = vmatpush2.bf16.msra.mxu0 0
      %1920 = vmatprep.subr.bf16.mxu0 0
      %1921 = vmatpush2.bf16.msra.mxu0 0
      %1922 = vmatprep.subr.bf16.mxu0 0
      %1923 = vmatpush2.bf16.msra.mxu0 0
      %1924 = vmatprep.subr.bf16.mxu0 0
      %1925 = vmatpush2.bf16.msra.mxu0 0
      %1926 = vmatprep.subr.bf16.mxu0 0
      %1927 = vmatpush2.bf16.msra.mxu0 0
      %1928 = vmatprep.subr.bf16.mxu0 0
      %1929 = vmatpush2.bf16.msra.mxu0 0
      %1930 = vmatprep.mubr.bf16.mxu0 0
      %1931 = vmatmul.mubr.bf16.gmra.mxu0 %v1896
      %v1932 = vpop.f32.mrf.mxu0
      %v1933 = vadd.f32 0.0, %v1932
      %v1934 = vpop.f32.mrf.mxu0
      %v1935 = vpop.f32.mrf.mxu0
      %v1936 = vpop.f32.mrf.mxu0
      %1937 = vdwg.mxu0
      %v1938 = vadd.f32 %v1866, %v1933
      %v1939 = vld [vmem:[%s1804] sm:$0x7]
      %s1940 = scalar_lea.vmem %s4, 368
      %v1941 = vld [vmem:[%s1940] sm:$0xf]
      %v1942 = vld [vmem:[%s1940 + $0x4] sm:$0xf]
      %v1943 = vld [vmem:[%s1940 + $0x8] sm:$0xf]
      %v1944 = vld [vmem:[%s1940 + $0xc] sm:$0xf]
      %v1946 = vunpack.c.l.b16 %v1939
      %v1947 = vpack.c.b16 %v1946, %v1946
      %v1949 = vshrl.u32 %v1947, 16
      %v1951 = vshll.u32 %v1947, 16
      %v1953 = vrot.slane %v1951, 1
      %v1954 = vor.u32 %v1949, %v1953
      %v1959 = vunpack.c.l.b16 %v1941
      %v1960 = vunpack.c.l.b16 %v1942
      %v1961 = vunpack.c.l.b16 %v1943
      %v1962 = vunpack.c.l.b16 %v1944
      %v1963 = vpack.c.b16 %v1960, %v1959
      %v1964 = vpack.c.b16 %v1962, %v1961
      %v1968 = vsel %vm414, %v1954, 0
      %1970 = vmatprep.subr.bf16.mxu0 0
      %1971 = vmatpush1.bf16.msra.mxu0 0
      %1972 = vmatprep.subr.bf16.mxu0 0
      %1973 = vmatpush1.bf16.msra.mxu0 0
      %1974 = vmatprep.subr.bf16.mxu0 0
      %1975 = vmatpush1.bf16.msra.mxu0 0
      %1976 = vmatprep.subr.bf16.mxu0 0
      %1977 = vmatpush1.bf16.msra.mxu0 0
      %1978 = vmatprep.subr.bf16.mxu0 0
      %1979 = vmatpush1.bf16.msra.mxu0 0
      %1980 = vmatprep.subr.bf16.mxu0 0
      %1981 = vmatpush1.bf16.msra.mxu0 0
      %1982 = vmatprep.subr.bf16.mxu0 0
      %1983 = vmatpush1.bf16.msra.mxu0 %v1964
      %1984 = vmatprep.subr.bf16.mxu0 0
      %1985 = vmatpush1.bf16.msra.mxu0 %v1963
      %1986 = vmatprep.subr.bf16.mxu0 0
      %1987 = vmatpush2.bf16.msra.mxu0 0
      %1988 = vmatprep.subr.bf16.mxu0 0
      %1989 = vmatpush2.bf16.msra.mxu0 0
      %1990 = vmatprep.subr.bf16.mxu0 0
      %1991 = vmatpush2.bf16.msra.mxu0 0
      %1992 = vmatprep.subr.bf16.mxu0 0
      %1993 = vmatpush2.bf16.msra.mxu0 0
      %1994 = vmatprep.subr.bf16.mxu0 0
      %1995 = vmatpush2.bf16.msra.mxu0 0
      %1996 = vmatprep.subr.bf16.mxu0 0
      %1997 = vmatpush2.bf16.msra.mxu0 0
      %1998 = vmatprep.subr.bf16.mxu0 0
      %1999 = vmatpush2.bf16.msra.mxu0 0
      %2000 = vmatprep.subr.bf16.mxu0 0
      %2001 = vmatpush2.bf16.msra.mxu0 0
      %2002 = vmatprep.mubr.bf16.mxu0 0
      %2003 = vmatmul.mubr.bf16.gmra.mxu0 %v1968
      %v2004 = vpop.f32.mrf.mxu0
      %v2005 = vadd.f32 0.0, %v2004
      %v2006 = vpop.f32.mrf.mxu0
      %v2007 = vpop.f32.mrf.mxu0
      %v2008 = vpop.f32.mrf.mxu0
      %2009 = vdwg.mxu0
      %v2010 = vadd.f32 %v1938, %v2005
      %v2011 = vld [vmem:[%s1740] sm:$0x6]
      %s2012 = scalar_lea.vmem %s4, 384
      %v2013 = vld [vmem:[%s2012] sm:$0xf]
      %v2014 = vld [vmem:[%s2012 + $0x4] sm:$0xf]
      %v2015 = vld [vmem:[%s2012 + $0x8] sm:$0xf]
      %v2016 = vld [vmem:[%s2012 + $0xc] sm:$0xf]
      %v2018 = vunpack.c.l.b16 %v2011
      %v2019 = vpack.c.b16 %v2018, %v2018
      %v2020 = vrot.slane %v2019, 1
      %v2025 = vunpack.c.l.b16 %v2013
      %v2026 = vunpack.c.l.b16 %v2014
      %v2027 = vunpack.c.l.b16 %v2015
      %v2028 = vunpack.c.l.b16 %v2016
      %v2029 = vpack.c.b16 %v2026, %v2025
      %v2030 = vpack.c.b16 %v2028, %v2027
      %v2034 = vsel %vm414, %v2020, 0
      %2036 = vmatprep.subr.bf16.mxu0 0
      %2037 = vmatpush1.bf16.msra.mxu0 0
      %2038 = vmatprep.subr.bf16.mxu0 0
      %2039 = vmatpush1.bf16.msra.mxu0 0
      %2040 = vmatprep.subr.bf16.mxu0 0
      %2041 = vmatpush1.bf16.msra.mxu0 0
      %2042 = vmatprep.subr.bf16.mxu0 0
      %2043 = vmatpush1.bf16.msra.mxu0 0
      %2044 = vmatprep.subr.bf16.mxu0 0
      %2045 = vmatpush1.bf16.msra.mxu0 0
      %2046 = vmatprep.subr.bf16.mxu0 0
      %2047 = vmatpush1.bf16.msra.mxu0 0
      %2048 = vmatprep.subr.bf16.mxu0 0
      %2049 = vmatpush1.bf16.msra.mxu0 %v2030
      %2050 = vmatprep.subr.bf16.mxu0 0
      %2051 = vmatpush1.bf16.msra.mxu0 %v2029
      %2052 = vmatprep.subr.bf16.mxu0 0
      %2053 = vmatpush2.bf16.msra.mxu0 0
      %2054 = vmatprep.subr.bf16.mxu0 0
      %2055 = vmatpush2.bf16.msra.mxu0 0
      %2056 = vmatprep.subr.bf16.mxu0 0
      %2057 = vmatpush2.bf16.msra.mxu0 0
      %2058 = vmatprep.subr.bf16.mxu0 0
      %2059 = vmatpush2.bf16.msra.mxu0 0
      %2060 = vmatprep.subr.bf16.mxu0 0
      %2061 = vmatpush2.bf16.msra.mxu0 0
      %2062 = vmatprep.subr.bf16.mxu0 0
      %2063 = vmatpush2.bf16.msra.mxu0 0
      %2064 = vmatprep.subr.bf16.mxu0 0
      %2065 = vmatpush2.bf16.msra.mxu0 0
      %2066 = vmatprep.subr.bf16.mxu0 0
      %2067 = vmatpush2.bf16.msra.mxu0 0
      %2068 = vmatprep.mubr.bf16.mxu0 0
      %2069 = vmatmul.mubr.bf16.gmra.mxu0 %v2034
      %v2070 = vpop.f32.mrf.mxu0
      %v2071 = vadd.f32 0.0, %v2070
      %v2072 = vpop.f32.mrf.mxu0
      %v2073 = vpop.f32.mrf.mxu0
      %v2074 = vpop.f32.mrf.mxu0
      %2075 = vdwg.mxu0
      %v2076 = vadd.f32 %v2010, %v2071
      %v2077 = vld [vmem:[%s5] sm:$0x1]
      %v2079 = vlaneseq
      %v2080 = vshrl.u32 %v2079, 7
      %v2081 = vsub.s32 0, %v2080
      %v2082 = vrot.slane %v2077, %v2081
      %v2084 = vadd.f32 %v2076, %v2082
      %v2085 = vmul.f32 %v2084, %v2084
      %v2086 = vld [vmem:[%s6] sm:$0xff]
      %v2087 = vld [vmem:[%s6 + $0x8] sm:$0xff]
      %v2088 = vld [vmem:[%s6 + $0x10] sm:$0xff]
      %v2089 = vld [vmem:[%s6 + $0x18] sm:$0xff]
      %v2090 = vld [vmem:[%s6 + $0x20] sm:$0xff]
      %v2091 = vld [vmem:[%s6 + $0x28] sm:$0xff]
      %v2092 = vld [vmem:[%s6 + $0x30] sm:$0xff]
      %v2093 = vld [vmem:[%s6 + $0x38] sm:$0xff]
      %v2094 = vld [vmem:[%s6 + $0x40] sm:$0xff]
      %v2095 = vld [vmem:[%s6 + $0x48] sm:$0xff]
      %v2096 = vld [vmem:[%s6 + $0x50] sm:$0xff]
      %v2097 = vld [vmem:[%s6 + $0x58] sm:$0xff]
      %v2098 = vld [vmem:[%s6 + $0x60] sm:$0xff]
      %v2099 = vld [vmem:[%s6 + $0x68] sm:$0xff]
      %v2100 = vld [vmem:[%s6 + $0x70] sm:$0xff]
      %v2101 = vld [vmem:[%s6 + $0x78] sm:$0xff]
      %v2102 = vld [vmem:[%s7] sm:$0x1]
      %v2104 = vlaneseq
      %v2105 = vshrl.u32 %v2104, 7
      %v2106 = vsub.s32 0, %v2105
      %v2107 = vrot.slane %v2102, %v2106
      %2109 = vmatprep.subr.mxu0 0.0
      %2110 = vmatpush1.msra.mxu0 %v2101
      %2111 = vmatprep.subr.mxu0 0.0
      %2112 = vmatpush1.msra.mxu0 %v2100
      %2113 = vmatprep.subr.mxu0 0.0
      %2114 = vmatpush1.msra.mxu0 %v2099
      %2115 = vmatprep.subr.mxu0 0.0
      %2116 = vmatpush1.msra.mxu0 %v2098
      %2117 = vmatprep.subr.mxu0 0.0
      %2118 = vmatpush1.msra.mxu0 %v2097
      %2119 = vmatprep.subr.mxu0 0.0
      %2120 = vmatpush1.msra.mxu0 %v2096
      %2121 = vmatprep.subr.mxu0 0.0
      %2122 = vmatpush1.msra.mxu0 %v2095
      %2123 = vmatprep.subr.mxu0 0.0
      %2124 = vmatpush1.msra.mxu0 %v2094
      %2125 = vmatprep.subr.mxu0 0.0
      %2126 = vmatpush1.msra.mxu0 %v2093
      %2127 = vmatprep.subr.mxu0 0.0
      %2128 = vmatpush1.msra.mxu0 %v2092
      %2129 = vmatprep.subr.mxu0 0.0
      %2130 = vmatpush1.msra.mxu0 %v2091
      %2131 = vmatprep.subr.mxu0 0.0
      %2132 = vmatpush1.msra.mxu0 %v2090
      %2133 = vmatprep.subr.mxu0 0.0
      %2134 = vmatpush1.msra.mxu0 %v2089
      %2135 = vmatprep.subr.mxu0 0.0
      %2136 = vmatpush1.msra.mxu0 %v2088
      %2137 = vmatprep.subr.mxu0 0.0
      %2138 = vmatpush1.msra.mxu0 %v2087
      %2139 = vmatprep.subr.mxu0 0.0
      %2140 = vmatpush1.msra.mxu0 %v2086
      %2141 = vmatprep.subr.mxu0 0.0
      %2142 = vmatpush2.msra.mxu0 0.0
      %2143 = vmatprep.subr.mxu0 0.0
      %2144 = vmatpush2.msra.mxu0 0.0
      %2145 = vmatprep.subr.mxu0 0.0
      %2146 = vmatpush2.msra.mxu0 0.0
      %2147 = vmatprep.subr.mxu0 0.0
      %2148 = vmatpush2.msra.mxu0 0.0
      %2149 = vmatprep.subr.mxu0 0.0
      %2150 = vmatpush2.msra.mxu0 0.0
      %2151 = vmatprep.subr.mxu0 0.0
      %2152 = vmatpush2.msra.mxu0 0.0
      %2153 = vmatprep.subr.mxu0 0.0
      %2154 = vmatpush2.msra.mxu0 0.0
      %2155 = vmatprep.subr.mxu0 0.0
      %2156 = vmatpush2.msra.mxu0 0.0
      %2157 = vmatprep.subr.mxu0 0.0
      %2158 = vmatpush2.msra.mxu0 0.0
      %2159 = vmatprep.subr.mxu0 0.0
      %2160 = vmatpush2.msra.mxu0 0.0
      %2161 = vmatprep.subr.mxu0 0.0
      %2162 = vmatpush2.msra.mxu0 0.0
      %2163 = vmatprep.subr.mxu0 0.0
      %2164 = vmatpush2.msra.mxu0 0.0
      %2165 = vmatprep.subr.mxu0 0.0
      %2166 = vmatpush2.msra.mxu0 0.0
      %2167 = vmatprep.subr.mxu0 0.0
      %2168 = vmatpush2.msra.mxu0 0.0
      %2169 = vmatprep.subr.mxu0 0.0
      %2170 = vmatpush2.msra.mxu0 0.0
      %2171 = vmatprep.subr.mxu0 0.0
      %2172 = vmatpush2.msra.mxu0 0.0
      %2173 = vmatprep.mubr.f32.mxu0 0.0
      %2174 = vmatmul.mubr.f32.gmra.mxu0 %v2085
      %v2175 = vpop.f32.mrf.mxu0
      %v2176 = vadd.f32 %v2107, %v2175
      %v2177 = vpop.f32.mrf.mxu0
      %2178 = vdwg.mxu0
      %v2179 = vrsqrt.pop %v2176
      %v2180 = vmul.f32 %v2084, %v2179
      %2181 = vst [vmem:[%s385] sm:$0xf] %v2180
      %p2182 = scmp.lt.s32.totalorder %s23, 1
      %s2183 = scalar_select %p2182, %s23, 1
      %p2184 = scmp.lt.s32.totalorder %s24, 3
      %s2185 = scalar_select %p2184, %s24, 3
      %s2186 = smul.addr %s2183, 4
      %s2187 = sadd.s32 %s2185, %s2186
      %s2188 = smul.addr %s2187, 4
      %s2189 = scalar_lea.vmem %s8, %s2188
      // Predicated region
      $region53: #{binary_encoder_forward.4} parent=51 // pred_check
        %p2190 = pneg %p239
      $region54: #{binary_encoder_forward.4} parent=51 // pred_check_branch
        %2192 = sbr.rel (%p2190) target = $region56
      $region55: #{binary_encoder_forward.4} parent=51 // pred_region
        _
      $region56: #{binary_encoder_forward.4} parent=51 // pred_fallthru
        _
    $region52: #{binary_encoder_forward.4} parent=5 // pred_fallthru
      _
    %p2193 = scmp.le.s32.totalorder 2, %s14
    // Predicated region
    $region57: #{binary_encoder_forward.4} parent=5 // pred_check
      %p2194 = pneg %p2193
    $region58: #{binary_encoder_forward.4} parent=5 // pred_check_branch
      %2196 = sbr.rel (%p2194) target = $region60
    $region59: #{binary_encoder_forward.4} parent=5 // pred_region
      %s2197 = ssub.s32 %s14, 2
      // Predicated region
      $region61: #{binary_encoder_forward.4} parent=59 // pred_check
        %p2198 = pneg %p245
      $region62: #{binary_encoder_forward.4} parent=59 // pred_check_branch
        %2200 = sbr.rel (%p2198) target = $region64
      $region63: #{binary_encoder_forward.4} parent=59 // pred_region
        %p2201 = scmp.lt.s32.totalorder %s25, 1
        %s2202 = scalar_select %p2201, %s25, 1
        %p2203 = scmp.lt.s32.totalorder %s26, 3
        %s2204 = scalar_select %p2203, %s26, 3
        %s2205 = smul.addr %s2202, 4
        %s2206 = sadd.s32 %s2204, %s2205
        %s2207 = smul.addr %s2206, 4
        %s2208 = scalar_lea.vmem %s8, %s2207
      $region64: #{binary_encoder_forward.4} parent=59 // pred_fallthru
        _
    $region60: #{binary_encoder_forward.4} parent=5 // pred_fallthru
      _
  $region6: #{binary_encoder_forward.4} parent=0 // loop_footer
    %s18 = sadd.s32 1, %s14
  $region7: #{binary_encoder_forward.4} parent=0 // loop_footer_branch
    %13 = sbr.rel target = $region3
  $region8: #{binary_encoder_forward.4} parent=0 // loop_exit
    _

// kernel: binary_encoder_forward.5
$region0: #{binary_encoder_forward.5}
  #allocation0 [shape = 'u32[]', space=smem, size = 0x4, offset = 0x4, fixed_abs, tag = 'smem constant byte address 0x4 - core index']
  #allocation1 [shape = 'u32[144,128]{1,0:T(1,128)}', space=vmem, size = 0x12000, scoped, tag = 'internal scratch']
  %s0 = inlined_call_operand.vmem [shape: bf16[2,4,4,32], index: 0, kind: input, shape index: {}]
  %s1 = inlined_call_operand.vmem [shape: bf16[2,4,4,32], index: 1, kind: input, shape index: {}]
  %s2 = inlined_call_operand.vmem [shape: bf16[2,4,4,32], index: 2, kind: input, shape index: {}]
  %s3 = inlined_call_operand.vmem [shape: bf16[2,4,4,32], index: 3, kind: input, shape index: {}]
  %s4 = inlined_call_operand.vmem [shape: bf16[25,32,128], index: 4, kind: input, shape index: {}]
  %s5 = inlined_call_operand.vmem [shape: f32[2,2,2,128], index: 5, kind: output, shape index: {}]
  %s6 = sld [smem:[#allocation0]]
  $region53: #{binary_encoder_forward.5} parent=0
    _
  %s8 = ssub.s32 1, %s6
  %s9 = scalar_select 0, %s8, %s6
  loop: start=0, step=1, limit=6
  $region2: #{binary_encoder_forward.5} parent=0 // loop_pre_header
    _
  $region3: #{binary_encoder_forward.5} parent=0 // loop_header
    %s11 = sphi 0, %s15
    %p12 = scmp.ge.s32.totalorder %s11, 6
    %s18 = sphi 0, %s30
    %s19 = sphi 0, %s26
    %s20 = sphi 0, %s18
    %s21 = sphi 0, %s19
    %s22 = sphi 0, %s20
    %s23 = sphi 0, %s21
    %s33 = sphi 0, %s35
    %s36 = sphi 0, %s33
    %s37 = sphi 0, %s36
    %s53 = sphi 0, %s37
    %s59 = sphi 0, %s61
    %s62 = sphi 0, %s59
    %s63 = sphi 0, %s62
    %s79 = sphi 0, %s63
    %s85 = sphi 0, %s87
    %s88 = sphi 0, %s85
    %s89 = sphi 0, %s88
    %s105 = sphi 0, %s89
    %s111 = sphi 0, %s113
    %s114 = sphi 0, %s111
    %s115 = sphi 0, %s114
    %s131 = sphi 0, %s115
    %s135 = sphi 0, %s135
    %s137 = sphi 0, %s135
    %s138 = sphi 0, %s137
    %s152 = sphi 0, %s138
    %s160 = sphi 0, %s162
    %s163 = sphi 0, %s160
    %s164 = sphi 0, %s163
    %s180 = sphi 0, %s164
  $region4: #{binary_encoder_forward.5} parent=0 // loop_header_branch
    %14 = sbr.rel (%p12) target = $region8
  $region5: #{binary_encoder_forward.5} parent=0 // loop_body
    %s16 = ssub.s32 %s11, 1
    %s17 = ssub.s32 %s11, 2
    %s24 = sadd.s32 1, %s19
    %p25 = scmp.ge.s32.totalorder %s24, 2
    %s26 = scalar_select %p25, 0, %s24
    %s27 = sadd.s32 1, %s18
    %s28 = scalar_select %p25, %s27, %s18
    %p29 = scmp.ge.s32.totalorder %s28, 2
    %s30 = scalar_select %p29, 0, %s28
    %s31 = ssub.s32 %s18, %s30
    %p32 = scmp.eq.s32.totalorder %s31, 0
    %s34 = sadd.s32 %s33, 1
    %s35 = scalar_select %p32, %s33, %s34
    %p38 = pneg %p32
    %p39 = scmp.eq.s32.totalorder %s11, 3
    %p40 = por %p38, %p39
    %p41 = scmp.ne.s32.totalorder %s33, %s36
    %p42 = scmp.eq.s32.totalorder %s11, 0
    %p43 = por %p41, %p42
    %p44 = scmp.ne.s32.totalorder %s33, %s36
    %p45 = scmp.eq.s32.totalorder %s16, 3
    %p46 = por %p44, %p45
    %p47 = scmp.ne.s32.totalorder %s36, %s37
    %p48 = scmp.eq.s32.totalorder %s16, 0
    %p49 = por %p47, %p48
    %p50 = scmp.ne.s32.totalorder %s36, %s37
    %p51 = scmp.eq.s32.totalorder %s17, 3
    %p52 = por %p50, %p51
    %p54 = scmp.ne.s32.totalorder %s37, %s53
    %p55 = scmp.eq.s32.totalorder %s17, 0
    %p56 = por %p54, %p55
    %s57 = ssub.s32 %s18, %s30
    %p58 = scmp.eq.s32.totalorder %s57, 0
    %s60 = sadd.s32 %s59, 1
    %s61 = scalar_select %p58, %s59, %s60
    %p64 = pneg %p58
    %p65 = scmp.eq.s32.totalorder %s11, 3
    %p66 = por %p64, %p65
    %p67 = scmp.ne.s32.totalorder %s59, %s62
    %p68 = scmp.eq.s32.totalorder %s11, 0
    %p69 = por %p67, %p68
    %p70 = scmp.ne.s32.totalorder %s59, %s62
    %p71 = scmp.eq.s32.totalorder %s16, 3
    %p72 = por %p70, %p71
    %p73 = scmp.ne.s32.totalorder %s62, %s63
    %p74 = scmp.eq.s32.totalorder %s16, 0
    %p75 = por %p73, %p74
    %p76 = scmp.ne.s32.totalorder %s62, %s63
    %p77 = scmp.eq.s32.totalorder %s17, 3
    %p78 = por %p76, %p77
    %p80 = scmp.ne.s32.totalorder %s63, %s79
    %p81 = scmp.eq.s32.totalorder %s17, 0
    %p82 = por %p80, %p81
    %s83 = ssub.s32 %s18, %s30
    %p84 = scmp.eq.s32.totalorder %s83, 0
    %s86 = sadd.s32 %s85, 1
    %s87 = scalar_select %p84, %s85, %s86
    %p90 = pneg %p84
    %p91 = scmp.eq.s32.totalorder %s11, 3
    %p92 = por %p90, %p91
    %p93 = scmp.ne.s32.totalorder %s85, %s88
    %p94 = scmp.eq.s32.totalorder %s11, 0
    %p95 = por %p93, %p94
    %p96 = scmp.ne.s32.totalorder %s85, %s88
    %p97 = scmp.eq.s32.totalorder %s16, 3
    %p98 = por %p96, %p97
    %p99 = scmp.ne.s32.totalorder %s88, %s89
    %p100 = scmp.eq.s32.totalorder %s16, 0
    %p101 = por %p99, %p100
    %p102 = scmp.ne.s32.totalorder %s88, %s89
    %p103 = scmp.eq.s32.totalorder %s17, 3
    %p104 = por %p102, %p103
    %p106 = scmp.ne.s32.totalorder %s89, %s105
    %p107 = scmp.eq.s32.totalorder %s17, 0
    %p108 = por %p106, %p107
    %s109 = ssub.s32 %s18, %s30
    %p110 = scmp.eq.s32.totalorder %s109, 0
    %s112 = sadd.s32 %s111, 1
    %s113 = scalar_select %p110, %s111, %s112
    %p116 = pneg %p110
    %p117 = scmp.eq.s32.totalorder %s11, 3
    %p118 = por %p116, %p117
    %p119 = scmp.ne.s32.totalorder %s111, %s114
    %p120 = scmp.eq.s32.totalorder %s11, 0
    %p121 = por %p119, %p120
    %p122 = scmp.ne.s32.totalorder %s111, %s114
    %p123 = scmp.eq.s32.totalorder %s16, 3
    %p124 = por %p122, %p123
    %p125 = scmp.ne.s32.totalorder %s114, %s115
    %p126 = scmp.eq.s32.totalorder %s16, 0
    %p127 = por %p125, %p126
    %p128 = scmp.ne.s32.totalorder %s114, %s115
    %p129 = scmp.eq.s32.totalorder %s17, 3
    %p130 = por %p128, %p129
    %p132 = scmp.ne.s32.totalorder %s115, %s131
    %p133 = scmp.eq.s32.totalorder %s17, 0
    %p134 = por %p132, %p133
    %s136 = sadd.s32 %s135, 1
    %p139 = scmp.eq.s32.totalorder %s11, 3
    %p140 = scmp.ne.s32.totalorder %s135, %s137
    %p141 = scmp.eq.s32.totalorder %s11, 0
    %p142 = por %p140, %p141
    %p143 = scmp.ne.s32.totalorder %s135, %s137
    %p144 = scmp.eq.s32.totalorder %s16, 3
    %p145 = por %p143, %p144
    %p146 = scmp.ne.s32.totalorder %s137, %s138
    %p147 = scmp.eq.s32.totalorder %s16, 0
    %p148 = por %p146, %p147
    %p149 = scmp.ne.s32.totalorder %s137, %s138
    %p150 = scmp.eq.s32.totalorder %s17, 3
    %p151 = por %p149, %p150
    %p153 = scmp.ne.s32.totalorder %s138, %s152
    %p154 = scmp.eq.s32.totalorder %s17, 0
    %p155 = por %p153, %p154
    %s156 = ssub.s32 %s18, %s30
    %s157 = ssub.s32 %s19, %s26
    %s158 = sor.u32 %s156, %s157
    %p159 = scmp.eq.s32.totalorder %s158, 0
    %s161 = sadd.s32 %s160, 1
    %s162 = scalar_select %p159, %s160, %s161
    %p165 = pneg %p159
    %p166 = scmp.eq.s32.totalorder %s11, 3
    %p167 = por %p165, %p166
    %p168 = scmp.ne.s32.totalorder %s160, %s163
    %p169 = scmp.eq.s32.totalorder %s11, 0
    %p170 = por %p168, %p169
    %p171 = scmp.ne.s32.totalorder %s160, %s163
    %p172 = scmp.eq.s32.totalorder %s16, 3
    %p173 = por %p171, %p172
    %p174 = scmp.ne.s32.totalorder %s163, %s164
    %p175 = scmp.eq.s32.totalorder %s16, 0
    %p176 = por %p174, %p175
    %p177 = scmp.ne.s32.totalorder %s163, %s164
    %p178 = scmp.eq.s32.totalorder %s17, 3
    %p179 = por %p177, %p178
    %p181 = scmp.ne.s32.totalorder %s164, %s180
    %p182 = scmp.eq.s32.totalorder %s17, 0
    %p183 = por %p181, %p182
    %p184 = scmp.le.s32.totalorder 1, %s11
    %p185 = scmp.lt.s32.totalorder %s11, 5
    %p186 = pnand %p184, %p185
    %p187 = pneg %p186
    // Predicated region
    $region9: #{binary_encoder_forward.5} parent=5 // pred_check
      _
    $region10: #{binary_encoder_forward.5} parent=5 // pred_check_branch
      %189 = sbr.rel (%p186) target = $region12
    $region11: #{binary_encoder_forward.5} parent=5 // pred_region
      %s190 = ssub.s32 %s11, 1
      // Predicated region
      $region13: #{binary_encoder_forward.5} parent=11 // pred_check
        %p191 = pneg %p148
      $region14: #{binary_encoder_forward.5} parent=11 // pred_check_branch
        %193 = sbr.rel (%p191) target = $region16
      $region15: #{binary_encoder_forward.5} parent=11 // pred_region
        _
      $region16: #{binary_encoder_forward.5} parent=11 // pred_fallthru
        _
    $region12: #{binary_encoder_forward.5} parent=5 // pred_fallthru
      _
    %p194 = scmp.lt.s32.totalorder %s11, 4
    // Predicated region
    $region17: #{binary_encoder_forward.5} parent=5 // pred_check
      %p195 = pneg %p194
    $region18: #{binary_encoder_forward.5} parent=5 // pred_check_branch
      %197 = sbr.rel (%p195) target = $region20
    $region19: #{binary_encoder_forward.5} parent=5 // pred_region
      // Predicated region
      $region21: #{binary_encoder_forward.5} parent=19 // pred_check
        %p198 = pneg %p43
      $region22: #{binary_encoder_forward.5} parent=19 // pred_check_branch
        %200 = sbr.rel (%p198) target = $region24
      $region23: #{binary_encoder_forward.5} parent=19 // pred_region
        %p201 = scmp.lt.s32.totalorder %s18, 1
        %s202 = scalar_select %p201, %s18, 1
        %s203 = smul.addr %s202, 4
        %s204 = smul.addr %s203, 2
        %s205 = scalar_lea.vmem %s0, %s204
      $region24: #{binary_encoder_forward.5} parent=19 // pred_fallthru
        _
      // Predicated region
      $region25: #{binary_encoder_forward.5} parent=19 // pred_check
        %p206 = pneg %p69
      $region26: #{binary_encoder_forward.5} parent=19 // pred_check_branch
        %208 = sbr.rel (%p206) target = $region28
      $region27: #{binary_encoder_forward.5} parent=19 // pred_region
        %p209 = scmp.lt.s32.totalorder %s18, 1
        %s210 = scalar_select %p209, %s18, 1
        %s211 = smul.addr %s210, 4
        %s212 = smul.addr %s211, 2
        %s213 = scalar_lea.vmem %s1, %s212
      $region28: #{binary_encoder_forward.5} parent=19 // pred_fallthru
        _
      // Predicated region
      $region29: #{binary_encoder_forward.5} parent=19 // pred_check
        %p214 = pneg %p95
      $region30: #{binary_encoder_forward.5} parent=19 // pred_check_branch
        %216 = sbr.rel (%p214) target = $region32
      $region31: #{binary_encoder_forward.5} parent=19 // pred_region
        %p217 = scmp.lt.s32.totalorder %s18, 1
        %s218 = scalar_select %p217, %s18, 1
        %s219 = smul.addr %s218, 4
        %s220 = smul.addr %s219, 2
        %s221 = scalar_lea.vmem %s2, %s220
      $region32: #{binary_encoder_forward.5} parent=19 // pred_fallthru
        _
      // Predicated region
      $region33: #{binary_encoder_forward.5} parent=19 // pred_check
        %p222 = pneg %p121
      $region34: #{binary_encoder_forward.5} parent=19 // pred_check_branch
        %224 = sbr.rel (%p222) target = $region36
      $region35: #{binary_encoder_forward.5} parent=19 // pred_region
        %p225 = scmp.lt.s32.totalorder %s18, 1
        %s226 = scalar_select %p225, %s18, 1
        %s227 = smul.addr %s226, 4
        %s228 = smul.addr %s227, 2
        %s229 = scalar_lea.vmem %s3, %s228
      $region36: #{binary_encoder_forward.5} parent=19 // pred_fallthru
        _
    $region20: #{binary_encoder_forward.5} parent=5 // pred_fallthru
      _
    %p230 = scmp.le.s32.totalorder 1, %s11
    %p231 = scmp.lt.s32.totalorder %s11, 5
    %p232 = pnand %p230, %p231
    %p233 = pneg %p232
    // Predicated region
    $region37: #{binary_encoder_forward.5} parent=5 // pred_check
      _
    $region38: #{binary_encoder_forward.5} parent=5 // pred_check_branch
      %235 = sbr.rel (%p232) target = $region40
    $region39: #{binary_encoder_forward.5} parent=5 // pred_region
      %s236 = ssub.s32 %s11, 1
      %p237 = scmp.lt.s32.totalorder %s20, 1
      %s238 = scalar_select %p237, %s20, 1
      %s239 = smul.addr %s238, 4
      %s240 = smul.addr %s239, 2
      %s241 = scalar_lea.vmem %s0, %s240
      %p242 = pneg %p49
      %p243 = pneg %p46
      %p244 = scmp.lt.s32.totalorder %s20, 1
      %s245 = scalar_select %p244, %s20, 1
      %s246 = smul.addr %s245, 4
      %s247 = smul.addr %s246, 2
      %s248 = scalar_lea.vmem %s1, %s247
      %p249 = pneg %p75
      %p250 = pneg %p72
      %p251 = scmp.lt.s32.totalorder %s20, 1
      %s252 = scalar_select %p251, %s20, 1
      %s253 = smul.addr %s252, 4
      %s254 = smul.addr %s253, 2
      %s255 = scalar_lea.vmem %s2, %s254
      %p256 = pneg %p101
      %p257 = pneg %p98
      %p258 = scmp.lt.s32.totalorder %s20, 1
      %s259 = scalar_select %p258, %s20, 1
      %s260 = smul.addr %s259, 4
      %s261 = smul.addr %s260, 2
      %s262 = scalar_lea.vmem %s3, %s261
      %p263 = pneg %p127
      %p264 = pneg %p124
      %p265 = pneg %p148
      %p266 = pneg %p145
      %p267 = pneg %p176
      %p268 = pneg %p173
      %p269 = scmp.lt.s32.totalorder %s20, 1
      %s270 = scalar_select %p269, %s20, 1
      %p271 = scmp.lt.s32.totalorder %s21, 1
      %s272 = scalar_select %p271, %s21, 1
      %s273 = smul.addr %s270, 2
      %s274 = sadd.s32 %s272, %s273
      %s275 = smul.addr %s274, 2
      %s276 = scalar_lea.vmem %s5, %s275
      %p277 = scmp.lt.s32.totalorder %s20, 1
      %s278 = scalar_select %p277, %s20, 1
      %s279 = smul.addr %s278, 4
      %s280 = smul.addr %s279, 2
      %s281 = scalar_lea.vmem %s0, %s280
      %p282 = scmp.lt.s32.totalorder %s20, 1
      %s283 = scalar_select %p282, %s20, 1
      %s284 = smul.addr %s283, 4
      %s285 = smul.addr %s284, 2
      %s286 = scalar_lea.vmem %s1, %s285
      %p287 = scmp.lt.s32.totalorder %s20, 1
      %s288 = scalar_select %p287, %s20, 1
      %s289 = smul.addr %s288, 4
      %s290 = smul.addr %s289, 2
      %s291 = scalar_lea.vmem %s2, %s290
      %p292 = scmp.lt.s32.totalorder %s20, 1
      %s293 = scalar_select %p292, %s20, 1
      %s294 = smul.addr %s293, 4
      %s295 = smul.addr %s294, 2
      %s296 = scalar_lea.vmem %s3, %s295
      %p297 = scmp.lt.s32.totalorder %s20, 1
      %s298 = scalar_select %p297, %s20, 1
      %p299 = scmp.lt.s32.totalorder %s21, 1
      %s300 = scalar_select %p299, %s21, 1
      %s301 = smul.addr %s298, 2
      %s302 = sadd.s32 %s300, %s301
      %s303 = smul.addr %s302, 2
      %s304 = scalar_lea.vmem %s5, %s303
      %s306 = smul.addr %s21, 2
      %s307 = scalar_lea.vmem %s281, %s306
      %v308 = vld [vmem:[%s307] sm:$0x1]
      %v309 = vld [vmem:[%s4] sm:$0xf]
      %v310 = vld [vmem:[%s4 + $0x4] sm:$0xf]
      %v311 = vld [vmem:[%s4 + $0x8] sm:$0xf]
      %v312 = vld [vmem:[%s4 + $0xc] sm:$0xf]
      %s313 = smul.addr %s21, 2
      %s314 = scalar_lea.vmem %s286, %s313
      %v315 = vld [vmem:[%s314] sm:$0x1]
      %s316 = scalar_lea.vmem %s4, 16
      %v317 = vld [vmem:[%s316] sm:$0xf]
      %v318 = vld [vmem:[%s316 + $0x4] sm:$0xf]
      %v319 = vld [vmem:[%s316 + $0x8] sm:$0xf]
      %v320 = vld [vmem:[%s316 + $0xc] sm:$0xf]
      %v325 = vunpack.c.l.b16 %v317
      %v326 = vunpack.c.l.b16 %v318
      %v327 = vunpack.c.l.b16 %v319
      %v328 = vunpack.c.l.b16 %v320
      %v329 = vpack.c.b16 %v326, %v325
      %v330 = vpack.c.b16 %v328, %v327
      %vm333 = vcmask 261120
      %v335 = vsel %vm333, %v315, 0
      %337 = vmatprep.subr.bf16.mxu0 0
      %338 = vmatpush1.bf16.msra.mxu0 0
      %339 = vmatprep.subr.bf16.mxu0 0
      %340 = vmatpush1.bf16.msra.mxu0 0
      %341 = vmatprep.subr.bf16.mxu0 0
      %342 = vmatpush1.bf16.msra.mxu0 0
      %343 = vmatprep.subr.bf16.mxu0 0
      %344 = vmatpush1.bf16.msra.mxu0 0
      %345 = vmatprep.subr.bf16.mxu0 0
      %346 = vmatpush1.bf16.msra.mxu0 0
      %347 = vmatprep.subr.bf16.mxu0 0
      %348 = vmatpush1.bf16.msra.mxu0 0
      %349 = vmatprep.subr.bf16.mxu0 0
      %350 = vmatpush1.bf16.msra.mxu0 %v330
      %351 = vmatprep.subr.bf16.mxu0 0
      %352 = vmatpush1.bf16.msra.mxu0 %v329
      %353 = vmatprep.subr.bf16.mxu0 0
      %354 = vmatpush2.bf16.msra.mxu0 0
      %355 = vmatprep.subr.bf16.mxu0 0
      %356 = vmatpush2.bf16.msra.mxu0 0
      %357 = vmatprep.subr.bf16.mxu0 0
      %358 = vmatpush2.bf16.msra.mxu0 0
      %359 = vmatprep.subr.bf16.mxu0 0
      %360 = vmatpush2.bf16.msra.mxu0 0
      %361 = vmatprep.subr.bf16.mxu0 0
      %362 = vmatpush2.bf16.msra.mxu0 0
      %363 = vmatprep.subr.bf16.mxu0 0
      %364 = vmatpush2.bf16.msra.mxu0 0
      %365 = vmatprep.subr.bf16.mxu0 0
      %366 = vmatpush2.bf16.msra.mxu0 0
      %367 = vmatprep.subr.bf16.mxu0 0
      %368 = vmatpush2.bf16.msra.mxu0 0
      %369 = vmatprep.mubr.bf16.mxu0 0
      %370 = vmatmul.mubr.bf16.gmra.mxu0 %v335
      %v371 = vpop.f32.mrf.mxu0
      %v372 = vadd.f32 0.0, %v371
      %v373 = vpop.f32.mrf.mxu0
      %v374 = vpop.f32.mrf.mxu0
      %v375 = vpop.f32.mrf.mxu0
      %376 = vdwg.mxu0
      %v381 = vunpack.c.l.b16 %v309
      %v382 = vunpack.c.l.b16 %v310
      %v383 = vunpack.c.l.b16 %v311
      %v384 = vunpack.c.l.b16 %v312
      %v385 = vpack.c.b16 %v382, %v381
      %v386 = vpack.c.b16 %v384, %v383
      %v390 = vsel %vm333, %v308, 0
      %392 = vmatprep.subr.bf16.mxu0 0
      %393 = vmatpush1.bf16.msra.mxu0 0
      %394 = vmatprep.subr.bf16.mxu0 0
      %395 = vmatpush1.bf16.msra.mxu0 0
      %396 = vmatprep.subr.bf16.mxu0 0
      %397 = vmatpush1.bf16.msra.mxu0 0
      %398 = vmatprep.subr.bf16.mxu0 0
      %399 = vmatpush1.bf16.msra.mxu0 0
      %400 = vmatprep.subr.bf16.mxu0 0
      %401 = vmatpush1.bf16.msra.mxu0 0
      %402 = vmatprep.subr.bf16.mxu0 0
      %403 = vmatpush1.bf16.msra.mxu0 0
      %404 = vmatprep.subr.bf16.mxu0 0
      %405 = vmatpush1.bf16.msra.mxu0 %v386
      %406 = vmatprep.subr.bf16.mxu0 0
      %407 = vmatpush1.bf16.msra.mxu0 %v385
      %408 = vmatprep.subr.bf16.mxu0 0
      %409 = vmatpush2.bf16.msra.mxu0 0
      %410 = vmatprep.subr.bf16.mxu0 0
      %411 = vmatpush2.bf16.msra.mxu0 0
      %412 = vmatprep.subr.bf16.mxu0 0
      %413 = vmatpush2.bf16.msra.mxu0 0
      %414 = vmatprep.subr.bf16.mxu0 0
      %415 = vmatpush2.bf16.msra.mxu0 0
      %416 = vmatprep.subr.bf16.mxu0 0
      %417 = vmatpush2.bf16.msra.mxu0 0
      %418 = vmatprep.subr.bf16.mxu0 0
      %419 = vmatpush2.bf16.msra.mxu0 0
      %420 = vmatprep.subr.bf16.mxu0 0
      %421 = vmatpush2.bf16.msra.mxu0 0
      %422 = vmatprep.subr.bf16.mxu0 0
      %423 = vmatpush2.bf16.msra.mxu0 0
      %424 = vmatprep.mubr.bf16.mxu0 0
      %425 = vmatmul.mubr.bf16.gmra.mxu0 %v390
      %v426 = vpop.f32.mrf.mxu0
      %v427 = vadd.f32 %v372, %v426
      %v428 = vpop.f32.mrf.mxu0
      %v429 = vpop.f32.mrf.mxu0
      %v430 = vpop.f32.mrf.mxu0
      %431 = vdwg.mxu0
      %v432 = vld [vmem:[%s307] sm:$0x3]
      %s433 = scalar_lea.vmem %s4, 32
      %v434 = vld [vmem:[%s433] sm:$0xf]
      %v435 = vld [vmem:[%s433 + $0x4] sm:$0xf]
      %v436 = vld [vmem:[%s433 + $0x8] sm:$0xf]
      %v437 = vld [vmem:[%s433 + $0xc] sm:$0xf]
      %v440 = vunpack.c.l.s4 1983009808
      %v441 = vunpack.c.0.s8 %v440
      %v442 = vlaneseq
      %v443 = vshrl.u32 %v442, 7
      %v444 = vsub.s32 %v441, %v443
      %v445 = vrot.slane %v432, %v444
      %v447 = vshrl.u32 %v445, 16
      %v449 = vshll.u32 %v445, 16
      %v451 = vrot.slane %v449, 1
      %v452 = vor.u32 %v447, %v451
      %v457 = vunpack.c.l.b16 %v434
      %v458 = vunpack.c.l.b16 %v435
      %v459 = vunpack.c.l.b16 %v436
      %v460 = vunpack.c.l.b16 %v437
      %v461 = vpack.c.b16 %v458, %v457
      %v462 = vpack.c.b16 %v460, %v459
      %v466 = vsel %vm333, %v452, 0
      %468 = vmatprep.subr.bf16.mxu0 0
      %469 = vmatpush1.bf16.msra.mxu0 0
      %470 = vmatprep.subr.bf16.mxu0 0
      %471 = vmatpush1.bf16.msra.mxu0 0
      %472 = vmatprep.subr.bf16.mxu0 0
      %473 = vmatpush1.bf16.msra.mxu0 0
      %474 = vmatprep.subr.bf16.mxu0 0
      %475 = vmatpush1.bf16.msra.mxu0 0
      %476 = vmatprep.subr.bf16.mxu0 0
      %477 = vmatpush1.bf16.msra.mxu0 0
      %478 = vmatprep.subr.bf16.mxu0 0
      %479 = vmatpush1.bf16.msra.mxu0 0
      %480 = vmatprep.subr.bf16.mxu0 0
      %481 = vmatpush1.bf16.msra.mxu0 %v462
      %482 = vmatprep.subr.bf16.mxu0 0
      %483 = vmatpush1.bf16.msra.mxu0 %v461
      %484 = vmatprep.subr.bf16.mxu0 0
      %485 = vmatpush2.bf16.msra.mxu0 0
      %486 = vmatprep.subr.bf16.mxu0 0
      %487 = vmatpush2.bf16.msra.mxu0 0
      %488 = vmatprep.subr.bf16.mxu0 0
      %489 = vmatpush2.bf16.msra.mxu0 0
      %490 = vmatprep.subr.bf16.mxu0 0
      %491 = vmatpush2.bf16.msra.mxu0 0
      %492 = vmatprep.subr.bf16.mxu0 0
      %493 = vmatpush2.bf16.msra.mxu0 0
      %494 = vmatprep.subr.bf16.mxu0 0
      %495 = vmatpush2.bf16.msra.mxu0 0
      %496 = vmatprep.subr.bf16.mxu0 0
      %497 = vmatpush2.bf16.msra.mxu0 0
      %498 = vmatprep.subr.bf16.mxu0 0
      %499 = vmatpush2.bf16.msra.mxu0 0
      %500 = vmatprep.mubr.bf16.mxu0 0
      %501 = vmatmul.mubr.bf16.gmra.mxu0 %v466
      %v502 = vpop.f32.mrf.mxu0
      %v503 = vadd.f32 0.0, %v502
      %v504 = vpop.f32.mrf.mxu0
      %v505 = vpop.f32.mrf.mxu0
      %v506 = vpop.f32.mrf.mxu0
      %507 = vdwg.mxu0
      %v508 = vadd.f32 %v427, %v503
      %v509 = vld [vmem:[%s314] sm:$0x3]
      %s510 = scalar_lea.vmem %s4, 48
      %v511 = vld [vmem:[%s510] sm:$0xf]
      %v512 = vld [vmem:[%s510 + $0x4] sm:$0xf]
      %v513 = vld [vmem:[%s510 + $0x8] sm:$0xf]
      %v514 = vld [vmem:[%s510 + $0xc] sm:$0xf]
      %v517 = vunpack.c.l.s4 1983009808
      %v518 = vunpack.c.0.s8 %v517
      %v519 = vlaneseq
      %v520 = vshrl.u32 %v519, 7
      %v521 = vsub.s32 %v518, %v520
      %v522 = vrot.slane %v509, %v521
      %v524 = vshrl.u32 %v522, 16
      %v526 = vshll.u32 %v522, 16
      %v528 = vrot.slane %v526, 1
      %v529 = vor.u32 %v524, %v528
      %v534 = vunpack.c.l.b16 %v511
      %v535 = vunpack.c.l.b16 %v512
      %v536 = vunpack.c.l.b16 %v513
      %v537 = vunpack.c.l.b16 %v514
      %v538 = vpack.c.b16 %v535, %v534
      %v539 = vpack.c.b16 %v537, %v536
      %v543 = vsel %vm333, %v529, 0
      %545 = vmatprep.subr.bf16.mxu0 0
      %546 = vmatpush1.bf16.msra.mxu0 0
      %547 = vmatprep.subr.bf16.mxu0 0
      %548 = vmatpush1.bf16.msra.mxu0 0
      %549 = vmatprep.subr.bf16.mxu0 0
      %550 = vmatpush1.bf16.msra.mxu0 0
      %551 = vmatprep.subr.bf16.mxu0 0
      %552 = vmatpush1.bf16.msra.mxu0 0
      %553 = vmatprep.subr.bf16.mxu0 0
      %554 = vmatpush1.bf16.msra.mxu0 0
      %555 = vmatprep.subr.bf16.mxu0 0
      %556 = vmatpush1.bf16.msra.mxu0 0
      %557 = vmatprep.subr.bf16.mxu0 0
      %558 = vmatpush1.bf16.msra.mxu0 %v539
      %559 = vmatprep.subr.bf16.mxu0 0
      %560 = vmatpush1.bf16.msra.mxu0 %v538
      %561 = vmatprep.subr.bf16.mxu0 0
      %562 = vmatpush2.bf16.msra.mxu0 0
      %563 = vmatprep.subr.bf16.mxu0 0
      %564 = vmatpush2.bf16.msra.mxu0 0
      %565 = vmatprep.subr.bf16.mxu0 0
      %566 = vmatpush2.bf16.msra.mxu0 0
      %567 = vmatprep.subr.bf16.mxu0 0
      %568 = vmatpush2.bf16.msra.mxu0 0
      %569 = vmatprep.subr.bf16.mxu0 0
      %570 = vmatpush2.bf16.msra.mxu0 0
      %571 = vmatprep.subr.bf16.mxu0 0
      %572 = vmatpush2.bf16.msra.mxu0 0
      %573 = vmatprep.subr.bf16.mxu0 0
      %574 = vmatpush2.bf16.msra.mxu0 0
      %575 = vmatprep.subr.bf16.mxu0 0
      %576 = vmatpush2.bf16.msra.mxu0 0
      %577 = vmatprep.mubr.bf16.mxu0 0
      %578 = vmatmul.mubr.bf16.gmra.mxu0 %v543
      %v579 = vpop.f32.mrf.mxu0
      %v580 = vadd.f32 0.0, %v579
      %v581 = vpop.f32.mrf.mxu0
      %v582 = vpop.f32.mrf.mxu0
      %v583 = vpop.f32.mrf.mxu0
      %584 = vdwg.mxu0
      %v585 = vadd.f32 %v508, %v580
      %v586 = vld [vmem:[%s307] sm:$0x2]
      %s587 = scalar_lea.vmem %s4, 64
      %v588 = vld [vmem:[%s587] sm:$0xf]
      %v589 = vld [vmem:[%s587 + $0x4] sm:$0xf]
      %v590 = vld [vmem:[%s587 + $0x8] sm:$0xf]
      %v591 = vld [vmem:[%s587 + $0xc] sm:$0xf]
      %v594 = vunpack.c.l.s4 1983009808
      %v595 = vunpack.c.0.s8 %v594
      %v596 = vlaneseq
      %v597 = vshrl.u32 %v596, 7
      %v598 = vsub.s32 %v595, %v597
      %v599 = vrot.slane %v586, %v598
      %v600 = vrot.slane %v599, 1
      %v605 = vunpack.c.l.b16 %v588
      %v606 = vunpack.c.l.b16 %v589
      %v607 = vunpack.c.l.b16 %v590
      %v608 = vunpack.c.l.b16 %v591
      %v609 = vpack.c.b16 %v606, %v605
      %v610 = vpack.c.b16 %v608, %v607
      %v614 = vsel %vm333, %v600, 0
      %616 = vmatprep.subr.bf16.mxu0 0
      %617 = vmatpush1.bf16.msra.mxu0 0
      %618 = vmatprep.subr.bf16.mxu0 0
      %619 = vmatpush1.bf16.msra.mxu0 0
      %620 = vmatprep.subr.bf16.mxu0 0
      %621 = vmatpush1.bf16.msra.mxu0 0
      %622 = vmatprep.subr.bf16.mxu0 0
      %623 = vmatpush1.bf16.msra.mxu0 0
      %624 = vmatprep.subr.bf16.mxu0 0
      %625 = vmatpush1.bf16.msra.mxu0 0
      %626 = vmatprep.subr.bf16.mxu0 0
      %627 = vmatpush1.bf16.msra.mxu0 0
      %628 = vmatprep.subr.bf16.mxu0 0
      %629 = vmatpush1.bf16.msra.mxu0 %v610
      %630 = vmatprep.subr.bf16.mxu0 0
      %631 = vmatpush1.bf16.msra.mxu0 %v609
      %632 = vmatprep.subr.bf16.mxu0 0
      %633 = vmatpush2.bf16.msra.mxu0 0
      %634 = vmatprep.subr.bf16.mxu0 0
      %635 = vmatpush2.bf16.msra.mxu0 0
      %636 = vmatprep.subr.bf16.mxu0 0
      %637 = vmatpush2.bf16.msra.mxu0 0
      %638 = vmatprep.subr.bf16.mxu0 0
      %639 = vmatpush2.bf16.msra.mxu0 0
      %640 = vmatprep.subr.bf16.mxu0 0
      %641 = vmatpush2.bf16.msra.mxu0 0
      %642 = vmatprep.subr.bf16.mxu0 0
      %643 = vmatpush2.bf16.msra.mxu0 0
      %644 = vmatprep.subr.bf16.mxu0 0
      %645 = vmatpush2.bf16.msra.mxu0 0
      %646 = vmatprep.subr.bf16.mxu0 0
      %647 = vmatpush2.bf16.msra.mxu0 0
      %648 = vmatprep.mubr.bf16.mxu0 0
      %649 = vmatmul.mubr.bf16.gmra.mxu0 %v614
      %v650 = vpop.f32.mrf.mxu0
      %v651 = vadd.f32 0.0, %v650
      %v652 = vpop.f32.mrf.mxu0
      %v653 = vpop.f32.mrf.mxu0
      %v654 = vpop.f32.mrf.mxu0
      %655 = vdwg.mxu0
      %v656 = vadd.f32 %v585, %v651
      %s657 = smul.addr %s21, 2
      %s658 = scalar_lea.vmem %s291, %s657
      %v659 = vld [vmem:[%s658] sm:$0x1]
      %s660 = scalar_lea.vmem %s4, 80
      %v661 = vld [vmem:[%s660] sm:$0xf]
      %v662 = vld [vmem:[%s660 + $0x4] sm:$0xf]
      %v663 = vld [vmem:[%s660 + $0x8] sm:$0xf]
      %v664 = vld [vmem:[%s660 + $0xc] sm:$0xf]
      %v669 = vunpack.c.l.b16 %v661
      %v670 = vunpack.c.l.b16 %v662
      %v671 = vunpack.c.l.b16 %v663
      %v672 = vunpack.c.l.b16 %v664
      %v673 = vpack.c.b16 %v670, %v669
      %v674 = vpack.c.b16 %v672, %v671
      %v678 = vsel %vm333, %v659, 0
      %680 = vmatprep.subr.bf16.mxu0 0
      %681 = vmatpush1.bf16.msra.mxu0 0
      %682 = vmatprep.subr.bf16.mxu0 0
      %683 = vmatpush1.bf16.msra.mxu0 0
      %684 = vmatprep.subr.bf16.mxu0 0
      %685 = vmatpush1.bf16.msra.mxu0 0
      %686 = vmatprep.subr.bf16.mxu0 0
      %687 = vmatpush1.bf16.msra.mxu0 0
      %688 = vmatprep.subr.bf16.mxu0 0
      %689 = vmatpush1.bf16.msra.mxu0 0
      %690 = vmatprep.subr.bf16.mxu0 0
      %691 = vmatpush1.bf16.msra.mxu0 0
      %692 = vmatprep.subr.bf16.mxu0 0
      %693 = vmatpush1.bf16.msra.mxu0 %v674
      %694 = vmatprep.subr.bf16.mxu0 0
      %695 = vmatpush1.bf16.msra.mxu0 %v673
      %696 = vmatprep.subr.bf16.mxu0 0
      %697 = vmatpush2.bf16.msra.mxu0 0
      %698 = vmatprep.subr.bf16.mxu0 0
      %699 = vmatpush2.bf16.msra.mxu0 0
      %700 = vmatprep.subr.bf16.mxu0 0
      %701 = vmatpush2.bf16.msra.mxu0 0
      %702 = vmatprep.subr.bf16.mxu0 0
      %703 = vmatpush2.bf16.msra.mxu0 0
      %704 = vmatprep.subr.bf16.mxu0 0
      %705 = vmatpush2.bf16.msra.mxu0 0
      %706 = vmatprep.subr.bf16.mxu0 0
      %707 = vmatpush2.bf16.msra.mxu0 0
      %708 = vmatprep.subr.bf16.mxu0 0
      %709 = vmatpush2.bf16.msra.mxu0 0
      %710 = vmatprep.subr.bf16.mxu0 0
      %711 = vmatpush2.bf16.msra.mxu0 0
      %712 = vmatprep.mubr.bf16.mxu0 0
      %713 = vmatmul.mubr.bf16.gmra.mxu0 %v678
      %v714 = vpop.f32.mrf.mxu0
      %v715 = vadd.f32 0.0, %v714
      %v716 = vpop.f32.mrf.mxu0
      %v717 = vpop.f32.mrf.mxu0
      %v718 = vpop.f32.mrf.mxu0
      %719 = vdwg.mxu0
      %v720 = vadd.f32 %v656, %v715
      %s721 = smul.addr %s21, 2
      %s722 = scalar_lea.vmem %s296, %s721
      %v723 = vld [vmem:[%s722] sm:$0x1]
      %s724 = scalar_lea.vmem %s4, 96
      %v725 = vld [vmem:[%s724] sm:$0xf]
      %v726 = vld [vmem:[%s724 + $0x4] sm:$0xf]
      %v727 = vld [vmem:[%s724 + $0x8] sm:$0xf]
      %v728 = vld [vmem:[%s724 + $0xc] sm:$0xf]
      %v733 = vunpack.c.l.b16 %v725
      %v734 = vunpack.c.l.b16 %v726
      %v735 = vunpack.c.l.b16 %v727
      %v736 = vunpack.c.l.b16 %v728
      %v737 = vpack.c.b16 %v734, %v733
      %v738 = vpack.c.b16 %v736, %v735
      %v742 = vsel %vm333, %v723, 0
      %744 = vmatprep.subr.bf16.mxu0 0
      %745 = vmatpush1.bf16.msra.mxu0 0
      %746 = vmatprep.subr.bf16.mxu0 0
      %747 = vmatpush1.bf16.msra.mxu0 0
      %748 = vmatprep.subr.bf16.mxu0 0
      %749 = vmatpush1.bf16.msra.mxu0 0
      %750 = vmatprep.subr.bf16.mxu0 0
      %751 = vmatpush1.bf16.msra.mxu0 0
      %752 = vmatprep.subr.bf16.mxu0 0
      %753 = vmatpush1.bf16.msra.mxu0 0
      %754 = vmatprep.subr.bf16.mxu0 0
      %755 = vmatpush1.bf16.msra.mxu0 0
      %756 = vmatprep.subr.bf16.mxu0 0
      %757 = vmatpush1.bf16.msra.mxu0 %v738
      %758 = vmatprep.subr.bf16.mxu0 0
      %759 = vmatpush1.bf16.msra.mxu0 %v737
      %760 = vmatprep.subr.bf16.mxu0 0
      %761 = vmatpush2.bf16.msra.mxu0 0
      %762 = vmatprep.subr.bf16.mxu0 0
      %763 = vmatpush2.bf16.msra.mxu0 0
      %764 = vmatprep.subr.bf16.mxu0 0
      %765 = vmatpush2.bf16.msra.mxu0 0
      %766 = vmatprep.subr.bf16.mxu0 0
      %767 = vmatpush2.bf16.msra.mxu0 0
      %768 = vmatprep.subr.bf16.mxu0 0
      %769 = vmatpush2.bf16.msra.mxu0 0
      %770 = vmatprep.subr.bf16.mxu0 0
      %771 = vmatpush2.bf16.msra.mxu0 0
      %772 = vmatprep.subr.bf16.mxu0 0
      %773 = vmatpush2.bf16.msra.mxu0 0
      %774 = vmatprep.subr.bf16.mxu0 0
      %775 = vmatpush2.bf16.msra.mxu0 0
      %776 = vmatprep.mubr.bf16.mxu0 0
      %777 = vmatmul.mubr.bf16.gmra.mxu0 %v742
      %v778 = vpop.f32.mrf.mxu0
      %v779 = vadd.f32 0.0, %v778
      %v780 = vpop.f32.mrf.mxu0
      %v781 = vpop.f32.mrf.mxu0
      %v782 = vpop.f32.mrf.mxu0
      %783 = vdwg.mxu0
      %v784 = vadd.f32 %v720, %v779
      %v785 = vld [vmem:[%s658] sm:$0x3]
      %s786 = scalar_lea.vmem %s4, 112
      %v787 = vld [vmem:[%s786] sm:$0xf]
      %v788 = vld [vmem:[%s786 + $0x4] sm:$0xf]
      %v789 = vld [vmem:[%s786 + $0x8] sm:$0xf]
      %v790 = vld [vmem:[%s786 + $0xc] sm:$0xf]
      %v793 = vunpack.c.l.s4 1983009808
      %v794 = vunpack.c.0.s8 %v793
      %v795 = vlaneseq
      %v796 = vshrl.u32 %v795, 7
      %v797 = vsub.s32 %v794, %v796
      %v798 = vrot.slane %v785, %v797
      %v800 = vshrl.u32 %v798, 16
      %v802 = vshll.u32 %v798, 16
      %v804 = vrot.slane %v802, 1
      %v805 = vor.u32 %v800, %v804
      %v810 = vunpack.c.l.b16 %v787
      %v811 = vunpack.c.l.b16 %v788
      %v812 = vunpack.c.l.b16 %v789
      %v813 = vunpack.c.l.b16 %v790
      %v814 = vpack.c.b16 %v811, %v810
      %v815 = vpack.c.b16 %v813, %v812
      %v819 = vsel %vm333, %v805, 0
      %821 = vmatprep.subr.bf16.mxu0 0
      %822 = vmatpush1.bf16.msra.mxu0 0
      %823 = vmatprep.subr.bf16.mxu0 0
      %824 = vmatpush1.bf16.msra.mxu0 0
      %825 = vmatprep.subr.bf16.mxu0 0
      %826 = vmatpush1.bf16.msra.mxu0 0
      %827 = vmatprep.subr.bf16.mxu0 0
      %828 = vmatpush1.bf16.msra.mxu0 0
      %829 = vmatprep.subr.bf16.mxu0 0
      %830 = vmatpush1.bf16.msra.mxu0 0
      %831 = vmatprep.subr.bf16.mxu0 0
      %832 = vmatpush1.bf16.msra.mxu0 0
      %833 = vmatprep.subr.bf16.mxu0 0
      %834 = vmatpush1.bf16.msra.mxu0 %v815
      %835 = vmatprep.subr.bf16.mxu0 0
      %836 = vmatpush1.bf16.msra.mxu0 %v814
      %837 = vmatprep.subr.bf16.mxu0 0
      %838 = vmatpush2.bf16.msra.mxu0 0
      %839 = vmatprep.subr.bf16.mxu0 0
      %840 = vmatpush2.bf16.msra.mxu0 0
      %841 = vmatprep.subr.bf16.mxu0 0
      %842 = vmatpush2.bf16.msra.mxu0 0
      %843 = vmatprep.subr.bf16.mxu0 0
      %844 = vmatpush2.bf16.msra.mxu0 0
      %845 = vmatprep.subr.bf16.mxu0 0
      %846 = vmatpush2.bf16.msra.mxu0 0
      %847 = vmatprep.subr.bf16.mxu0 0
      %848 = vmatpush2.bf16.msra.mxu0 0
      %849 = vmatprep.subr.bf16.mxu0 0
      %850 = vmatpush2.bf16.msra.mxu0 0
      %851 = vmatprep.subr.bf16.mxu0 0
      %852 = vmatpush2.bf16.msra.mxu0 0
      %853 = vmatprep.mubr.bf16.mxu0 0
      %854 = vmatmul.mubr.bf16.gmra.mxu0 %v819
      %v855 = vpop.f32.mrf.mxu0
      %v856 = vadd.f32 0.0, %v855
      %v857 = vpop.f32.mrf.mxu0
      %v858 = vpop.f32.mrf.mxu0
      %v859 = vpop.f32.mrf.mxu0
      %860 = vdwg.mxu0
      %v861 = vadd.f32 %v784, %v856
      %v862 = vld [vmem:[%s722] sm:$0x3]
      %s863 = scalar_lea.vmem %s4, 128
      %v864 = vld [vmem:[%s863] sm:$0xf]
      %v865 = vld [vmem:[%s863 + $0x4] sm:$0xf]
      %v866 = vld [vmem:[%s863 + $0x8] sm:$0xf]
      %v867 = vld [vmem:[%s863 + $0xc] sm:$0xf]
      %v870 = vunpack.c.l.s4 1983009808
      %v871 = vunpack.c.0.s8 %v870
      %v872 = vlaneseq
      %v873 = vshrl.u32 %v872, 7
      %v874 = vsub.s32 %v871, %v873
      %v875 = vrot.slane %v862, %v874
      %v877 = vshrl.u32 %v875, 16
      %v879 = vshll.u32 %v875, 16
      %v881 = vrot.slane %v879, 1
      %v882 = vor.u32 %v877, %v881
      %v887 = vunpack.c.l.b16 %v864
      %v888 = vunpack.c.l.b16 %v865
      %v889 = vunpack.c.l.b16 %v866
      %v890 = vunpack.c.l.b16 %v867
      %v891 = vpack.c.b16 %v888, %v887
      %v892 = vpack.c.b16 %v890, %v889
      %v896 = vsel %vm333, %v882, 0
      %898 = vmatprep.subr.bf16.mxu0 0
      %899 = vmatpush1.bf16.msra.mxu0 0
      %900 = vmatprep.subr.bf16.mxu0 0
      %901 = vmatpush1.bf16.msra.mxu0 0
      %902 = vmatprep.subr.bf16.mxu0 0
      %903 = vmatpush1.bf16.msra.mxu0 0
      %904 = vmatprep.subr.bf16.mxu0 0
      %905 = vmatpush1.bf16.msra.mxu0 0
      %906 = vmatprep.subr.bf16.mxu0 0
      %907 = vmatpush1.bf16.msra.mxu0 0
      %908 = vmatprep.subr.bf16.mxu0 0
      %909 = vmatpush1.bf16.msra.mxu0 0
      %910 = vmatprep.subr.bf16.mxu0 0
      %911 = vmatpush1.bf16.msra.mxu0 %v892
      %912 = vmatprep.subr.bf16.mxu0 0
      %913 = vmatpush1.bf16.msra.mxu0 %v891
      %914 = vmatprep.subr.bf16.mxu0 0
      %915 = vmatpush2.bf16.msra.mxu0 0
      %916 = vmatprep.subr.bf16.mxu0 0
      %917 = vmatpush2.bf16.msra.mxu0 0
      %918 = vmatprep.subr.bf16.mxu0 0
      %919 = vmatpush2.bf16.msra.mxu0 0
      %920 = vmatprep.subr.bf16.mxu0 0
      %921 = vmatpush2.bf16.msra.mxu0 0
      %922 = vmatprep.subr.bf16.mxu0 0
      %923 = vmatpush2.bf16.msra.mxu0 0
      %924 = vmatprep.subr.bf16.mxu0 0
      %925 = vmatpush2.bf16.msra.mxu0 0
      %926 = vmatprep.subr.bf16.mxu0 0
      %927 = vmatpush2.bf16.msra.mxu0 0
      %928 = vmatprep.subr.bf16.mxu0 0
      %929 = vmatpush2.bf16.msra.mxu0 0
      %930 = vmatprep.mubr.bf16.mxu0 0
      %931 = vmatmul.mubr.bf16.gmra.mxu0 %v896
      %v932 = vpop.f32.mrf.mxu0
      %v933 = vadd.f32 0.0, %v932
      %v934 = vpop.f32.mrf.mxu0
      %v935 = vpop.f32.mrf.mxu0
      %v936 = vpop.f32.mrf.mxu0
      %937 = vdwg.mxu0
      %v938 = vadd.f32 %v861, %v933
      %v939 = vld [vmem:[%s658] sm:$0x2]
      %s940 = scalar_lea.vmem %s4, 144
      %v941 = vld [vmem:[%s940] sm:$0xf]
      %v942 = vld [vmem:[%s940 + $0x4] sm:$0xf]
      %v943 = vld [vmem:[%s940 + $0x8] sm:$0xf]
      %v944 = vld [vmem:[%s940 + $0xc] sm:$0xf]
      %v947 = vunpack.c.l.s4 1983009808
      %v948 = vunpack.c.0.s8 %v947
      %v949 = vlaneseq
      %v950 = vshrl.u32 %v949, 7
      %v951 = vsub.s32 %v948, %v950
      %v952 = vrot.slane %v939, %v951
      %v953 = vrot.slane %v952, 1
      %v958 = vunpack.c.l.b16 %v941
      %v959 = vunpack.c.l.b16 %v942
      %v960 = vunpack.c.l.b16 %v943
      %v961 = vunpack.c.l.b16 %v944
      %v962 = vpack.c.b16 %v959, %v958
      %v963 = vpack.c.b16 %v961, %v960
      %v967 = vsel %vm333, %v953, 0
      %969 = vmatprep.subr.bf16.mxu0 0
      %970 = vmatpush1.bf16.msra.mxu0 0
      %971 = vmatprep.subr.bf16.mxu0 0
      %972 = vmatpush1.bf16.msra.mxu0 0
      %973 = vmatprep.subr.bf16.mxu0 0
      %974 = vmatpush1.bf16.msra.mxu0 0
      %975 = vmatprep.subr.bf16.mxu0 0
      %976 = vmatpush1.bf16.msra.mxu0 0
      %977 = vmatprep.subr.bf16.mxu0 0
      %978 = vmatpush1.bf16.msra.mxu0 0
      %979 = vmatprep.subr.bf16.mxu0 0
      %980 = vmatpush1.bf16.msra.mxu0 0
      %981 = vmatprep.subr.bf16.mxu0 0
      %982 = vmatpush1.bf16.msra.mxu0 %v963
      %983 = vmatprep.subr.bf16.mxu0 0
      %984 = vmatpush1.bf16.msra.mxu0 %v962
      %985 = vmatprep.subr.bf16.mxu0 0
      %986 = vmatpush2.bf16.msra.mxu0 0
      %987 = vmatprep.subr.bf16.mxu0 0
      %988 = vmatpush2.bf16.msra.mxu0 0
      %989 = vmatprep.subr.bf16.mxu0 0
      %990 = vmatpush2.bf16.msra.mxu0 0
      %991 = vmatprep.subr.bf16.mxu0 0
      %992 = vmatpush2.bf16.msra.mxu0 0
      %993 = vmatprep.subr.bf16.mxu0 0
      %994 = vmatpush2.bf16.msra.mxu0 0
      %995 = vmatprep.subr.bf16.mxu0 0
      %996 = vmatpush2.bf16.msra.mxu0 0
      %997 = vmatprep.subr.bf16.mxu0 0
      %998 = vmatpush2.bf16.msra.mxu0 0
      %999 = vmatprep.subr.bf16.mxu0 0
      %1000 = vmatpush2.bf16.msra.mxu0 0
      %1001 = vmatprep.mubr.bf16.mxu0 0
      %1002 = vmatmul.mubr.bf16.gmra.mxu0 %v967
      %v1003 = vpop.f32.mrf.mxu0
      %v1004 = vadd.f32 0.0, %v1003
      %v1005 = vpop.f32.mrf.mxu0
      %v1006 = vpop.f32.mrf.mxu0
      %v1007 = vpop.f32.mrf.mxu0
      %1008 = vdwg.mxu0
      %v1009 = vadd.f32 %v938, %v1004
      %s1010 = sadd.s32 %s21, 1
      %s1011 = smul.addr %s1010, 2
      %s1012 = scalar_lea.vmem %s281, %s1011
      %v1013 = vld [vmem:[%s1012] sm:$0x1]
      %s1014 = scalar_lea.vmem %s4, 160
      %v1015 = vld [vmem:[%s1014] sm:$0xf]
      %v1016 = vld [vmem:[%s1014 + $0x4] sm:$0xf]
      %v1017 = vld [vmem:[%s1014 + $0x8] sm:$0xf]
      %v1018 = vld [vmem:[%s1014 + $0xc] sm:$0xf]
      %v1023 = vunpack.c.l.b16 %v1015
      %v1024 = vunpack.c.l.b16 %v1016
      %v1025 = vunpack.c.l.b16 %v1017
      %v1026 = vunpack.c.l.b16 %v1018
      %v1027 = vpack.c.b16 %v1024, %v1023
      %v1028 = vpack.c.b16 %v1026, %v1025
      %v1032 = vsel %vm333, %v1013, 0
      %1034 = vmatprep.subr.bf16.mxu0 0
      %1035 = vmatpush1.bf16.msra.mxu0 0
      %1036 = vmatprep.subr.bf16.mxu0 0
      %1037 = vmatpush1.bf16.msra.mxu0 0
      %1038 = vmatprep.subr.bf16.mxu0 0
      %1039 = vmatpush1.bf16.msra.mxu0 0
      %1040 = vmatprep.subr.bf16.mxu0 0
      %1041 = vmatpush1.bf16.msra.mxu0 0
      %1042 = vmatprep.subr.bf16.mxu0 0
      %1043 = vmatpush1.bf16.msra.mxu0 0
      %1044 = vmatprep.subr.bf16.mxu0 0
      %1045 = vmatpush1.bf16.msra.mxu0 0
      %1046 = vmatprep.subr.bf16.mxu0 0
      %1047 = vmatpush1.bf16.msra.mxu0 %v1028
      %1048 = vmatprep.subr.bf16.mxu0 0
      %1049 = vmatpush1.bf16.msra.mxu0 %v1027
      %1050 = vmatprep.subr.bf16.mxu0 0
      %1051 = vmatpush2.bf16.msra.mxu0 0
      %1052 = vmatprep.subr.bf16.mxu0 0
      %1053 = vmatpush2.bf16.msra.mxu0 0
      %1054 = vmatprep.subr.bf16.mxu0 0
      %1055 = vmatpush2.bf16.msra.mxu0 0
      %1056 = vmatprep.subr.bf16.mxu0 0
      %1057 = vmatpush2.bf16.msra.mxu0 0
      %1058 = vmatprep.subr.bf16.mxu0 0
      %1059 = vmatpush2.bf16.msra.mxu0 0
      %1060 = vmatprep.subr.bf16.mxu0 0
      %1061 = vmatpush2.bf16.msra.mxu0 0
      %1062 = vmatprep.subr.bf16.mxu0 0
      %1063 = vmatpush2.bf16.msra.mxu0 0
      %1064 = vmatprep.subr.bf16.mxu0 0
      %1065 = vmatpush2.bf16.msra.mxu0 0
      %1066 = vmatprep.mubr.bf16.mxu0 0
      %1067 = vmatmul.mubr.bf16.gmra.mxu0 %v1032
      %v1068 = vpop.f32.mrf.mxu0
      %v1069 = vadd.f32 0.0, %v1068
      %v1070 = vpop.f32.mrf.mxu0
      %v1071 = vpop.f32.mrf.mxu0
      %v1072 = vpop.f32.mrf.mxu0
      %1073 = vdwg.mxu0
      %v1074 = vadd.f32 %v1009, %v1069
      %s1075 = smul.addr %s1010, 2
      %s1076 = scalar_lea.vmem %s286, %s1075
      %v1077 = vld [vmem:[%s1076] sm:$0x1]
      %s1078 = scalar_lea.vmem %s4, 176
      %v1079 = vld [vmem:[%s1078] sm:$0xf]
      %v1080 = vld [vmem:[%s1078 + $0x4] sm:$0xf]
      %v1081 = vld [vmem:[%s1078 + $0x8] sm:$0xf]
      %v1082 = vld [vmem:[%s1078 + $0xc] sm:$0xf]
      %v1087 = vunpack.c.l.b16 %v1079
      %v1088 = vunpack.c.l.b16 %v1080
      %v1089 = vunpack.c.l.b16 %v1081
      %v1090 = vunpack.c.l.b16 %v1082
      %v1091 = vpack.c.b16 %v1088, %v1087
      %v1092 = vpack.c.b16 %v1090, %v1089
      %v1096 = vsel %vm333, %v1077, 0
      %1098 = vmatprep.subr.bf16.mxu0 0
      %1099 = vmatpush1.bf16.msra.mxu0 0
      %1100 = vmatprep.subr.bf16.mxu0 0
      %1101 = vmatpush1.bf16.msra.mxu0 0
      %1102 = vmatprep.subr.bf16.mxu0 0
      %1103 = vmatpush1.bf16.msra.mxu0 0
      %1104 = vmatprep.subr.bf16.mxu0 0
      %1105 = vmatpush1.bf16.msra.mxu0 0
      %1106 = vmatprep.subr.bf16.mxu0 0
      %1107 = vmatpush1.bf16.msra.mxu0 0
      %1108 = vmatprep.subr.bf16.mxu0 0
      %1109 = vmatpush1.bf16.msra.mxu0 0
      %1110 = vmatprep.subr.bf16.mxu0 0
      %1111 = vmatpush1.bf16.msra.mxu0 %v1092
      %1112 = vmatprep.subr.bf16.mxu0 0
      %1113 = vmatpush1.bf16.msra.mxu0 %v1091
      %1114 = vmatprep.subr.bf16.mxu0 0
      %1115 = vmatpush2.bf16.msra.mxu0 0
      %1116 = vmatprep.subr.bf16.mxu0 0
      %1117 = vmatpush2.bf16.msra.mxu0 0
      %1118 = vmatprep.subr.bf16.mxu0 0
      %1119 = vmatpush2.bf16.msra.mxu0 0
      %1120 = vmatprep.subr.bf16.mxu0 0
      %1121 = vmatpush2.bf16.msra.mxu0 0
      %1122 = vmatprep.subr.bf16.mxu0 0
      %1123 = vmatpush2.bf16.msra.mxu0 0
      %1124 = vmatprep.subr.bf16.mxu0 0
      %1125 = vmatpush2.bf16.msra.mxu0 0
      %1126 = vmatprep.subr.bf16.mxu0 0
      %1127 = vmatpush2.bf16.msra.mxu0 0
      %1128 = vmatprep.subr.bf16.mxu0 0
      %1129 = vmatpush2.bf16.msra.mxu0 0
      %1130 = vmatprep.mubr.bf16.mxu0 0
      %1131 = vmatmul.mubr.bf16.gmra.mxu0 %v1096
      %v1132 = vpop.f32.mrf.mxu0
      %v1133 = vadd.f32 0.0, %v1132
      %v1134 = vpop.f32.mrf.mxu0
      %v1135 = vpop.f32.mrf.mxu0
      %v1136 = vpop.f32.mrf.mxu0
      %1137 = vdwg.mxu0
      %v1138 = vadd.f32 %v1074, %v1133
      %v1139 = vld [vmem:[%s1012] sm:$0x3]
      %s1140 = scalar_lea.vmem %s4, 192
      %v1141 = vld [vmem:[%s1140] sm:$0xf]
      %v1142 = vld [vmem:[%s1140 + $0x4] sm:$0xf]
      %v1143 = vld [vmem:[%s1140 + $0x8] sm:$0xf]
      %v1144 = vld [vmem:[%s1140 + $0xc] sm:$0xf]
      %v1147 = vunpack.c.l.s4 1983009808
      %v1148 = vunpack.c.0.s8 %v1147
      %v1149 = vlaneseq
      %v1150 = vshrl.u32 %v1149, 7
      %v1151 = vsub.s32 %v1148, %v1150
      %v1152 = vrot.slane %v1139, %v1151
      %v1154 = vshrl.u32 %v1152, 16
      %v1156 = vshll.u32 %v1152, 16
      %v1158 = vrot.slane %v1156, 1
      %v1159 = vor.u32 %v1154, %v1158
      %v1164 = vunpack.c.l.b16 %v1141
      %v1165 = vunpack.c.l.b16 %v1142
      %v1166 = vunpack.c.l.b16 %v1143
      %v1167 = vunpack.c.l.b16 %v1144
      %v1168 = vpack.c.b16 %v1165, %v1164
      %v1169 = vpack.c.b16 %v1167, %v1166
      %v1173 = vsel %vm333, %v1159, 0
      %1175 = vmatprep.subr.bf16.mxu0 0
      %1176 = vmatpush1.bf16.msra.mxu0 0
      %1177 = vmatprep.subr.bf16.mxu0 0
      %1178 = vmatpush1.bf16.msra.mxu0 0
      %1179 = vmatprep.subr.bf16.mxu0 0
      %1180 = vmatpush1.bf16.msra.mxu0 0
      %1181 = vmatprep.subr.bf16.mxu0 0
      %1182 = vmatpush1.bf16.msra.mxu0 0
      %1183 = vmatprep.subr.bf16.mxu0 0
      %1184 = vmatpush1.bf16.msra.mxu0 0
      %1185 = vmatprep.subr.bf16.mxu0 0
      %1186 = vmatpush1.bf16.msra.mxu0 0
      %1187 = vmatprep.subr.bf16.mxu0 0
      %1188 = vmatpush1.bf16.msra.mxu0 %v1169
      %1189 = vmatprep.subr.bf16.mxu0 0
      %1190 = vmatpush1.bf16.msra.mxu0 %v1168
      %1191 = vmatprep.subr.bf16.mxu0 0
      %1192 = vmatpush2.bf16.msra.mxu0 0
      %1193 = vmatprep.subr.bf16.mxu0 0
      %1194 = vmatpush2.bf16.msra.mxu0 0
      %1195 = vmatprep.subr.bf16.mxu0 0
      %1196 = vmatpush2.bf16.msra.mxu0 0
      %1197 = vmatprep.subr.bf16.mxu0 0
      %1198 = vmatpush2.bf16.msra.mxu0 0
      %1199 = vmatprep.subr.bf16.mxu0 0
      %1200 = vmatpush2.bf16.msra.mxu0 0
      %1201 = vmatprep.subr.bf16.mxu0 0
      %1202 = vmatpush2.bf16.msra.mxu0 0
      %1203 = vmatprep.subr.bf16.mxu0 0
      %1204 = vmatpush2.bf16.msra.mxu0 0
      %1205 = vmatprep.subr.bf16.mxu0 0
      %1206 = vmatpush2.bf16.msra.mxu0 0
      %1207 = vmatprep.mubr.bf16.mxu0 0
      %1208 = vmatmul.mubr.bf16.gmra.mxu0 %v1173
      %v1209 = vpop.f32.mrf.mxu0
      %v1210 = vadd.f32 0.0, %v1209
      %v1211 = vpop.f32.mrf.mxu0
      %v1212 = vpop.f32.mrf.mxu0
      %v1213 = vpop.f32.mrf.mxu0
      %1214 = vdwg.mxu0
      %v1215 = vadd.f32 %v1138, %v1210
      %v1216 = vld [vmem:[%s1076] sm:$0x3]
      %s1217 = scalar_lea.vmem %s4, 208
      %v1218 = vld [vmem:[%s1217] sm:$0xf]
      %v1219 = vld [vmem:[%s1217 + $0x4] sm:$0xf]
      %v1220 = vld [vmem:[%s1217 + $0x8] sm:$0xf]
      %v1221 = vld [vmem:[%s1217 + $0xc] sm:$0xf]
      %v1224 = vunpack.c.l.s4 1983009808
      %v1225 = vunpack.c.0.s8 %v1224
      %v1226 = vlaneseq
      %v1227 = vshrl.u32 %v1226, 7
      %v1228 = vsub.s32 %v1225, %v1227
      %v1229 = vrot.slane %v1216, %v1228
      %v1231 = vshrl.u32 %v1229, 16
      %v1233 = vshll.u32 %v1229, 16
      %v1235 = vrot.slane %v1233, 1
      %v1236 = vor.u32 %v1231, %v1235
      %v1241 = vunpack.c.l.b16 %v1218
      %v1242 = vunpack.c.l.b16 %v1219
      %v1243 = vunpack.c.l.b16 %v1220
      %v1244 = vunpack.c.l.b16 %v1221
      %v1245 = vpack.c.b16 %v1242, %v1241
      %v1246 = vpack.c.b16 %v1244, %v1243
      %v1250 = vsel %vm333, %v1236, 0
      %1252 = vmatprep.subr.bf16.mxu0 0
      %1253 = vmatpush1.bf16.msra.mxu0 0
      %1254 = vmatprep.subr.bf16.mxu0 0
      %1255 = vmatpush1.bf16.msra.mxu0 0
      %1256 = vmatprep.subr.bf16.mxu0 0
      %1257 = vmatpush1.bf16.msra.mxu0 0
      %1258 = vmatprep.subr.bf16.mxu0 0
      %1259 = vmatpush1.bf16.msra.mxu0 0
      %1260 = vmatprep.subr.bf16.mxu0 0
      %1261 = vmatpush1.bf16.msra.mxu0 0
      %1262 = vmatprep.subr.bf16.mxu0 0
      %1263 = vmatpush1.bf16.msra.mxu0 0
      %1264 = vmatprep.subr.bf16.mxu0 0
      %1265 = vmatpush1.bf16.msra.mxu0 %v1246
      %1266 = vmatprep.subr.bf16.mxu0 0
      %1267 = vmatpush1.bf16.msra.mxu0 %v1245
      %1268 = vmatprep.subr.bf16.mxu0 0
      %1269 = vmatpush2.bf16.msra.mxu0 0
      %1270 = vmatprep.subr.bf16.mxu0 0
      %1271 = vmatpush2.bf16.msra.mxu0 0
      %1272 = vmatprep.subr.bf16.mxu0 0
      %1273 = vmatpush2.bf16.msra.mxu0 0
      %1274 = vmatprep.subr.bf16.mxu0 0
      %1275 = vmatpush2.bf16.msra.mxu0 0
      %1276 = vmatprep.subr.bf16.mxu0 0
      %1277 = vmatpush2.bf16.msra.mxu0 0
      %1278 = vmatprep.subr.bf16.mxu0 0
      %1279 = vmatpush2.bf16.msra.mxu0 0
      %1280 = vmatprep.subr.bf16.mxu0 0
      %1281 = vmatpush2.bf16.msra.mxu0 0
      %1282 = vmatprep.subr.bf16.mxu0 0
      %1283 = vmatpush2.bf16.msra.mxu0 0
      %1284 = vmatprep.mubr.bf16.mxu0 0
      %1285 = vmatmul.mubr.bf16.gmra.mxu0 %v1250
      %v1286 = vpop.f32.mrf.mxu0
      %v1287 = vadd.f32 0.0, %v1286
      %v1288 = vpop.f32.mrf.mxu0
      %v1289 = vpop.f32.mrf.mxu0
      %v1290 = vpop.f32.mrf.mxu0
      %1291 = vdwg.mxu0
      %v1292 = vadd.f32 %v1215, %v1287
      %v1293 = vld [vmem:[%s1012] sm:$0x2]
      %s1294 = scalar_lea.vmem %s4, 224
      %v1295 = vld [vmem:[%s1294] sm:$0xf]
      %v1296 = vld [vmem:[%s1294 + $0x4] sm:$0xf]
      %v1297 = vld [vmem:[%s1294 + $0x8] sm:$0xf]
      %v1298 = vld [vmem:[%s1294 + $0xc] sm:$0xf]
      %v1301 = vunpack.c.l.s4 1983009808
      %v1302 = vunpack.c.0.s8 %v1301
      %v1303 = vlaneseq
      %v1304 = vshrl.u32 %v1303, 7
      %v1305 = vsub.s32 %v1302, %v1304
      %v1306 = vrot.slane %v1293, %v1305
      %v1307 = vrot.slane %v1306, 1
      %v1312 = vunpack.c.l.b16 %v1295
      %v1313 = vunpack.c.l.b16 %v1296
      %v1314 = vunpack.c.l.b16 %v1297
      %v1315 = vunpack.c.l.b16 %v1298
      %v1316 = vpack.c.b16 %v1313, %v1312
      %v1317 = vpack.c.b16 %v1315, %v1314
      %v1321 = vsel %vm333, %v1307, 0
      %1323 = vmatprep.subr.bf16.mxu0 0
      %1324 = vmatpush1.bf16.msra.mxu0 0
      %1325 = vmatprep.subr.bf16.mxu0 0
      %1326 = vmatpush1.bf16.msra.mxu0 0
      %1327 = vmatprep.subr.bf16.mxu0 0
      %1328 = vmatpush1.bf16.msra.mxu0 0
      %1329 = vmatprep.subr.bf16.mxu0 0
      %1330 = vmatpush1.bf16.msra.mxu0 0
      %1331 = vmatprep.subr.bf16.mxu0 0
      %1332 = vmatpush1.bf16.msra.mxu0 0
      %1333 = vmatprep.subr.bf16.mxu0 0
      %1334 = vmatpush1.bf16.msra.mxu0 0
      %1335 = vmatprep.subr.bf16.mxu0 0
      %1336 = vmatpush1.bf16.msra.mxu0 %v1317
      %1337 = vmatprep.subr.bf16.mxu0 0
      %1338 = vmatpush1.bf16.msra.mxu0 %v1316
      %1339 = vmatprep.subr.bf16.mxu0 0
      %1340 = vmatpush2.bf16.msra.mxu0 0
      %1341 = vmatprep.subr.bf16.mxu0 0
      %1342 = vmatpush2.bf16.msra.mxu0 0
      %1343 = vmatprep.subr.bf16.mxu0 0
      %1344 = vmatpush2.bf16.msra.mxu0 0
      %1345 = vmatprep.subr.bf16.mxu0 0
      %1346 = vmatpush2.bf16.msra.mxu0 0
      %1347 = vmatprep.subr.bf16.mxu0 0
      %1348 = vmatpush2.bf16.msra.mxu0 0
      %1349 = vmatprep.subr.bf16.mxu0 0
      %1350 = vmatpush2.bf16.msra.mxu0 0
      %1351 = vmatprep.subr.bf16.mxu0 0
      %1352 = vmatpush2.bf16.msra.mxu0 0
      %1353 = vmatprep.subr.bf16.mxu0 0
      %1354 = vmatpush2.bf16.msra.mxu0 0
      %1355 = vmatprep.mubr.bf16.mxu0 0
      %1356 = vmatmul.mubr.bf16.gmra.mxu0 %v1321
      %v1357 = vpop.f32.mrf.mxu0
      %v1358 = vadd.f32 0.0, %v1357
      %v1359 = vpop.f32.mrf.mxu0
      %v1360 = vpop.f32.mrf.mxu0
      %v1361 = vpop.f32.mrf.mxu0
      %1362 = vdwg.mxu0
      %v1363 = vadd.f32 %v1292, %v1358
      %s1364 = smul.addr %s1010, 2
      %s1365 = scalar_lea.vmem %s291, %s1364
      %v1366 = vld [vmem:[%s1365] sm:$0x1]
      %s1367 = scalar_lea.vmem %s4, 240
      %v1368 = vld [vmem:[%s1367] sm:$0xf]
      %v1369 = vld [vmem:[%s1367 + $0x4] sm:$0xf]
      %v1370 = vld [vmem:[%s1367 + $0x8] sm:$0xf]
      %v1371 = vld [vmem:[%s1367 + $0xc] sm:$0xf]
      %v1376 = vunpack.c.l.b16 %v1368
      %v1377 = vunpack.c.l.b16 %v1369
      %v1378 = vunpack.c.l.b16 %v1370
      %v1379 = vunpack.c.l.b16 %v1371
      %v1380 = vpack.c.b16 %v1377, %v1376
      %v1381 = vpack.c.b16 %v1379, %v1378
      %v1385 = vsel %vm333, %v1366, 0
      %1387 = vmatprep.subr.bf16.mxu0 0
      %1388 = vmatpush1.bf16.msra.mxu0 0
      %1389 = vmatprep.subr.bf16.mxu0 0
      %1390 = vmatpush1.bf16.msra.mxu0 0
      %1391 = vmatprep.subr.bf16.mxu0 0
      %1392 = vmatpush1.bf16.msra.mxu0 0
      %1393 = vmatprep.subr.bf16.mxu0 0
      %1394 = vmatpush1.bf16.msra.mxu0 0
      %1395 = vmatprep.subr.bf16.mxu0 0
      %1396 = vmatpush1.bf16.msra.mxu0 0
      %1397 = vmatprep.subr.bf16.mxu0 0
      %1398 = vmatpush1.bf16.msra.mxu0 0
      %1399 = vmatprep.subr.bf16.mxu0 0
      %1400 = vmatpush1.bf16.msra.mxu0 %v1381
      %1401 = vmatprep.subr.bf16.mxu0 0
      %1402 = vmatpush1.bf16.msra.mxu0 %v1380
      %1403 = vmatprep.subr.bf16.mxu0 0
      %1404 = vmatpush2.bf16.msra.mxu0 0
      %1405 = vmatprep.subr.bf16.mxu0 0
      %1406 = vmatpush2.bf16.msra.mxu0 0
      %1407 = vmatprep.subr.bf16.mxu0 0
      %1408 = vmatpush2.bf16.msra.mxu0 0
      %1409 = vmatprep.subr.bf16.mxu0 0
      %1410 = vmatpush2.bf16.msra.mxu0 0
      %1411 = vmatprep.subr.bf16.mxu0 0
      %1412 = vmatpush2.bf16.msra.mxu0 0
      %1413 = vmatprep.subr.bf16.mxu0 0
      %1414 = vmatpush2.bf16.msra.mxu0 0
      %1415 = vmatprep.subr.bf16.mxu0 0
      %1416 = vmatpush2.bf16.msra.mxu0 0
      %1417 = vmatprep.subr.bf16.mxu0 0
      %1418 = vmatpush2.bf16.msra.mxu0 0
      %1419 = vmatprep.mubr.bf16.mxu0 0
      %1420 = vmatmul.mubr.bf16.gmra.mxu0 %v1385
      %v1421 = vpop.f32.mrf.mxu0
      %v1422 = vadd.f32 0.0, %v1421
      %v1423 = vpop.f32.mrf.mxu0
      %v1424 = vpop.f32.mrf.mxu0
      %v1425 = vpop.f32.mrf.mxu0
      %1426 = vdwg.mxu0
      %v1427 = vadd.f32 %v1363, %v1422
      %s1428 = smul.addr %s1010, 2
      %s1429 = scalar_lea.vmem %s296, %s1428
      %v1430 = vld [vmem:[%s1429] sm:$0x1]
      %s1431 = scalar_lea.vmem %s4, 256
      %v1432 = vld [vmem:[%s1431] sm:$0xf]
      %v1433 = vld [vmem:[%s1431 + $0x4] sm:$0xf]
      %v1434 = vld [vmem:[%s1431 + $0x8] sm:$0xf]
      %v1435 = vld [vmem:[%s1431 + $0xc] sm:$0xf]
      %v1440 = vunpack.c.l.b16 %v1432
      %v1441 = vunpack.c.l.b16 %v1433
      %v1442 = vunpack.c.l.b16 %v1434
      %v1443 = vunpack.c.l.b16 %v1435
      %v1444 = vpack.c.b16 %v1441, %v1440
      %v1445 = vpack.c.b16 %v1443, %v1442
      %v1449 = vsel %vm333, %v1430, 0
      %1451 = vmatprep.subr.bf16.mxu0 0
      %1452 = vmatpush1.bf16.msra.mxu0 0
      %1453 = vmatprep.subr.bf16.mxu0 0
      %1454 = vmatpush1.bf16.msra.mxu0 0
      %1455 = vmatprep.subr.bf16.mxu0 0
      %1456 = vmatpush1.bf16.msra.mxu0 0
      %1457 = vmatprep.subr.bf16.mxu0 0
      %1458 = vmatpush1.bf16.msra.mxu0 0
      %1459 = vmatprep.subr.bf16.mxu0 0
      %1460 = vmatpush1.bf16.msra.mxu0 0
      %1461 = vmatprep.subr.bf16.mxu0 0
      %1462 = vmatpush1.bf16.msra.mxu0 0
      %1463 = vmatprep.subr.bf16.mxu0 0
      %1464 = vmatpush1.bf16.msra.mxu0 %v1445
      %1465 = vmatprep.subr.bf16.mxu0 0
      %1466 = vmatpush1.bf16.msra.mxu0 %v1444
      %1467 = vmatprep.subr.bf16.mxu0 0
      %1468 = vmatpush2.bf16.msra.mxu0 0
      %1469 = vmatprep.subr.bf16.mxu0 0
      %1470 = vmatpush2.bf16.msra.mxu0 0
      %1471 = vmatprep.subr.bf16.mxu0 0
      %1472 = vmatpush2.bf16.msra.mxu0 0
      %1473 = vmatprep.subr.bf16.mxu0 0
      %1474 = vmatpush2.bf16.msra.mxu0 0
      %1475 = vmatprep.subr.bf16.mxu0 0
      %1476 = vmatpush2.bf16.msra.mxu0 0
      %1477 = vmatprep.subr.bf16.mxu0 0
      %1478 = vmatpush2.bf16.msra.mxu0 0
      %1479 = vmatprep.subr.bf16.mxu0 0
      %1480 = vmatpush2.bf16.msra.mxu0 0
      %1481 = vmatprep.subr.bf16.mxu0 0
      %1482 = vmatpush2.bf16.msra.mxu0 0
      %1483 = vmatprep.mubr.bf16.mxu0 0
      %1484 = vmatmul.mubr.bf16.gmra.mxu0 %v1449
      %v1485 = vpop.f32.mrf.mxu0
      %v1486 = vadd.f32 0.0, %v1485
      %v1487 = vpop.f32.mrf.mxu0
      %v1488 = vpop.f32.mrf.mxu0
      %v1489 = vpop.f32.mrf.mxu0
      %1490 = vdwg.mxu0
      %v1491 = vadd.f32 %v1427, %v1486
      %v1492 = vld [vmem:[%s1365] sm:$0x3]
      %s1493 = scalar_lea.vmem %s4, 272
      %v1494 = vld [vmem:[%s1493] sm:$0xf]
      %v1495 = vld [vmem:[%s1493 + $0x4] sm:$0xf]
      %v1496 = vld [vmem:[%s1493 + $0x8] sm:$0xf]
      %v1497 = vld [vmem:[%s1493 + $0xc] sm:$0xf]
      %v1500 = vunpack.c.l.s4 1983009808
      %v1501 = vunpack.c.0.s8 %v1500
      %v1502 = vlaneseq
      %v1503 = vshrl.u32 %v1502, 7
      %v1504 = vsub.s32 %v1501, %v1503
      %v1505 = vrot.slane %v1492, %v1504
      %v1507 = vshrl.u32 %v1505, 16
      %v1509 = vshll.u32 %v1505, 16
      %v1511 = vrot.slane %v1509, 1
      %v1512 = vor.u32 %v1507, %v1511
      %v1517 = vunpack.c.l.b16 %v1494
      %v1518 = vunpack.c.l.b16 %v1495
      %v1519 = vunpack.c.l.b16 %v1496
      %v1520 = vunpack.c.l.b16 %v1497
      %v1521 = vpack.c.b16 %v1518, %v1517
      %v1522 = vpack.c.b16 %v1520, %v1519
      %v1526 = vsel %vm333, %v1512, 0
      %1528 = vmatprep.subr.bf16.mxu0 0
      %1529 = vmatpush1.bf16.msra.mxu0 0
      %1530 = vmatprep.subr.bf16.mxu0 0
      %1531 = vmatpush1.bf16.msra.mxu0 0
      %1532 = vmatprep.subr.bf16.mxu0 0
      %1533 = vmatpush1.bf16.msra.mxu0 0
      %1534 = vmatprep.subr.bf16.mxu0 0
      %1535 = vmatpush1.bf16.msra.mxu0 0
      %1536 = vmatprep.subr.bf16.mxu0 0
      %1537 = vmatpush1.bf16.msra.mxu0 0
      %1538 = vmatprep.subr.bf16.mxu0 0
      %1539 = vmatpush1.bf16.msra.mxu0 0
      %1540 = vmatprep.subr.bf16.mxu0 0
      %1541 = vmatpush1.bf16.msra.mxu0 %v1522
      %1542 = vmatprep.subr.bf16.mxu0 0
      %1543 = vmatpush1.bf16.msra.mxu0 %v1521
      %1544 = vmatprep.subr.bf16.mxu0 0
      %1545 = vmatpush2.bf16.msra.mxu0 0
      %1546 = vmatprep.subr.bf16.mxu0 0
      %1547 = vmatpush2.bf16.msra.mxu0 0
      %1548 = vmatprep.subr.bf16.mxu0 0
      %1549 = vmatpush2.bf16.msra.mxu0 0
      %1550 = vmatprep.subr.bf16.mxu0 0
      %1551 = vmatpush2.bf16.msra.mxu0 0
      %1552 = vmatprep.subr.bf16.mxu0 0
      %1553 = vmatpush2.bf16.msra.mxu0 0
      %1554 = vmatprep.subr.bf16.mxu0 0
      %1555 = vmatpush2.bf16.msra.mxu0 0
      %1556 = vmatprep.subr.bf16.mxu0 0
      %1557 = vmatpush2.bf16.msra.mxu0 0
      %1558 = vmatprep.subr.bf16.mxu0 0
      %1559 = vmatpush2.bf16.msra.mxu0 0
      %1560 = vmatprep.mubr.bf16.mxu0 0
      %1561 = vmatmul.mubr.bf16.gmra.mxu0 %v1526
      %v1562 = vpop.f32.mrf.mxu0
      %v1563 = vadd.f32 0.0, %v1562
      %v1564 = vpop.f32.mrf.mxu0
      %v1565 = vpop.f32.mrf.mxu0
      %v1566 = vpop.f32.mrf.mxu0
      %1567 = vdwg.mxu0
      %v1568 = vadd.f32 %v1491, %v1563
      %v1569 = vld [vmem:[%s1429] sm:$0x3]
      %s1570 = scalar_lea.vmem %s4, 288
      %v1571 = vld [vmem:[%s1570] sm:$0xf]
      %v1572 = vld [vmem:[%s1570 + $0x4] sm:$0xf]
      %v1573 = vld [vmem:[%s1570 + $0x8] sm:$0xf]
      %v1574 = vld [vmem:[%s1570 + $0xc] sm:$0xf]
      %v1577 = vunpack.c.l.s4 1983009808
      %v1578 = vunpack.c.0.s8 %v1577
      %v1579 = vlaneseq
      %v1580 = vshrl.u32 %v1579, 7
      %v1581 = vsub.s32 %v1578, %v1580
      %v1582 = vrot.slane %v1569, %v1581
      %v1584 = vshrl.u32 %v1582, 16
      %v1586 = vshll.u32 %v1582, 16
      %v1588 = vrot.slane %v1586, 1
      %v1589 = vor.u32 %v1584, %v1588
      %v1594 = vunpack.c.l.b16 %v1571
      %v1595 = vunpack.c.l.b16 %v1572
      %v1596 = vunpack.c.l.b16 %v1573
      %v1597 = vunpack.c.l.b16 %v1574
      %v1598 = vpack.c.b16 %v1595, %v1594
      %v1599 = vpack.c.b16 %v1597, %v1596
      %v1603 = vsel %vm333, %v1589, 0
      %1605 = vmatprep.subr.bf16.mxu0 0
      %1606 = vmatpush1.bf16.msra.mxu0 0
      %1607 = vmatprep.subr.bf16.mxu0 0
      %1608 = vmatpush1.bf16.msra.mxu0 0
      %1609 = vmatprep.subr.bf16.mxu0 0
      %1610 = vmatpush1.bf16.msra.mxu0 0
      %1611 = vmatprep.subr.bf16.mxu0 0
      %1612 = vmatpush1.bf16.msra.mxu0 0
      %1613 = vmatprep.subr.bf16.mxu0 0
      %1614 = vmatpush1.bf16.msra.mxu0 0
      %1615 = vmatprep.subr.bf16.mxu0 0
      %1616 = vmatpush1.bf16.msra.mxu0 0
      %1617 = vmatprep.subr.bf16.mxu0 0
      %1618 = vmatpush1.bf16.msra.mxu0 %v1599
      %1619 = vmatprep.subr.bf16.mxu0 0
      %1620 = vmatpush1.bf16.msra.mxu0 %v1598
      %1621 = vmatprep.subr.bf16.mxu0 0
      %1622 = vmatpush2.bf16.msra.mxu0 0
      %1623 = vmatprep.subr.bf16.mxu0 0
      %1624 = vmatpush2.bf16.msra.mxu0 0
      %1625 = vmatprep.subr.bf16.mxu0 0
      %1626 = vmatpush2.bf16.msra.mxu0 0
      %1627 = vmatprep.subr.bf16.mxu0 0
      %1628 = vmatpush2.bf16.msra.mxu0 0
      %1629 = vmatprep.subr.bf16.mxu0 0
      %1630 = vmatpush2.bf16.msra.mxu0 0
      %1631 = vmatprep.subr.bf16.mxu0 0
      %1632 = vmatpush2.bf16.msra.mxu0 0
      %1633 = vmatprep.subr.bf16.mxu0 0
      %1634 = vmatpush2.bf16.msra.mxu0 0
      %1635 = vmatprep.subr.bf16.mxu0 0
      %1636 = vmatpush2.bf16.msra.mxu0 0
      %1637 = vmatprep.mubr.bf16.mxu0 0
      %1638 = vmatmul.mubr.bf16.gmra.mxu0 %v1603
      %v1639 = vpop.f32.mrf.mxu0
      %v1640 = vadd.f32 0.0, %v1639
      %v1641 = vpop.f32.mrf.mxu0
      %v1642 = vpop.f32.mrf.mxu0
      %v1643 = vpop.f32.mrf.mxu0
      %1644 = vdwg.mxu0
      %v1645 = vadd.f32 %v1568, %v1640
      %v1646 = vld [vmem:[%s1365] sm:$0x2]
      %s1647 = scalar_lea.vmem %s4, 304
      %v1648 = vld [vmem:[%s1647] sm:$0xf]
      %v1649 = vld [vmem:[%s1647 + $0x4] sm:$0xf]
      %v1650 = vld [vmem:[%s1647 + $0x8] sm:$0xf]
      %v1651 = vld [vmem:[%s1647 + $0xc] sm:$0xf]
      %v1654 = vunpack.c.l.s4 1983009808
      %v1655 = vunpack.c.0.s8 %v1654
      %v1656 = vlaneseq
      %v1657 = vshrl.u32 %v1656, 7
      %v1658 = vsub.s32 %v1655, %v1657
      %v1659 = vrot.slane %v1646, %v1658
      %v1660 = vrot.slane %v1659, 1
      %v1665 = vunpack.c.l.b16 %v1648
      %v1666 = vunpack.c.l.b16 %v1649
      %v1667 = vunpack.c.l.b16 %v1650
      %v1668 = vunpack.c.l.b16 %v1651
      %v1669 = vpack.c.b16 %v1666, %v1665
      %v1670 = vpack.c.b16 %v1668, %v1667
      %v1674 = vsel %vm333, %v1660, 0
      %1676 = vmatprep.subr.bf16.mxu0 0
      %1677 = vmatpush1.bf16.msra.mxu0 0
      %1678 = vmatprep.subr.bf16.mxu0 0
      %1679 = vmatpush1.bf16.msra.mxu0 0
      %1680 = vmatprep.subr.bf16.mxu0 0
      %1681 = vmatpush1.bf16.msra.mxu0 0
      %1682 = vmatprep.subr.bf16.mxu0 0
      %1683 = vmatpush1.bf16.msra.mxu0 0
      %1684 = vmatprep.subr.bf16.mxu0 0
      %1685 = vmatpush1.bf16.msra.mxu0 0
      %1686 = vmatprep.subr.bf16.mxu0 0
      %1687 = vmatpush1.bf16.msra.mxu0 0
      %1688 = vmatprep.subr.bf16.mxu0 0
      %1689 = vmatpush1.bf16.msra.mxu0 %v1670
      %1690 = vmatprep.subr.bf16.mxu0 0
      %1691 = vmatpush1.bf16.msra.mxu0 %v1669
      %1692 = vmatprep.subr.bf16.mxu0 0
      %1693 = vmatpush2.bf16.msra.mxu0 0
      %1694 = vmatprep.subr.bf16.mxu0 0
      %1695 = vmatpush2.bf16.msra.mxu0 0
      %1696 = vmatprep.subr.bf16.mxu0 0
      %1697 = vmatpush2.bf16.msra.mxu0 0
      %1698 = vmatprep.subr.bf16.mxu0 0
      %1699 = vmatpush2.bf16.msra.mxu0 0
      %1700 = vmatprep.subr.bf16.mxu0 0
      %1701 = vmatpush2.bf16.msra.mxu0 0
      %1702 = vmatprep.subr.bf16.mxu0 0
      %1703 = vmatpush2.bf16.msra.mxu0 0
      %1704 = vmatprep.subr.bf16.mxu0 0
      %1705 = vmatpush2.bf16.msra.mxu0 0
      %1706 = vmatprep.subr.bf16.mxu0 0
      %1707 = vmatpush2.bf16.msra.mxu0 0
      %1708 = vmatprep.mubr.bf16.mxu0 0
      %1709 = vmatmul.mubr.bf16.gmra.mxu0 %v1674
      %v1710 = vpop.f32.mrf.mxu0
      %v1711 = vadd.f32 0.0, %v1710
      %v1712 = vpop.f32.mrf.mxu0
      %v1713 = vpop.f32.mrf.mxu0
      %v1714 = vpop.f32.mrf.mxu0
      %1715 = vdwg.mxu0
      %v1716 = vadd.f32 %v1645, %v1711
      %s1717 = sadd.s32 %s21, 2
      %s1718 = smul.addr %s1717, 2
      %s1719 = scalar_lea.vmem %s281, %s1718
      %v1720 = vld [vmem:[%s1719] sm:$0x1]
      %s1721 = scalar_lea.vmem %s4, 320
      %v1722 = vld [vmem:[%s1721] sm:$0xf]
      %v1723 = vld [vmem:[%s1721 + $0x4] sm:$0xf]
      %v1724 = vld [vmem:[%s1721 + $0x8] sm:$0xf]
      %v1725 = vld [vmem:[%s1721 + $0xc] sm:$0xf]
      %v1730 = vunpack.c.l.b16 %v1722
      %v1731 = vunpack.c.l.b16 %v1723
      %v1732 = vunpack.c.l.b16 %v1724
      %v1733 = vunpack.c.l.b16 %v1725
      %v1734 = vpack.c.b16 %v1731, %v1730
      %v1735 = vpack.c.b16 %v1733, %v1732
      %v1739 = vsel %vm333, %v1720, 0
      %1741 = vmatprep.subr.bf16.mxu0 0
      %1742 = vmatpush1.bf16.msra.mxu0 0
      %1743 = vmatprep.subr.bf16.mxu0 0
      %1744 = vmatpush1.bf16.msra.mxu0 0
      %1745 = vmatprep.subr.bf16.mxu0 0
      %1746 = vmatpush1.bf16.msra.mxu0 0
      %1747 = vmatprep.subr.bf16.mxu0 0
      %1748 = vmatpush1.bf16.msra.mxu0 0
      %1749 = vmatprep.subr.bf16.mxu0 0
      %1750 = vmatpush1.bf16.msra.mxu0 0
      %1751 = vmatprep.subr.bf16.mxu0 0
      %1752 = vmatpush1.bf16.msra.mxu0 0
      %1753 = vmatprep.subr.bf16.mxu0 0
      %1754 = vmatpush1.bf16.msra.mxu0 %v1735
      %1755 = vmatprep.subr.bf16.mxu0 0
      %1756 = vmatpush1.bf16.msra.mxu0 %v1734
      %1757 = vmatprep.subr.bf16.mxu0 0
      %1758 = vmatpush2.bf16.msra.mxu0 0
      %1759 = vmatprep.subr.bf16.mxu0 0
      %1760 = vmatpush2.bf16.msra.mxu0 0
      %1761 = vmatprep.subr.bf16.mxu0 0
      %1762 = vmatpush2.bf16.msra.mxu0 0
      %1763 = vmatprep.subr.bf16.mxu0 0
      %1764 = vmatpush2.bf16.msra.mxu0 0
      %1765 = vmatprep.subr.bf16.mxu0 0
      %1766 = vmatpush2.bf16.msra.mxu0 0
      %1767 = vmatprep.subr.bf16.mxu0 0
      %1768 = vmatpush2.bf16.msra.mxu0 0
      %1769 = vmatprep.subr.bf16.mxu0 0
      %1770 = vmatpush2.bf16.msra.mxu0 0
      %1771 = vmatprep.subr.bf16.mxu0 0
      %1772 = vmatpush2.bf16.msra.mxu0 0
      %1773 = vmatprep.mubr.bf16.mxu0 0
      %1774 = vmatmul.mubr.bf16.gmra.mxu0 %v1739
      %v1775 = vpop.f32.mrf.mxu0
      %v1776 = vadd.f32 0.0, %v1775
      %v1777 = vpop.f32.mrf.mxu0
      %v1778 = vpop.f32.mrf.mxu0
      %v1779 = vpop.f32.mrf.mxu0
      %1780 = vdwg.mxu0
      %v1781 = vadd.f32 %v1716, %v1776
      %s1782 = smul.addr %s1717, 2
      %s1783 = scalar_lea.vmem %s286, %s1782
      %v1784 = vld [vmem:[%s1783] sm:$0x1]
      %s1785 = scalar_lea.vmem %s4, 336
      %v1786 = vld [vmem:[%s1785] sm:$0xf]
      %v1787 = vld [vmem:[%s1785 + $0x4] sm:$0xf]
      %v1788 = vld [vmem:[%s1785 + $0x8] sm:$0xf]
      %v1789 = vld [vmem:[%s1785 + $0xc] sm:$0xf]
      %v1794 = vunpack.c.l.b16 %v1786
      %v1795 = vunpack.c.l.b16 %v1787
      %v1796 = vunpack.c.l.b16 %v1788
      %v1797 = vunpack.c.l.b16 %v1789
      %v1798 = vpack.c.b16 %v1795, %v1794
      %v1799 = vpack.c.b16 %v1797, %v1796
      %v1803 = vsel %vm333, %v1784, 0
      %1805 = vmatprep.subr.bf16.mxu0 0
      %1806 = vmatpush1.bf16.msra.mxu0 0
      %1807 = vmatprep.subr.bf16.mxu0 0
      %1808 = vmatpush1.bf16.msra.mxu0 0
      %1809 = vmatprep.subr.bf16.mxu0 0
      %1810 = vmatpush1.bf16.msra.mxu0 0
      %1811 = vmatprep.subr.bf16.mxu0 0
      %1812 = vmatpush1.bf16.msra.mxu0 0
      %1813 = vmatprep.subr.bf16.mxu0 0
      %1814 = vmatpush1.bf16.msra.mxu0 0
      %1815 = vmatprep.subr.bf16.mxu0 0
      %1816 = vmatpush1.bf16.msra.mxu0 0
      %1817 = vmatprep.subr.bf16.mxu0 0
      %1818 = vmatpush1.bf16.msra.mxu0 %v1799
      %1819 = vmatprep.subr.bf16.mxu0 0
      %1820 = vmatpush1.bf16.msra.mxu0 %v1798
      %1821 = vmatprep.subr.bf16.mxu0 0
      %1822 = vmatpush2.bf16.msra.mxu0 0
      %1823 = vmatprep.subr.bf16.mxu0 0
      %1824 = vmatpush2.bf16.msra.mxu0 0
      %1825 = vmatprep.subr.bf16.mxu0 0
      %1826 = vmatpush2.bf16.msra.mxu0 0
      %1827 = vmatprep.subr.bf16.mxu0 0
      %1828 = vmatpush2.bf16.msra.mxu0 0
      %1829 = vmatprep.subr.bf16.mxu0 0
      %1830 = vmatpush2.bf16.msra.mxu0 0
      %1831 = vmatprep.subr.bf16.mxu0 0
      %1832 = vmatpush2.bf16.msra.mxu0 0
      %1833 = vmatprep.subr.bf16.mxu0 0
      %1834 = vmatpush2.bf16.msra.mxu0 0
      %1835 = vmatprep.subr.bf16.mxu0 0
      %1836 = vmatpush2.bf16.msra.mxu0 0
      %1837 = vmatprep.mubr.bf16.mxu0 0
      %1838 = vmatmul.mubr.bf16.gmra.mxu0 %v1803
      %v1839 = vpop.f32.mrf.mxu0
      %v1840 = vadd.f32 0.0, %v1839
      %v1841 = vpop.f32.mrf.mxu0
      %v1842 = vpop.f32.mrf.mxu0
      %v1843 = vpop.f32.mrf.mxu0
      %1844 = vdwg.mxu0
      %v1845 = vadd.f32 %v1781, %v1840
      %v1846 = vld [vmem:[%s1719] sm:$0x3]
      %s1847 = scalar_lea.vmem %s4, 352
      %v1848 = vld [vmem:[%s1847] sm:$0xf]
      %v1849 = vld [vmem:[%s1847 + $0x4] sm:$0xf]
      %v1850 = vld [vmem:[%s1847 + $0x8] sm:$0xf]
      %v1851 = vld [vmem:[%s1847 + $0xc] sm:$0xf]
      %v1854 = vunpack.c.l.s4 1983009808
      %v1855 = vunpack.c.0.s8 %v1854
      %v1856 = vlaneseq
      %v1857 = vshrl.u32 %v1856, 7
      %v1858 = vsub.s32 %v1855, %v1857
      %v1859 = vrot.slane %v1846, %v1858
      %v1861 = vshrl.u32 %v1859, 16
      %v1863 = vshll.u32 %v1859, 16
      %v1865 = vrot.slane %v1863, 1
      %v1866 = vor.u32 %v1861, %v1865
      %v1871 = vunpack.c.l.b16 %v1848
      %v1872 = vunpack.c.l.b16 %v1849
      %v1873 = vunpack.c.l.b16 %v1850
      %v1874 = vunpack.c.l.b16 %v1851
      %v1875 = vpack.c.b16 %v1872, %v1871
      %v1876 = vpack.c.b16 %v1874, %v1873
      %v1880 = vsel %vm333, %v1866, 0
      %1882 = vmatprep.subr.bf16.mxu0 0
      %1883 = vmatpush1.bf16.msra.mxu0 0
      %1884 = vmatprep.subr.bf16.mxu0 0
      %1885 = vmatpush1.bf16.msra.mxu0 0
      %1886 = vmatprep.subr.bf16.mxu0 0
      %1887 = vmatpush1.bf16.msra.mxu0 0
      %1888 = vmatprep.subr.bf16.mxu0 0
      %1889 = vmatpush1.bf16.msra.mxu0 0
      %1890 = vmatprep.subr.bf16.mxu0 0
      %1891 = vmatpush1.bf16.msra.mxu0 0
      %1892 = vmatprep.subr.bf16.mxu0 0
      %1893 = vmatpush1.bf16.msra.mxu0 0
      %1894 = vmatprep.subr.bf16.mxu0 0
      %1895 = vmatpush1.bf16.msra.mxu0 %v1876
      %1896 = vmatprep.subr.bf16.mxu0 0
      %1897 = vmatpush1.bf16.msra.mxu0 %v1875
      %1898 = vmatprep.subr.bf16.mxu0 0
      %1899 = vmatpush2.bf16.msra.mxu0 0
      %1900 = vmatprep.subr.bf16.mxu0 0
      %1901 = vmatpush2.bf16.msra.mxu0 0
      %1902 = vmatprep.subr.bf16.mxu0 0
      %1903 = vmatpush2.bf16.msra.mxu0 0
      %1904 = vmatprep.subr.bf16.mxu0 0
      %1905 = vmatpush2.bf16.msra.mxu0 0
      %1906 = vmatprep.subr.bf16.mxu0 0
      %1907 = vmatpush2.bf16.msra.mxu0 0
      %1908 = vmatprep.subr.bf16.mxu0 0
      %1909 = vmatpush2.bf16.msra.mxu0 0
      %1910 = vmatprep.subr.bf16.mxu0 0
      %1911 = vmatpush2.bf16.msra.mxu0 0
      %1912 = vmatprep.subr.bf16.mxu0 0
      %1913 = vmatpush2.bf16.msra.mxu0 0
      %1914 = vmatprep.mubr.bf16.mxu0 0
      %1915 = vmatmul.mubr.bf16.gmra.mxu0 %v1880
      %v1916 = vpop.f32.mrf.mxu0
      %v1917 = vadd.f32 0.0, %v1916
      %v1918 = vpop.f32.mrf.mxu0
      %v1919 = vpop.f32.mrf.mxu0
      %v1920 = vpop.f32.mrf.mxu0
      %1921 = vdwg.mxu0
      %v1922 = vadd.f32 %v1845, %v1917
      %v1923 = vld [vmem:[%s1783] sm:$0x3]
      %s1924 = scalar_lea.vmem %s4, 368
      %v1925 = vld [vmem:[%s1924] sm:$0xf]
      %v1926 = vld [vmem:[%s1924 + $0x4] sm:$0xf]
      %v1927 = vld [vmem:[%s1924 + $0x8] sm:$0xf]
      %v1928 = vld [vmem:[%s1924 + $0xc] sm:$0xf]
      %v1931 = vunpack.c.l.s4 1983009808
      %v1932 = vunpack.c.0.s8 %v1931
      %v1933 = vlaneseq
      %v1934 = vshrl.u32 %v1933, 7
      %v1935 = vsub.s32 %v1932, %v1934
      %v1936 = vrot.slane %v1923, %v1935
      %v1938 = vshrl.u32 %v1936, 16
      %v1940 = vshll.u32 %v1936, 16
      %v1942 = vrot.slane %v1940, 1
      %v1943 = vor.u32 %v1938, %v1942
      %v1948 = vunpack.c.l.b16 %v1925
      %v1949 = vunpack.c.l.b16 %v1926
      %v1950 = vunpack.c.l.b16 %v1927
      %v1951 = vunpack.c.l.b16 %v1928
      %v1952 = vpack.c.b16 %v1949, %v1948
      %v1953 = vpack.c.b16 %v1951, %v1950
      %v1957 = vsel %vm333, %v1943, 0
      %1959 = vmatprep.subr.bf16.mxu0 0
      %1960 = vmatpush1.bf16.msra.mxu0 0
      %1961 = vmatprep.subr.bf16.mxu0 0
      %1962 = vmatpush1.bf16.msra.mxu0 0
      %1963 = vmatprep.subr.bf16.mxu0 0
      %1964 = vmatpush1.bf16.msra.mxu0 0
      %1965 = vmatprep.subr.bf16.mxu0 0
      %1966 = vmatpush1.bf16.msra.mxu0 0
      %1967 = vmatprep.subr.bf16.mxu0 0
      %1968 = vmatpush1.bf16.msra.mxu0 0
      %1969 = vmatprep.subr.bf16.mxu0 0
      %1970 = vmatpush1.bf16.msra.mxu0 0
      %1971 = vmatprep.subr.bf16.mxu0 0
      %1972 = vmatpush1.bf16.msra.mxu0 %v1953
      %1973 = vmatprep.subr.bf16.mxu0 0
      %1974 = vmatpush1.bf16.msra.mxu0 %v1952
      %1975 = vmatprep.subr.bf16.mxu0 0
      %1976 = vmatpush2.bf16.msra.mxu0 0
      %1977 = vmatprep.subr.bf16.mxu0 0
      %1978 = vmatpush2.bf16.msra.mxu0 0
      %1979 = vmatprep.subr.bf16.mxu0 0
      %1980 = vmatpush2.bf16.msra.mxu0 0
      %1981 = vmatprep.subr.bf16.mxu0 0
      %1982 = vmatpush2.bf16.msra.mxu0 0
      %1983 = vmatprep.subr.bf16.mxu0 0
      %1984 = vmatpush2.bf16.msra.mxu0 0
      %1985 = vmatprep.subr.bf16.mxu0 0
      %1986 = vmatpush2.bf16.msra.mxu0 0
      %1987 = vmatprep.subr.bf16.mxu0 0
      %1988 = vmatpush2.bf16.msra.mxu0 0
      %1989 = vmatprep.subr.bf16.mxu0 0
      %1990 = vmatpush2.bf16.msra.mxu0 0
      %1991 = vmatprep.mubr.bf16.mxu0 0
      %1992 = vmatmul.mubr.bf16.gmra.mxu0 %v1957
      %v1993 = vpop.f32.mrf.mxu0
      %v1994 = vadd.f32 0.0, %v1993
      %v1995 = vpop.f32.mrf.mxu0
      %v1996 = vpop.f32.mrf.mxu0
      %v1997 = vpop.f32.mrf.mxu0
      %1998 = vdwg.mxu0
      %v1999 = vadd.f32 %v1922, %v1994
      %v2000 = vld [vmem:[%s1719] sm:$0x2]
      %s2001 = scalar_lea.vmem %s4, 384
      %v2002 = vld [vmem:[%s2001] sm:$0xf]
      %v2003 = vld [vmem:[%s2001 + $0x4] sm:$0xf]
      %v2004 = vld [vmem:[%s2001 + $0x8] sm:$0xf]
      %v2005 = vld [vmem:[%s2001 + $0xc] sm:$0xf]
      %v2008 = vunpack.c.l.s4 1983009808
      %v2009 = vunpack.c.0.s8 %v2008
      %v2010 = vlaneseq
      %v2011 = vshrl.u32 %v2010, 7
      %v2012 = vsub.s32 %v2009, %v2011
      %v2013 = vrot.slane %v2000, %v2012
      %v2014 = vrot.slane %v2013, 1
      %v2019 = vunpack.c.l.b16 %v2002
      %v2020 = vunpack.c.l.b16 %v2003
      %v2021 = vunpack.c.l.b16 %v2004
      %v2022 = vunpack.c.l.b16 %v2005
      %v2023 = vpack.c.b16 %v2020, %v2019
      %v2024 = vpack.c.b16 %v2022, %v2021
      %v2028 = vsel %vm333, %v2014, 0
      %2030 = vmatprep.subr.bf16.mxu0 0
      %2031 = vmatpush1.bf16.msra.mxu0 0
      %2032 = vmatprep.subr.bf16.mxu0 0
      %2033 = vmatpush1.bf16.msra.mxu0 0
      %2034 = vmatprep.subr.bf16.mxu0 0
      %2035 = vmatpush1.bf16.msra.mxu0 0
      %2036 = vmatprep.subr.bf16.mxu0 0
      %2037 = vmatpush1.bf16.msra.mxu0 0
      %2038 = vmatprep.subr.bf16.mxu0 0
      %2039 = vmatpush1.bf16.msra.mxu0 0
      %2040 = vmatprep.subr.bf16.mxu0 0
      %2041 = vmatpush1.bf16.msra.mxu0 0
      %2042 = vmatprep.subr.bf16.mxu0 0
      %2043 = vmatpush1.bf16.msra.mxu0 %v2024
      %2044 = vmatprep.subr.bf16.mxu0 0
      %2045 = vmatpush1.bf16.msra.mxu0 %v2023
      %2046 = vmatprep.subr.bf16.mxu0 0
      %2047 = vmatpush2.bf16.msra.mxu0 0
      %2048 = vmatprep.subr.bf16.mxu0 0
      %2049 = vmatpush2.bf16.msra.mxu0 0
      %2050 = vmatprep.subr.bf16.mxu0 0
      %2051 = vmatpush2.bf16.msra.mxu0 0
      %2052 = vmatprep.subr.bf16.mxu0 0
      %2053 = vmatpush2.bf16.msra.mxu0 0
      %2054 = vmatprep.subr.bf16.mxu0 0
      %2055 = vmatpush2.bf16.msra.mxu0 0
      %2056 = vmatprep.subr.bf16.mxu0 0
      %2057 = vmatpush2.bf16.msra.mxu0 0
      %2058 = vmatprep.subr.bf16.mxu0 0
      %2059 = vmatpush2.bf16.msra.mxu0 0
      %2060 = vmatprep.subr.bf16.mxu0 0
      %2061 = vmatpush2.bf16.msra.mxu0 0
      %2062 = vmatprep.mubr.bf16.mxu0 0
      %2063 = vmatmul.mubr.bf16.gmra.mxu0 %v2028
      %v2064 = vpop.f32.mrf.mxu0
      %v2065 = vadd.f32 0.0, %v2064
      %v2066 = vpop.f32.mrf.mxu0
      %v2067 = vpop.f32.mrf.mxu0
      %v2068 = vpop.f32.mrf.mxu0
      %2069 = vdwg.mxu0
      %v2070 = vadd.f32 %v1999, %v2065
      %2071 = vst [vmem:[%s304] sm:$0x3] %v2070
      %p2072 = scmp.lt.s32.totalorder %s20, 1
      %s2073 = scalar_select %p2072, %s20, 1
      %p2074 = scmp.lt.s32.totalorder %s21, 1
      %s2075 = scalar_select %p2074, %s21, 1
      %s2076 = smul.addr %s2073, 2
      %s2077 = sadd.s32 %s2075, %s2076
      %s2078 = smul.addr %s2077, 2
      %s2079 = scalar_lea.vmem %s5, %s2078
      // Predicated region
      $region41: #{binary_encoder_forward.5} parent=39 // pred_check
        %p2080 = pneg %p173
      $region42: #{binary_encoder_forward.5} parent=39 // pred_check_branch
        %2082 = sbr.rel (%p2080) target = $region44
      $region43: #{binary_encoder_forward.5} parent=39 // pred_region
        _
      $region44: #{binary_encoder_forward.5} parent=39 // pred_fallthru
        _
    $region40: #{binary_encoder_forward.5} parent=5 // pred_fallthru
      _
    %p2083 = scmp.le.s32.totalorder 2, %s11
    // Predicated region
    $region45: #{binary_encoder_forward.5} parent=5 // pred_check
      %p2084 = pneg %p2083
    $region46: #{binary_encoder_forward.5} parent=5 // pred_check_branch
      %2086 = sbr.rel (%p2084) target = $region48
    $region47: #{binary_encoder_forward.5} parent=5 // pred_region
      %s2087 = ssub.s32 %s11, 2
      // Predicated region
      $region49: #{binary_encoder_forward.5} parent=47 // pred_check
        %p2088 = pneg %p179
      $region50: #{binary_encoder_forward.5} parent=47 // pred_check_branch
        %2090 = sbr.rel (%p2088) target = $region52
      $region51: #{binary_encoder_forward.5} parent=47 // pred_region
        %p2091 = scmp.lt.s32.totalorder %s22, 1
        %s2092 = scalar_select %p2091, %s22, 1
        %p2093 = scmp.lt.s32.totalorder %s23, 1
        %s2094 = scalar_select %p2093, %s23, 1
        %s2095 = smul.addr %s2092, 2
        %s2096 = sadd.s32 %s2094, %s2095
        %s2097 = smul.addr %s2096, 2
        %s2098 = scalar_lea.vmem %s5, %s2097
      $region52: #{binary_encoder_forward.5} parent=47 // pred_fallthru
        _
    $region48: #{binary_encoder_forward.5} parent=5 // pred_fallthru
      _
  $region6: #{binary_encoder_forward.5} parent=0 // loop_footer
    %s15 = sadd.s32 1, %s11
  $region7: #{binary_encoder_forward.5} parent=0 // loop_footer_branch
    %10 = sbr.rel target = $region3
  $region8: #{binary_encoder_forward.5} parent=0 // loop_exit
    _

</llo_original>
